<compile_context>
chip_gen: v7x
topology: tpu7x:2x2x1
jax: 0.10.0
libtpu: 0.0.40
codegen_flags: <defaults>
</compile_context>

<pallas_src>
import functools
import math

import jax
import jax.numpy as jnp
import numpy as np
from jax import lax
from jax.experimental import pallas as pl
from jax.experimental.pallas import tpu as pltpu


# ----------------------------------------------------------------------------
# Small helpers
# ----------------------------------------------------------------------------

def _round_up(x, m):
    return ((x + m - 1) // m) * m


def _cdiv(a, b):
    return -(-a // b)


def _sigmoid(x):
    # 0.5*(tanh(x/2)+1): one EUP op + two VPU ops instead of exp + divide.
    return 0.5 * (jnp.tanh(0.5 * x) + 1.0)


# ----------------------------------------------------------------------------
# Parameter padding / bias folding (shared by kernel wrapper and reference)
# ----------------------------------------------------------------------------

def _pad_gate_params(params, model_struct):
    Wih = params["weight_ih"].astype(jnp.float32)
    Whh = params["weight_hh"].astype(jnp.float32)
    bih = params["bias_ih"].astype(jnp.float32)
    bhh = params["bias_hh"].astype(jnp.float32)
    H = Whh.shape[1]
    G = Wih.shape[0] // H
    # Each gate is padded to a lane-aligned Hp so gate slices / stores are
    # lane-dense.  For H << 128 this inflates work by Hp/H; production hidden
    # sizes should be multiples of 128.  Zero padding is exact (padded hidden
    # units stay identically 0 through the recurrence).
    Hp = _round_up(H, 128)

    def pad_rows(w):                       # (G*H, X) -> (G*Hp, X)
        w3 = w.reshape(G, H, w.shape[1])
        return jnp.pad(w3, ((0, 0), (0, Hp - H), (0, 0))).reshape(G * Hp,
                                                                  w.shape[1])

    Wih_p = pad_rows(Wih)                                        # (G*Hp, Hin)
    Whh_p = jnp.pad(Whh.reshape(G, H, H),
                    ((0, 0), (0, Hp - H), (0, Hp - H))).reshape(G * Hp, Hp)
    bih_p = jnp.pad(bih.reshape(G, H), ((0, 0), (0, Hp - H))).reshape(G * Hp)
    bhh_g = jnp.pad(bhh.reshape(G, H), ((0, 0), (0, Hp - H)))    # (G, Hp)

    if model_struct == "gru":
        # b_hr, b_hz fold into the precomputed gate inputs; only b_hn must
        # stay on the h side (inside r * (Whh_n h + b_hn)).
        b_fold = bih_p + jnp.concatenate(
            [bhh_g[0], bhh_g[1], jnp.zeros((Hp,), jnp.float32)])
        bhn = bhh_g[2].reshape(1, Hp)
    else:
        b_fold = bih_p + bhh_g.reshape(G * Hp)
        bhn = None
    return Wih_p, Whh_p, b_fold, bhn, H, G, Hp


# ----------------------------------------------------------------------------
# Kernels: one grid step == one (batch block, time block).  The hidden/cell
# state lives in VMEM scratch and is carried across the sequential time axis.
# gx_ref already contains x @ Wih^T + folded biases (bf16; cast to f32 here).
# ----------------------------------------------------------------------------

def _rnn_kernel(gx_ref, whh_ref, out_ref, hn_ref, h_scr,
                *, TB, L, mask_tail, unroll, nonlin):
    t_blk = pl.program_id(1)

    @pl.when(t_blk == 0)
    def _():
        h_scr[...] = jnp.zeros_like(h_scr)

    t0 = t_blk * TB

    def step(i, h):
        pre = gx_ref[i].astype(jnp.float32) + jnp.dot(
            h.astype(whh_ref.dtype), whh_ref[...],
            preferred_element_type=jnp.float32)
        h_new = jnp.tanh(pre) if nonlin == "tanh" else jnp.maximum(pre, 0.0)
        out_ref[i] = h_new.astype(out_ref.dtype)
        if mask_tail:
            h_new = jnp.where(t0 + i < L, h_new, h)
        return h_new

    h_scr[...] = lax.fori_loop(0, TB, step, h_scr[...], unroll=unroll)

    @pl.when(t_blk == pl.num_programs(1) - 1)
    def _():
        hn_ref[0] = h_scr[...].astype(hn_ref.dtype)


def _gru_kernel(gx_ref, whh_ref, bhn_ref, out_ref, hn_ref, h_scr,
                *, Hp, TB, L, mask_tail, unroll):
    t_blk = pl.program_id(1)

    @pl.when(t_blk == 0)
    def _():
        h_scr[...] = jnp.zeros_like(h_scr)

    NB = h_scr.shape[0]
    # Hoisted broadcast of b_hn (the only hh-bias not folded into gx).
    bhn = pl.broadcast_to(bhn_ref[...], (NB, Hp))
    t0 = t_blk * TB

    def step(i, h):
        gx = gx_ref[i].astype(jnp.float32)
        gh = jnp.dot(h.astype(whh_ref.dtype), whh_ref[...],
                     preferred_element_type=jnp.float32)
        # PyTorch GRU gate order: r, z, n  (lane-aligned Hp-wide slices).
        r = _sigmoid(gx[:, 0 * Hp:1 * Hp] + gh[:, 0 * Hp:1 * Hp])
        z = _sigmoid(gx[:, 1 * Hp:2 * Hp] + gh[:, 1 * Hp:2 * Hp])
        n = jnp.tanh(gx[:, 2 * Hp:3 * Hp] + r * (gh[:, 2 * Hp:3 * Hp] + bhn))
        h_new = (1.0 - z) * n + z * h
        out_ref[i] = h_new.astype(out_ref.dtype)
        if mask_tail:
            h_new = jnp.where(t0 + i < L, h_new, h)
        return h_new

    h_scr[...] = lax.fori_loop(0, TB, step, h_scr[...], unroll=unroll)

    @pl.when(t_blk == pl.num_programs(1) - 1)
    def _():
        hn_ref[0] = h_scr[...].astype(hn_ref.dtype)


def _lstm_kernel(gx_ref, whh_ref, out_ref, hn_ref, cn_ref, h_scr, c_scr,
                 *, Hp, TB, L, mask_tail, unroll):
    t_blk = pl.program_id(1)

    @pl.when(t_blk == 0)
    def _():
        h_scr[...] = jnp.zeros_like(h_scr)
        c_scr[...] = jnp.zeros_like(c_scr)

    t0 = t_blk * TB

    def step(i, carry):
        h, c = carry
        g = gx_ref[i].astype(jnp.float32) + jnp.dot(
            h.astype(whh_ref.dtype), whh_ref[...],
            preferred_element_type=jnp.float32)
        # PyTorch LSTM gate order: i, f, g, o  (lane-aligned Hp-wide slices).
        i_g = _sigmoid(g[:, 0 * Hp:1 * Hp])
        f_g = _sigmoid(g[:, 1 * Hp:2 * Hp])
        g_g = jnp.tanh(g[:, 2 * Hp:3 * Hp])
        o_g = _sigmoid(g[:, 3 * Hp:4 * Hp])
        c_new = f_g * c + i_g * g_g
        h_new = o_g * jnp.tanh(c_new)
        out_ref[i] = h_new.astype(out_ref.dtype)
        if mask_tail:
            valid = t0 + i < L
            h_new = jnp.where(valid, h_new, h)
            c_new = jnp.where(valid, c_new, c)
        return (h_new, c_new)

    h_fin, c_fin = lax.fori_loop(0, TB, step, (h_scr[...], c_scr[...]),
                                 unroll=unroll)
    h_scr[...] = h_fin
    c_scr[...] = c_fin

    @pl.when(t_blk == pl.num_programs(1) - 1)
    def _():
        hn_ref[0] = h_scr[...].astype(hn_ref.dtype)
        cn_ref[0] = c_scr[...].astype(cn_ref.dtype)


# ----------------------------------------------------------------------------
# Wrapper (Encoder.forward equivalent)
# ----------------------------------------------------------------------------

def encoder_forward(x, params, model_struct, non_linearity="tanh",
                    tb_cap=None):
    """Equivalent of Encoder.forward.

    Args:
      x: (N, L, H_in) float32, batch_first like PyTorch.
      params: dict with torch-layout weights:
        weight_ih (G*H, H_in), weight_hh (G*H, H), bias_ih (G*H,), bias_hh (G*H,)
      tb_cap: optional cap on the time-block size (testing knob).
    Returns:
      (output, hidden) with output (N, L, H_out) and
      hidden = h_n (1, N, H_out) for rnn/gru, (h_n, c_n) for lstm.
    """
    if model_struct not in ("rnn", "gru", "lstm"):
        raise ValueError('model_struct can be either "rnn", "lstm", or "gru".')

    N, L, Hin = x.shape
    Wih_p, Whh_p, b_fold, bhn, H, G, Hp = _pad_gate_params(params, model_struct)
    GHp = G * Hp
    lstm = model_struct == "lstm"

    # ---- batch blocking: keep >= 2 'parallel' blocks when possible (v7x) ----
    Np = _round_up(N, 8)
    if Np >= 32:
        NB = min(256, _round_up(_cdiv(Np, 2), 16))
        Np = _round_up(Np, NB)
    else:
        NB = Np

    # ---- generation-aware VMEM budget & time blocking ------------------------
    try:
        vmem_cap = int(getattr(pltpu.get_tpu_info(), "vmem_capacity_bytes",
                               64 << 20))
    except Exception:
        vmem_cap = 64 << 20
    block_budget = max(4 << 20, int(vmem_cap * 0.35))

    n_state = 2 if lstm else 1
    fixed_bytes = (2 * Hp * GHp * 2               # whh (bf16, double-buffered)
                   + n_state * 2 * NB * Hp * 4    # h_n / c_n output blocks
                   + n_state * NB * Hp * 4        # state scratch
                   + 2 * Hp * 4)                  # gru b_hn (negligible)
    per_tb_bytes = NB * (2 * GHp * 2 + 2 * Hp * 4)  # 2x gx (bf16) + 2x out (f32)
    tb_max = max(1, (block_budget - fixed_bytes) // per_tb_bytes)
    if tb_cap is not None:
        tb_max = min(tb_max, tb_cap)
    tb_max = max(1, min(int(tb_max), 1024, L))
    n_tblk = _cdiv(L, tb_max)
    TB = _cdiv(L, n_tblk)
    Lp = TB * n_tblk
    mask_tail = Lp != L
    unroll = int(min(TB, 8))          # fixed partial unroll (LLO visibility)
    grid = (Np // NB, n_tblk)

    # ---- hoisted input projection: one einsum over the whole sequence -------
    # bf16 operands / f32 accumulation (same precision as the recurrence); gx
    # is stored in bf16, halving its HBM traffic and VMEM block footprint.
    x_p = jnp.pad(x.astype(jnp.float32), ((0, Np - N), (0, 0), (0, 0)))
    gx = jnp.einsum("nli,gi->lng",
                    x_p.astype(jnp.bfloat16), Wih_p.astype(jnp.bfloat16),
                    preferred_element_type=jnp.float32)          # (L, Np, GHp)
    gx = gx + b_fold[None, None, :]
    gx = jnp.pad(gx, ((0, Lp - L), (0, 0), (0, 0))).astype(jnp.bfloat16)

    # bf16 MXU operand for the recurrent matmul (f32 accumulation in kernel).
    whh_t = Whh_p.T.astype(jnp.bfloat16)                         # (Hp, GHp)

    est_bytes = fixed_bytes + TB * per_tb_bytes
    vmem_limit = int(min(vmem_cap,
                         max(32 << 20, est_bytes + est_bytes // 2 + (4 << 20))))
    compiler_params = pltpu.CompilerParams(
        dimension_semantics=("parallel", "arbitrary"),
        vmem_limit_bytes=vmem_limit)

    cost = pl.CostEstimate(
        flops=int(2 * Lp * Np * Hp * GHp + 12 * Lp * Np * GHp),
        transcendentals=int(Lp * Np * GHp),
        bytes_accessed=int(2 * Lp * Np * GHp + 4 * Lp * Np * Hp + 2 * Hp * GHp),
    )

    gx_spec = pl.BlockSpec((TB, NB, GHp), lambda b, t: (t, b, 0))
    # TODO(synk): whh block is constant across the grid; pl.Buffered(1) would
    #             free one dead buffer (matters for large H on v7x's 64 MiB).
    whh_spec = pl.BlockSpec((Hp, GHp), lambda b, t: (0, 0))
    out_spec = pl.BlockSpec((TB, NB, Hp), lambda b, t: (t, b, 0))
    fin_spec = pl.BlockSpec((1, NB, Hp), lambda b, t: (0, b, 0))

    common = dict(TB=TB, L=L, mask_tail=mask_tail, unroll=unroll)
    if lstm:
        kernel = functools.partial(_lstm_kernel, Hp=Hp, **common)
        out_shape = (jax.ShapeDtypeStruct((Lp, Np, Hp), jnp.float32),
                     jax.ShapeDtypeStruct((1, Np, Hp), jnp.float32),
                     jax.ShapeDtypeStruct((1, Np, Hp), jnp.float32))
        out_specs = (out_spec, fin_spec, fin_spec)
        scratch = [pltpu.VMEM((NB, Hp), jnp.float32),
                   pltpu.VMEM((NB, Hp), jnp.float32)]
        in_specs = [gx_spec, whh_spec]
        operands = (gx, whh_t)
    elif model_struct == "gru":
        kernel = functools.partial(_gru_kernel, Hp=Hp, **common)
        out_shape = (jax.ShapeDtypeStruct((Lp, Np, Hp), jnp.float32),
                     jax.ShapeDtypeStruct((1, Np, Hp), jnp.float32))
        out_specs = (out_spec, fin_spec)
        scratch = [pltpu.VMEM((NB, Hp), jnp.float32)]
        in_specs = [gx_spec, whh_spec,
                    pl.BlockSpec((1, Hp), lambda b, t: (0, 0))]
        operands = (gx, whh_t, bhn)
    else:  # rnn
        kernel = functools.partial(_rnn_kernel, nonlin=non_linearity, **common)
        out_shape = (jax.ShapeDtypeStruct((Lp, Np, Hp), jnp.float32),
                     jax.ShapeDtypeStruct((1, Np, Hp), jnp.float32))
        out_specs = (out_spec, fin_spec)
        scratch = [pltpu.VMEM((NB, Hp), jnp.float32)]
        in_specs = [gx_spec, whh_spec]
        operands = (gx, whh_t)

    grid_spec = pltpu.PrefetchScalarGridSpec(
        num_scalar_prefetch=0,
        grid=grid,
        in_specs=in_specs,
        out_specs=out_specs,
        scratch_shapes=scratch,
    )

    results = pl.pallas_call(
        kernel,
        grid_spec=grid_spec,
        out_shape=out_shape,
        compiler_params=compiler_params,
        cost_estimate=cost,
    )(*operands)

    if lstm:
        out_p, hn_p, cn_p = results
        output = jnp.transpose(out_p[:L, :N, :H], (1, 0, 2))     # (N, L, H)
        return output, (hn_p[:, :N, :H], cn_p[:, :N, :H])
    out_p, hn_p = results
    output = jnp.transpose(out_p[:L, :N, :H], (1, 0, 2))
    return output, hn_p[:, :N, :H]


# ----------------------------------------------------------------------------
# Deterministic parameter init (PyTorch default: U(-1/sqrt(H), 1/sqrt(H)))
# ----------------------------------------------------------------------------

def init_params(key, model_struct, num_features, hidden_size):
    G = {"rnn": 1, "gru": 3, "lstm": 4}[model_struct]
    k = 1.0 / math.sqrt(hidden_size)
    ks = jax.random.split(key, 4)
    return {
        "weight_ih": jax.random.uniform(ks[0], (G * hidden_size, num_features),
                                        jnp.float32, -k, k),
        "weight_hh": jax.random.uniform(ks[1], (G * hidden_size, hidden_size),
                                        jnp.float32, -k, k),
        "bias_ih": jax.random.uniform(ks[2], (G * hidden_size,), jnp.float32, -k, k),
        "bias_hh": jax.random.uniform(ks[3], (G * hidden_size,), jnp.float32, -k, k),
    }


# ----------------------------------------------------------------------------
# Pure-JAX reference (lax.scan) using the same numerical recipe as the kernel
# (bf16 gate inputs, bf16 recurrent weights, f32 accumulation / gate math) so
# the comparison is tight.  Exact-f32 PyTorch parity would need an f32
# recurrence; drift vs torch is documented, not hidden.
# ----------------------------------------------------------------------------

def reference_forward(x, params, model_struct, non_linearity="tanh"):
    Wih_p, Whh_p, b_fold, bhn, H, G, Hp = _pad_gate_params(params, model_struct)
    N, L, Hin = x.shape
    gx = jnp.einsum("nli,gi->lng", x.astype(jnp.bfloat16),
                    Wih_p.astype(jnp.bfloat16),
                    preferred_element_type=jnp.float32)
    gx = (gx + b_fold[None, None, :]).astype(jnp.bfloat16)      # (L, N, G*Hp)
    whh_t = Whh_p.T.astype(jnp.bfloat16)

    def rec(h):
        return jnp.dot(h.astype(jnp.bfloat16), whh_t,
                       preferred_element_type=jnp.float32)

    h0 = jnp.zeros((N, Hp), jnp.float32)

    if model_struct == "rnn":
        def step(h, gx_t):
            pre = gx_t.astype(jnp.float32) + rec(h)
            h_new = jnp.tanh(pre) if non_linearity == "tanh" else jnp.maximum(pre, 0.0)
            return h_new, h_new
        h_last, outs = lax.scan(step, h0, gx)
        return jnp.transpose(outs[:, :, :H], (1, 0, 2)), h_last[None, :, :H]

    if model_struct == "gru":
        bhn_v = bhn[0]
        def step(h, gx_t):
            g = gx_t.astype(jnp.float32)
            gh = rec(h)
            r = _sigmoid(g[:, :Hp] + gh[:, :Hp])
            z = _sigmoid(g[:, Hp:2 * Hp] + gh[:, Hp:2 * Hp])
            n = jnp.tanh(g[:, 2 * Hp:] + r * (gh[:, 2 * Hp:] + bhn_v))
            h_new = (1.0 - z) * n + z * h
            return h_new, h_new
        h_last, outs = lax.scan(step, h0, gx)
        return jnp.transpose(outs[:, :, :H], (1, 0, 2)), h_last[None, :, :H]

    # lstm
    c0 = jnp.zeros((N, Hp), jnp.float32)
    def step(carry, gx_t):
        h, c = carry
        g = gx_t.astype(jnp.float32) + rec(h)
        i = _sigmoid(g[:, :Hp])
        f = _sigmoid(g[:, Hp:2 * Hp])
        gg = jnp.tanh(g[:, 2 * Hp:3 * Hp])
        o = _sigmoid(g[:, 3 * Hp:])
        c_new = f * c + i * gg
        h_new = o * jnp.tanh(c_new)
        return (h_new, c_new), h_new
    (h_last, c_last), outs = lax.scan(step, (h0, c0), gx)
    return (jnp.transpose(outs[:, :, :H], (1, 0, 2)),
            (h_last[None, :, :H], c_last[None, :, :H]))


# ----------------------------------------------------------------------------
# Main
# ----------------------------------------------------------------------------

if __name__ == "__main__":
    N, L, H_in, H_out = 2, 8, 4, 32
    key = jax.random.PRNGKey(0)
    kx, kp = jax.random.split(key)
    x = jax.random.normal(kx, (N, L, H_in), dtype=jnp.float32)

    def run_and_check(x_in, params, struct, tb_cap=None):
        out, hidden = encoder_forward(x_in, params, struct, "tanh",
                                      tb_cap=tb_cap)
        out = jax.block_until_ready(out)
        ref_out, ref_hidden = reference_forward(x_in, params, struct, "tanh")
        n_in = x_in.shape[0]
        assert out.shape == (n_in, x_in.shape[1], H_out)
        np.testing.assert_allclose(np.asarray(out), np.asarray(ref_out),
                                   rtol=2e-3, atol=2e-3)
        if struct == "lstm":
            h_n, c_n = hidden
            rh, rc = ref_hidden
            assert h_n.shape == (1, n_in, H_out) and c_n.shape == (1, n_in, H_out)
            np.testing.assert_allclose(np.asarray(h_n), np.asarray(rh),
                                       rtol=2e-3, atol=2e-3)
            np.testing.assert_allclose(np.asarray(c_n), np.asarray(rc),
                                       rtol=2e-3, atol=2e-3)
        else:
            assert hidden.shape == (1, n_in, H_out)
            np.testing.assert_allclose(np.asarray(hidden), np.asarray(ref_hidden),
                                       rtol=2e-3, atol=2e-3)

    for idx, struct in enumerate(("lstm", "gru", "rnn")):
        params = init_params(jax.random.fold_in(kp, idx), struct, H_in, H_out)
        run_and_check(x, params, struct)

    # Extra coverage: multi-time-block grid + tail masking (TB=3 -> Lp=9).
    params_lstm = init_params(jax.random.fold_in(kp, 0), "lstm", H_in, H_out)
    run_and_check(x, params_lstm, "lstm", tb_cap=3)

    # Extra coverage: batch split (2 'parallel' blocks) + batch padding.
    x_big = jax.random.normal(jax.random.fold_in(kx, 1), (40, L, H_in),
                              dtype=jnp.float32)
    run_and_check(x_big, params_lstm, "lstm")

    print("KERNEL_OK")
</pallas_src>

<mosaic_0001>
module attributes {stable_mosaic.version = 11 : i64} {
  func.func @_lstm_kernel(%arg0: i32, %arg1: i32, %arg2: memref<8x8x512xbf16, #tpu.memory_space<vmem>>, %arg3: memref<128x512xbf16, #tpu.memory_space<vmem>>, %arg4: memref<8x8x128xf32, #tpu.memory_space<vmem>>, %arg5: memref<1x8x128xf32, #tpu.memory_space<vmem>>, %arg6: memref<1x8x128xf32, #tpu.memory_space<vmem>>, %arg7: memref<8x128xf32, #tpu.memory_space<vmem>>, %arg8: memref<8x128xf32, #tpu.memory_space<vmem>>) attributes {dimension_semantics = [#tpu.dimension_semantics<parallel>, #tpu.dimension_semantics<arbitrary>], iteration_bounds = array<i64: 1, 1>, scalar_prefetch = 0 : i64, scratch_operands = 2 : i64, tpu.core_type = #tpu.core_type<tc>, window_params = [{transform_indices = @transform_0, window_bounds = array<i64: 8, 8, 512>}, {pipeline_mode = #tpu.pipeline_mode<synchronous>, transform_indices = @transform_1, window_bounds = array<i64: 128, 512>}, {transform_indices = @transform_2, window_bounds = array<i64: 8, 8, 128>}, {transform_indices = @transform_3, window_bounds = array<i64: 1, 8, 128>}, {transform_indices = @transform_4, window_bounds = array<i64: 1, 8, 128>}]} {
    %c0_i32 = arith.constant 0 : i32
    %0 = arith.cmpi eq, %arg1, %c0_i32 : i32
    %1 = arith.extui %0 : i1 to i32
    %c0_i32_0 = arith.constant 0 : i32
    %2 = arith.cmpi ne, %1, %c0_i32_0 : i32
    scf.if %2 {
      %cst_138 = arith.constant 0.000000e+00 : f32
      %354 = vector.broadcast %cst_138 : f32 to vector<8x128xf32>
      %c0_139 = arith.constant 0 : index
      %c0_140 = arith.constant 0 : index
      %355 = vector.load %arg7[%c0_139, %c0_140] : memref<8x128xf32, #tpu.memory_space<vmem>>, vector<8x128xf32>
      tpu.vector_store %arg7[%c0_139, %c0_140], %354 {strides = array<i32>} : memref<8x128xf32, #tpu.memory_space<vmem>>, vector<8x128xf32>,
      %cst_141 = arith.constant 0.000000e+00 : f32
      %356 = vector.broadcast %cst_141 : f32 to vector<8x128xf32>
      %c0_142 = arith.constant 0 : index
      %c0_143 = arith.constant 0 : index
      %357 = vector.load %arg8[%c0_142, %c0_143] : memref<8x128xf32, #tpu.memory_space<vmem>>, vector<8x128xf32>
      tpu.vector_store %arg8[%c0_142, %c0_143], %356 {strides = array<i32>} : memref<8x128xf32, #tpu.memory_space<vmem>>, vector<8x128xf32>,
    } else {
    }
    %c0 = arith.constant 0 : index
    %c0_1 = arith.constant 0 : index
    %3 = vector.load %arg7[%c0, %c0_1] : memref<8x128xf32, #tpu.memory_space<vmem>>, vector<8x128xf32>
    %c0_2 = arith.constant 0 : index
    %c0_3 = arith.constant 0 : index
    %4 = vector.load %arg8[%c0_2, %c0_3] : memref<8x128xf32, #tpu.memory_space<vmem>>, vector<8x128xf32>
    %c0_i32_4 = arith.constant 0 : i32
    %5 = arith.index_cast %c0_i32_4 : i32 to index
    %c0_5 = arith.constant 0 : index
    %c0_6 = arith.constant 0 : index
    %6 = vector.load %arg2[%5, %c0_5, %c0_6] : memref<8x8x512xbf16, #tpu.memory_space<vmem>>, vector<1x8x512xbf16>
    %7 = vector.shape_cast %6 : vector<1x8x512xbf16> to vector<8x512xbf16>
    %8 = arith.extf %7 : vector<8x512xbf16> to vector<8x512xf32>
    %9 = arith.truncf %3 : vector<8x128xf32> to vector<8x128xbf16>
    %c0_7 = arith.constant 0 : index
    %c0_8 = arith.constant 0 : index
    %10 = vector.load %arg3[%c0_7, %c0_8] : memref<128x512xbf16, #tpu.memory_space<vmem>>, vector<128x512xbf16>
    %cst = arith.constant dense<0.000000e+00> : vector<8x512xf32>
    %11 = tpu.matmul %9, %10, %cst {dimension_numbers = #tpu.dot_dimension_numbers<[1], [0], [0], [1], [0, 0, 1, 1], [], []>} : vector<8x128xbf16>, vector<128x512xbf16>, vector<8x512xf32> -> vector<8x512xf32>
    %12 = arith.addf %8, %11 : vector<8x512xf32>
    %13 = vector.extract_strided_slice %12 {offsets = [0, 0], sizes = [8, 128], strides = [1, 1]} : vector<8x512xf32> to vector<8x128xf32>
    %cst_9 = arith.constant 5.000000e-01 : f32
    %14 = vector.broadcast %cst_9 : f32 to vector<8x128xf32>
    %15 = arith.mulf %14, %13 : vector<8x128xf32>
    %16 = math.tanh %15 : vector<8x128xf32>
    %cst_10 = arith.constant 1.000000e+00 : f32
    %17 = vector.broadcast %cst_10 : f32 to vector<8x128xf32>
    %18 = arith.addf %16, %17 : vector<8x128xf32>
    %cst_11 = arith.constant 5.000000e-01 : f32
    %19 = vector.broadcast %cst_11 : f32 to vector<8x128xf32>
    %20 = arith.mulf %19, %18 : vector<8x128xf32>
    %21 = vector.extract_strided_slice %12 {offsets = [0, 128], sizes = [8, 128], strides = [1, 1]} : vector<8x512xf32> to vector<8x128xf32>
    %cst_12 = arith.constant 5.000000e-01 : f32
    %22 = vector.broadcast %cst_12 : f32 to vector<8x128xf32>
    %23 = arith.mulf %22, %21 : vector<8x128xf32>
    %24 = math.tanh %23 : vector<8x128xf32>
    %cst_13 = arith.constant 1.000000e+00 : f32
    %25 = vector.broadcast %cst_13 : f32 to vector<8x128xf32>
    %26 = arith.addf %24, %25 : vector<8x128xf32>
    %cst_14 = arith.constant 5.000000e-01 : f32
    %27 = vector.broadcast %cst_14 : f32 to vector<8x128xf32>
    %28 = arith.mulf %27, %26 : vector<8x128xf32>
    %29 = vector.extract_strided_slice %12 {offsets = [0, 256], sizes = [8, 128], strides = [1, 1]} : vector<8x512xf32> to vector<8x128xf32>
    %30 = math.tanh %29 : vector<8x128xf32>
    %31 = vector.extract_strided_slice %12 {offsets = [0, 384], sizes = [8, 128], strides = [1, 1]} : vector<8x512xf32> to vector<8x128xf32>
    %cst_15 = arith.constant 5.000000e-01 : f32
    %32 = vector.broadcast %cst_15 : f32 to vector<8x128xf32>
    %33 = arith.mulf %32, %31 : vector<8x128xf32>
    %34 = math.tanh %33 : vector<8x128xf32>
    %cst_16 = arith.constant 1.000000e+00 : f32
    %35 = vector.broadcast %cst_16 : f32 to vector<8x128xf32>
    %36 = arith.addf %34, %35 : vector<8x128xf32>
    %cst_17 = arith.constant 5.000000e-01 : f32
    %37 = vector.broadcast %cst_17 : f32 to vector<8x128xf32>
    %38 = arith.mulf %37, %36 : vector<8x128xf32>
    %39 = arith.mulf %28, %4 : vector<8x128xf32>
    %40 = arith.mulf %20, %30 : vector<8x128xf32>
    %41 = arith.addf %39, %40 : vector<8x128xf32>
    %42 = math.tanh %41 : vector<8x128xf32>
    %43 = arith.mulf %38, %42 : vector<8x128xf32>
    %44 = arith.index_cast %c0_i32_4 : i32 to index
    %c0_18 = arith.constant 0 : index
    %c0_19 = arith.constant 0 : index
    %45 = vector.load %arg4[%44, %c0_18, %c0_19] : memref<8x8x128xf32, #tpu.memory_space<vmem>>, vector<1x8x128xf32>
    %46 = vector.shape_cast %45 : vector<1x8x128xf32> to vector<8x128xf32>
    %47 = vector.shape_cast %43 : vector<8x128xf32> to vector<1x8x128xf32>
    tpu.vector_store %arg4[%44, %c0_18, %c0_19], %47 {strides = array<i32>} : memref<8x8x128xf32, #tpu.memory_space<vmem>>, vector<1x8x128xf32>,
    %c1_i32 = arith.constant 1 : i32
    %48 = arith.index_cast %c1_i32 : i32 to index
    %c0_20 = arith.constant 0 : index
    %c0_21 = arith.constant 0 : index
    %49 = vector.load %arg2[%48, %c0_20, %c0_21] : memref<8x8x512xbf16, #tpu.memory_space<vmem>>, vector<1x8x512xbf16>
    %50 = vector.shape_cast %49 : vector<1x8x512xbf16> to vector<8x512xbf16>
    %51 = arith.extf %50 : vector<8x512xbf16> to vector<8x512xf32>
    %52 = arith.truncf %43 : vector<8x128xf32> to vector<8x128xbf16>
    %c0_22 = arith.constant 0 : index
    %c0_23 = arith.constant 0 : index
    %53 = vector.load %arg3[%c0_22, %c0_23] : memref<128x512xbf16, #tpu.memory_space<vmem>>, vector<128x512xbf16>
    %cst_24 = arith.constant dense<0.000000e+00> : vector<8x512xf32>
    %54 = tpu.matmul %52, %53, %cst_24 {dimension_numbers = #tpu.dot_dimension_numbers<[1], [0], [0], [1], [0, 0, 1, 1], [], []>} : vector<8x128xbf16>, vector<128x512xbf16>, vector<8x512xf32> -> vector<8x512xf32>
    %55 = arith.addf %51, %54 : vector<8x512xf32>
    %56 = vector.extract_strided_slice %55 {offsets = [0, 0], sizes = [8, 128], strides = [1, 1]} : vector<8x512xf32> to vector<8x128xf32>
    %cst_25 = arith.constant 5.000000e-01 : f32
    %57 = vector.broadcast %cst_25 : f32 to vector<8x128xf32>
    %58 = arith.mulf %57, %56 : vector<8x128xf32>
    %59 = math.tanh %58 : vector<8x128xf32>
    %cst_26 = arith.constant 1.000000e+00 : f32
    %60 = vector.broadcast %cst_26 : f32 to vector<8x128xf32>
    %61 = arith.addf %59, %60 : vector<8x128xf32>
    %cst_27 = arith.constant 5.000000e-01 : f32
    %62 = vector.broadcast %cst_27 : f32 to vector<8x128xf32>
    %63 = arith.mulf %62, %61 : vector<8x128xf32>
    %64 = vector.extract_strided_slice %55 {offsets = [0, 128], sizes = [8, 128], strides = [1, 1]} : vector<8x512xf32> to vector<8x128xf32>
    %cst_28 = arith.constant 5.000000e-01 : f32
    %65 = vector.broadcast %cst_28 : f32 to vector<8x128xf32>
    %66 = arith.mulf %65, %64 : vector<8x128xf32>
    %67 = math.tanh %66 : vector<8x128xf32>
    %cst_29 = arith.constant 1.000000e+00 : f32
    %68 = vector.broadcast %cst_29 : f32 to vector<8x128xf32>
    %69 = arith.addf %67, %68 : vector<8x128xf32>
    %cst_30 = arith.constant 5.000000e-01 : f32
    %70 = vector.broadcast %cst_30 : f32 to vector<8x128xf32>
    %71 = arith.mulf %70, %69 : vector<8x128xf32>
    %72 = vector.extract_strided_slice %55 {offsets = [0, 256], sizes = [8, 128], strides = [1, 1]} : vector<8x512xf32> to vector<8x128xf32>
    %73 = math.tanh %72 : vector<8x128xf32>
    %74 = vector.extract_strided_slice %55 {offsets = [0, 384], sizes = [8, 128], strides = [1, 1]} : vector<8x512xf32> to vector<8x128xf32>
    %cst_31 = arith.constant 5.000000e-01 : f32
    %75 = vector.broadcast %cst_31 : f32 to vector<8x128xf32>
    %76 = arith.mulf %75, %74 : vector<8x128xf32>
    %77 = math.tanh %76 : vector<8x128xf32>
    %cst_32 = arith.constant 1.000000e+00 : f32
    %78 = vector.broadcast %cst_32 : f32 to vector<8x128xf32>
    %79 = arith.addf %77, %78 : vector<8x128xf32>
    %cst_33 = arith.constant 5.000000e-01 : f32
    %80 = vector.broadcast %cst_33 : f32 to vector<8x128xf32>
    %81 = arith.mulf %80, %79 : vector<8x128xf32>
    %82 = arith.mulf %71, %41 : vector<8x128xf32>
    %83 = arith.mulf %63, %73 : vector<8x128xf32>
    %84 = arith.addf %82, %83 : vector<8x128xf32>
    %85 = math.tanh %84 : vector<8x128xf32>
    %86 = arith.mulf %81, %85 : vector<8x128xf32>
    %87 = arith.index_cast %c1_i32 : i32 to index
    %c0_34 = arith.constant 0 : index
    %c0_35 = arith.constant 0 : index
    %88 = vector.load %arg4[%87, %c0_34, %c0_35] : memref<8x8x128xf32, #tpu.memory_space<vmem>>, vector<1x8x128xf32>
    %89 = vector.shape_cast %88 : vector<1x8x128xf32> to vector<8x128xf32>
    %90 = vector.shape_cast %86 : vector<8x128xf32> to vector<1x8x128xf32>
    tpu.vector_store %arg4[%87, %c0_34, %c0_35], %90 {strides = array<i32>} : memref<8x8x128xf32, #tpu.memory_space<vmem>>, vector<1x8x128xf32>,
    %c2_i32 = arith.constant 2 : i32
    %91 = arith.index_cast %c2_i32 : i32 to index
    %c0_36 = arith.constant 0 : index
    %c0_37 = arith.constant 0 : index
    %92 = vector.load %arg2[%91, %c0_36, %c0_37] : memref<8x8x512xbf16, #tpu.memory_space<vmem>>, vector<1x8x512xbf16>
    %93 = vector.shape_cast %92 : vector<1x8x512xbf16> to vector<8x512xbf16>
    %94 = arith.extf %93 : vector<8x512xbf16> to vector<8x512xf32>
    %95 = arith.truncf %86 : vector<8x128xf32> to vector<8x128xbf16>
    %c0_38 = arith.constant 0 : index
    %c0_39 = arith.constant 0 : index
    %96 = vector.load %arg3[%c0_38, %c0_39] : memref<128x512xbf16, #tpu.memory_space<vmem>>, vector<128x512xbf16>
    %cst_40 = arith.constant dense<0.000000e+00> : vector<8x512xf32>
    %97 = tpu.matmul %95, %96, %cst_40 {dimension_numbers = #tpu.dot_dimension_numbers<[1], [0], [0], [1], [0, 0, 1, 1], [], []>} : vector<8x128xbf16>, vector<128x512xbf16>, vector<8x512xf32> -> vector<8x512xf32>
    %98 = arith.addf %94, %97 : vector<8x512xf32>
    %99 = vector.extract_strided_slice %98 {offsets = [0, 0], sizes = [8, 128], strides = [1, 1]} : vector<8x512xf32> to vector<8x128xf32>
    %cst_41 = arith.constant 5.000000e-01 : f32
    %100 = vector.broadcast %cst_41 : f32 to vector<8x128xf32>
    %101 = arith.mulf %100, %99 : vector<8x128xf32>
    %102 = math.tanh %101 : vector<8x128xf32>
    %cst_42 = arith.constant 1.000000e+00 : f32
    %103 = vector.broadcast %cst_42 : f32 to vector<8x128xf32>
    %104 = arith.addf %102, %103 : vector<8x128xf32>
    %cst_43 = arith.constant 5.000000e-01 : f32
    %105 = vector.broadcast %cst_43 : f32 to vector<8x128xf32>
    %106 = arith.mulf %105, %104 : vector<8x128xf32>
    %107 = vector.extract_strided_slice %98 {offsets = [0, 128], sizes = [8, 128], strides = [1, 1]} : vector<8x512xf32> to vector<8x128xf32>
    %cst_44 = arith.constant 5.000000e-01 : f32
    %108 = vector.broadcast %cst_44 : f32 to vector<8x128xf32>
    %109 = arith.mulf %108, %107 : vector<8x128xf32>
    %110 = math.tanh %109 : vector<8x128xf32>
    %cst_45 = arith.constant 1.000000e+00 : f32
    %111 = vector.broadcast %cst_45 : f32 to vector<8x128xf32>
    %112 = arith.addf %110, %111 : vector<8x128xf32>
    %cst_46 = arith.constant 5.000000e-01 : f32
    %113 = vector.broadcast %cst_46 : f32 to vector<8x128xf32>
    %114 = arith.mulf %113, %112 : vector<8x128xf32>
    %115 = vector.extract_strided_slice %98 {offsets = [0, 256], sizes = [8, 128], strides = [1, 1]} : vector<8x512xf32> to vector<8x128xf32>
    %116 = math.tanh %115 : vector<8x128xf32>
    %117 = vector.extract_strided_slice %98 {offsets = [0, 384], sizes = [8, 128], strides = [1, 1]} : vector<8x512xf32> to vector<8x128xf32>
    %cst_47 = arith.constant 5.000000e-01 : f32
    %118 = vector.broadcast %cst_47 : f32 to vector<8x128xf32>
    %119 = arith.mulf %118, %117 : vector<8x128xf32>
    %120 = math.tanh %119 : vector<8x128xf32>
    %cst_48 = arith.constant 1.000000e+00 : f32
    %121 = vector.broadcast %cst_48 : f32 to vector<8x128xf32>
    %122 = arith.addf %120, %121 : vector<8x128xf32>
    %cst_49 = arith.constant 5.000000e-01 : f32
    %123 = vector.broadcast %cst_49 : f32 to vector<8x128xf32>
    %124 = arith.mulf %123, %122 : vector<8x128xf32>
    %125 = arith.mulf %114, %84 : vector<8x128xf32>
    %126 = arith.mulf %106, %116 : vector<8x128xf32>
    %127 = arith.addf %125, %126 : vector<8x128xf32>
    %128 = math.tanh %127 : vector<8x128xf32>
    %129 = arith.mulf %124, %128 : vector<8x128xf32>
    %130 = arith.index_cast %c2_i32 : i32 to index
    %c0_50 = arith.constant 0 : index
    %c0_51 = arith.constant 0 : index
    %131 = vector.load %arg4[%130, %c0_50, %c0_51] : memref<8x8x128xf32, #tpu.memory_space<vmem>>, vector<1x8x128xf32>
    %132 = vector.shape_cast %131 : vector<1x8x128xf32> to vector<8x128xf32>
    %133 = vector.shape_cast %129 : vector<8x128xf32> to vector<1x8x128xf32>
    tpu.vector_store %arg4[%130, %c0_50, %c0_51], %133 {strides = array<i32>} : memref<8x8x128xf32, #tpu.memory_space<vmem>>, vector<1x8x128xf32>,
    %c3_i32 = arith.constant 3 : i32
    %134 = arith.index_cast %c3_i32 : i32 to index
    %c0_52 = arith.constant 0 : index
    %c0_53 = arith.constant 0 : index
    %135 = vector.load %arg2[%134, %c0_52, %c0_53] : memref<8x8x512xbf16, #tpu.memory_space<vmem>>, vector<1x8x512xbf16>
    %136 = vector.shape_cast %135 : vector<1x8x512xbf16> to vector<8x512xbf16>
    %137 = arith.extf %136 : vector<8x512xbf16> to vector<8x512xf32>
    %138 = arith.truncf %129 : vector<8x128xf32> to vector<8x128xbf16>
    %c0_54 = arith.constant 0 : index
    %c0_55 = arith.constant 0 : index
    %139 = vector.load %arg3[%c0_54, %c0_55] : memref<128x512xbf16, #tpu.memory_space<vmem>>, vector<128x512xbf16>
    %cst_56 = arith.constant dense<0.000000e+00> : vector<8x512xf32>
    %140 = tpu.matmul %138, %139, %cst_56 {dimension_numbers = #tpu.dot_dimension_numbers<[1], [0], [0], [1], [0, 0, 1, 1], [], []>} : vector<8x128xbf16>, vector<128x512xbf16>, vector<8x512xf32> -> vector<8x512xf32>
    %141 = arith.addf %137, %140 : vector<8x512xf32>
    %142 = vector.extract_strided_slice %141 {offsets = [0, 0], sizes = [8, 128], strides = [1, 1]} : vector<8x512xf32> to vector<8x128xf32>
    %cst_57 = arith.constant 5.000000e-01 : f32
    %143 = vector.broadcast %cst_57 : f32 to vector<8x128xf32>
    %144 = arith.mulf %143, %142 : vector<8x128xf32>
    %145 = math.tanh %144 : vector<8x128xf32>
    %cst_58 = arith.constant 1.000000e+00 : f32
    %146 = vector.broadcast %cst_58 : f32 to vector<8x128xf32>
    %147 = arith.addf %145, %146 : vector<8x128xf32>
    %cst_59 = arith.constant 5.000000e-01 : f32
    %148 = vector.broadcast %cst_59 : f32 to vector<8x128xf32>
    %149 = arith.mulf %148, %147 : vector<8x128xf32>
    %150 = vector.extract_strided_slice %141 {offsets = [0, 128], sizes = [8, 128], strides = [1, 1]} : vector<8x512xf32> to vector<8x128xf32>
    %cst_60 = arith.constant 5.000000e-01 : f32
    %151 = vector.broadcast %cst_60 : f32 to vector<8x128xf32>
    %152 = arith.mulf %151, %150 : vector<8x128xf32>
    %153 = math.tanh %152 : vector<8x128xf32>
    %cst_61 = arith.constant 1.000000e+00 : f32
    %154 = vector.broadcast %cst_61 : f32 to vector<8x128xf32>
    %155 = arith.addf %153, %154 : vector<8x128xf32>
    %cst_62 = arith.constant 5.000000e-01 : f32
    %156 = vector.broadcast %cst_62 : f32 to vector<8x128xf32>
    %157 = arith.mulf %156, %155 : vector<8x128xf32>
    %158 = vector.extract_strided_slice %141 {offsets = [0, 256], sizes = [8, 128], strides = [1, 1]} : vector<8x512xf32> to vector<8x128xf32>
    %159 = math.tanh %158 : vector<8x128xf32>
    %160 = vector.extract_strided_slice %141 {offsets = [0, 384], sizes = [8, 128], strides = [1, 1]} : vector<8x512xf32> to vector<8x128xf32>
    %cst_63 = arith.constant 5.000000e-01 : f32
    %161 = vector.broadcast %cst_63 : f32 to vector<8x128xf32>
    %162 = arith.mulf %161, %160 : vector<8x128xf32>
    %163 = math.tanh %162 : vector<8x128xf32>
    %cst_64 = arith.constant 1.000000e+00 : f32
    %164 = vector.broadcast %cst_64 : f32 to vector<8x128xf32>
    %165 = arith.addf %163, %164 : vector<8x128xf32>
    %cst_65 = arith.constant 5.000000e-01 : f32
    %166 = vector.broadcast %cst_65 : f32 to vector<8x128xf32>
    %167 = arith.mulf %166, %165 : vector<8x128xf32>
    %168 = arith.mulf %157, %127 : vector<8x128xf32>
    %169 = arith.mulf %149, %159 : vector<8x128xf32>
    %170 = arith.addf %168, %169 : vector<8x128xf32>
    %171 = math.tanh %170 : vector<8x128xf32>
    %172 = arith.mulf %167, %171 : vector<8x128xf32>
    %173 = arith.index_cast %c3_i32 : i32 to index
    %c0_66 = arith.constant 0 : index
    %c0_67 = arith.constant 0 : index
    %174 = vector.load %arg4[%173, %c0_66, %c0_67] : memref<8x8x128xf32, #tpu.memory_space<vmem>>, vector<1x8x128xf32>
    %175 = vector.shape_cast %174 : vector<1x8x128xf32> to vector<8x128xf32>
    %176 = vector.shape_cast %172 : vector<8x128xf32> to vector<1x8x128xf32>
    tpu.vector_store %arg4[%173, %c0_66, %c0_67], %176 {strides = array<i32>} : memref<8x8x128xf32, #tpu.memory_space<vmem>>, vector<1x8x128xf32>,
    %c4_i32 = arith.constant 4 : i32
    %177 = arith.index_cast %c4_i32 : i32 to index
    %c0_68 = arith.constant 0 : index
    %c0_69 = arith.constant 0 : index
    %178 = vector.load %arg2[%177, %c0_68, %c0_69] : memref<8x8x512xbf16, #tpu.memory_space<vmem>>, vector<1x8x512xbf16>
    %179 = vector.shape_cast %178 : vector<1x8x512xbf16> to vector<8x512xbf16>
    %180 = arith.extf %179 : vector<8x512xbf16> to vector<8x512xf32>
    %181 = arith.truncf %172 : vector<8x128xf32> to vector<8x128xbf16>
    %c0_70 = arith.constant 0 : index
    %c0_71 = arith.constant 0 : index
    %182 = vector.load %arg3[%c0_70, %c0_71] : memref<128x512xbf16, #tpu.memory_space<vmem>>, vector<128x512xbf16>
    %cst_72 = arith.constant dense<0.000000e+00> : vector<8x512xf32>
    %183 = tpu.matmul %181, %182, %cst_72 {dimension_numbers = #tpu.dot_dimension_numbers<[1], [0], [0], [1], [0, 0, 1, 1], [], []>} : vector<8x128xbf16>, vector<128x512xbf16>, vector<8x512xf32> -> vector<8x512xf32>
    %184 = arith.addf %180, %183 : vector<8x512xf32>
    %185 = vector.extract_strided_slice %184 {offsets = [0, 0], sizes = [8, 128], strides = [1, 1]} : vector<8x512xf32> to vector<8x128xf32>
    %cst_73 = arith.constant 5.000000e-01 : f32
    %186 = vector.broadcast %cst_73 : f32 to vector<8x128xf32>
    %187 = arith.mulf %186, %185 : vector<8x128xf32>
    %188 = math.tanh %187 : vector<8x128xf32>
    %cst_74 = arith.constant 1.000000e+00 : f32
    %189 = vector.broadcast %cst_74 : f32 to vector<8x128xf32>
    %190 = arith.addf %188, %189 : vector<8x128xf32>
    %cst_75 = arith.constant 5.000000e-01 : f32
    %191 = vector.broadcast %cst_75 : f32 to vector<8x128xf32>
    %192 = arith.mulf %191, %190 : vector<8x128xf32>
    %193 = vector.extract_strided_slice %184 {offsets = [0, 128], sizes = [8, 128], strides = [1, 1]} : vector<8x512xf32> to vector<8x128xf32>
    %cst_76 = arith.constant 5.000000e-01 : f32
    %194 = vector.broadcast %cst_76 : f32 to vector<8x128xf32>
    %195 = arith.mulf %194, %193 : vector<8x128xf32>
    %196 = math.tanh %195 : vector<8x128xf32>
    %cst_77 = arith.constant 1.000000e+00 : f32
    %197 = vector.broadcast %cst_77 : f32 to vector<8x128xf32>
    %198 = arith.addf %196, %197 : vector<8x128xf32>
    %cst_78 = arith.constant 5.000000e-01 : f32
    %199 = vector.broadcast %cst_78 : f32 to vector<8x128xf32>
    %200 = arith.mulf %199, %198 : vector<8x128xf32>
    %201 = vector.extract_strided_slice %184 {offsets = [0, 256], sizes = [8, 128], strides = [1, 1]} : vector<8x512xf32> to vector<8x128xf32>
    %202 = math.tanh %201 : vector<8x128xf32>
    %203 = vector.extract_strided_slice %184 {offsets = [0, 384], sizes = [8, 128], strides = [1, 1]} : vector<8x512xf32> to vector<8x128xf32>
    %cst_79 = arith.constant 5.000000e-01 : f32
    %204 = vector.broadcast %cst_79 : f32 to vector<8x128xf32>
    %205 = arith.mulf %204, %203 : vector<8x128xf32>
    %206 = math.tanh %205 : vector<8x128xf32>
    %cst_80 = arith.constant 1.000000e+00 : f32
    %207 = vector.broadcast %cst_80 : f32 to vector<8x128xf32>
    %208 = arith.addf %206, %207 : vector<8x128xf32>
    %cst_81 = arith.constant 5.000000e-01 : f32
    %209 = vector.broadcast %cst_81 : f32 to vector<8x128xf32>
    %210 = arith.mulf %209, %208 : vector<8x128xf32>
    %211 = arith.mulf %200, %170 : vector<8x128xf32>
    %212 = arith.mulf %192, %202 : vector<8x128xf32>
    %213 = arith.addf %211, %212 : vector<8x128xf32>
    %214 = math.tanh %213 : vector<8x128xf32>
    %215 = arith.mulf %210, %214 : vector<8x128xf32>
    %216 = arith.index_cast %c4_i32 : i32 to index
    %c0_82 = arith.constant 0 : index
    %c0_83 = arith.constant 0 : index
    %217 = vector.load %arg4[%216, %c0_82, %c0_83] : memref<8x8x128xf32, #tpu.memory_space<vmem>>, vector<1x8x128xf32>
    %218 = vector.shape_cast %217 : vector<1x8x128xf32> to vector<8x128xf32>
    %219 = vector.shape_cast %215 : vector<8x128xf32> to vector<1x8x128xf32>
    tpu.vector_store %arg4[%216, %c0_82, %c0_83], %219 {strides = array<i32>} : memref<8x8x128xf32, #tpu.memory_space<vmem>>, vector<1x8x128xf32>,
    %c5_i32 = arith.constant 5 : i32
    %220 = arith.index_cast %c5_i32 : i32 to index
    %c0_84 = arith.constant 0 : index
    %c0_85 = arith.constant 0 : index
    %221 = vector.load %arg2[%220, %c0_84, %c0_85] : memref<8x8x512xbf16, #tpu.memory_space<vmem>>, vector<1x8x512xbf16>
    %222 = vector.shape_cast %221 : vector<1x8x512xbf16> to vector<8x512xbf16>
    %223 = arith.extf %222 : vector<8x512xbf16> to vector<8x512xf32>
    %224 = arith.truncf %215 : vector<8x128xf32> to vector<8x128xbf16>
    %c0_86 = arith.constant 0 : index
    %c0_87 = arith.constant 0 : index
    %225 = vector.load %arg3[%c0_86, %c0_87] : memref<128x512xbf16, #tpu.memory_space<vmem>>, vector<128x512xbf16>
    %cst_88 = arith.constant dense<0.000000e+00> : vector<8x512xf32>
    %226 = tpu.matmul %224, %225, %cst_88 {dimension_numbers = #tpu.dot_dimension_numbers<[1], [0], [0], [1], [0, 0, 1, 1], [], []>} : vector<8x128xbf16>, vector<128x512xbf16>, vector<8x512xf32> -> vector<8x512xf32>
    %227 = arith.addf %223, %226 : vector<8x512xf32>
    %228 = vector.extract_strided_slice %227 {offsets = [0, 0], sizes = [8, 128], strides = [1, 1]} : vector<8x512xf32> to vector<8x128xf32>
    %cst_89 = arith.constant 5.000000e-01 : f32
    %229 = vector.broadcast %cst_89 : f32 to vector<8x128xf32>
    %230 = arith.mulf %229, %228 : vector<8x128xf32>
    %231 = math.tanh %230 : vector<8x128xf32>
    %cst_90 = arith.constant 1.000000e+00 : f32
    %232 = vector.broadcast %cst_90 : f32 to vector<8x128xf32>
    %233 = arith.addf %231, %232 : vector<8x128xf32>
    %cst_91 = arith.constant 5.000000e-01 : f32
    %234 = vector.broadcast %cst_91 : f32 to vector<8x128xf32>
    %235 = arith.mulf %234, %233 : vector<8x128xf32>
    %236 = vector.extract_strided_slice %227 {offsets = [0, 128], sizes = [8, 128], strides = [1, 1]} : vector<8x512xf32> to vector<8x128xf32>
    %cst_92 = arith.constant 5.000000e-01 : f32
    %237 = vector.broadcast %cst_92 : f32 to vector<8x128xf32>
    %238 = arith.mulf %237, %236 : vector<8x128xf32>
    %239 = math.tanh %238 : vector<8x128xf32>
    %cst_93 = arith.constant 1.000000e+00 : f32
    %240 = vector.broadcast %cst_93 : f32 to vector<8x128xf32>
    %241 = arith.addf %239, %240 : vector<8x128xf32>
    %cst_94 = arith.constant 5.000000e-01 : f32
    %242 = vector.broadcast %cst_94 : f32 to vector<8x128xf32>
    %243 = arith.mulf %242, %241 : vector<8x128xf32>
    %244 = vector.extract_strided_slice %227 {offsets = [0, 256], sizes = [8, 128], strides = [1, 1]} : vector<8x512xf32> to vector<8x128xf32>
    %245 = math.tanh %244 : vector<8x128xf32>
    %246 = vector.extract_strided_slice %227 {offsets = [0, 384], sizes = [8, 128], strides = [1, 1]} : vector<8x512xf32> to vector<8x128xf32>
    %cst_95 = arith.constant 5.000000e-01 : f32
    %247 = vector.broadcast %cst_95 : f32 to vector<8x128xf32>
    %248 = arith.mulf %247, %246 : vector<8x128xf32>
    %249 = math.tanh %248 : vector<8x128xf32>
    %cst_96 = arith.constant 1.000000e+00 : f32
    %250 = vector.broadcast %cst_96 : f32 to vector<8x128xf32>
    %251 = arith.addf %249, %250 : vector<8x128xf32>
    %cst_97 = arith.constant 5.000000e-01 : f32
    %252 = vector.broadcast %cst_97 : f32 to vector<8x128xf32>
    %253 = arith.mulf %252, %251 : vector<8x128xf32>
    %254 = arith.mulf %243, %213 : vector<8x128xf32>
    %255 = arith.mulf %235, %245 : vector<8x128xf32>
    %256 = arith.addf %254, %255 : vector<8x128xf32>
    %257 = math.tanh %256 : vector<8x128xf32>
    %258 = arith.mulf %253, %257 : vector<8x128xf32>
    %259 = arith.index_cast %c5_i32 : i32 to index
    %c0_98 = arith.constant 0 : index
    %c0_99 = arith.constant 0 : index
    %260 = vector.load %arg4[%259, %c0_98, %c0_99] : memref<8x8x128xf32, #tpu.memory_space<vmem>>, vector<1x8x128xf32>
    %261 = vector.shape_cast %260 : vector<1x8x128xf32> to vector<8x128xf32>
    %262 = vector.shape_cast %258 : vector<8x128xf32> to vector<1x8x128xf32>
    tpu.vector_store %arg4[%259, %c0_98, %c0_99], %262 {strides = array<i32>} : memref<8x8x128xf32, #tpu.memory_space<vmem>>, vector<1x8x128xf32>,
    %c6_i32 = arith.constant 6 : i32
    %263 = arith.index_cast %c6_i32 : i32 to index
    %c0_100 = arith.constant 0 : index
    %c0_101 = arith.constant 0 : index
    %264 = vector.load %arg2[%263, %c0_100, %c0_101] : memref<8x8x512xbf16, #tpu.memory_space<vmem>>, vector<1x8x512xbf16>
    %265 = vector.shape_cast %264 : vector<1x8x512xbf16> to vector<8x512xbf16>
    %266 = arith.extf %265 : vector<8x512xbf16> to vector<8x512xf32>
    %267 = arith.truncf %258 : vector<8x128xf32> to vector<8x128xbf16>
    %c0_102 = arith.constant 0 : index
    %c0_103 = arith.constant 0 : index
    %268 = vector.load %arg3[%c0_102, %c0_103] : memref<128x512xbf16, #tpu.memory_space<vmem>>, vector<128x512xbf16>
    %cst_104 = arith.constant dense<0.000000e+00> : vector<8x512xf32>
    %269 = tpu.matmul %267, %268, %cst_104 {dimension_numbers = #tpu.dot_dimension_numbers<[1], [0], [0], [1], [0, 0, 1, 1], [], []>} : vector<8x128xbf16>, vector<128x512xbf16>, vector<8x512xf32> -> vector<8x512xf32>
    %270 = arith.addf %266, %269 : vector<8x512xf32>
    %271 = vector.extract_strided_slice %270 {offsets = [0, 0], sizes = [8, 128], strides = [1, 1]} : vector<8x512xf32> to vector<8x128xf32>
    %cst_105 = arith.constant 5.000000e-01 : f32
    %272 = vector.broadcast %cst_105 : f32 to vector<8x128xf32>
    %273 = arith.mulf %272, %271 : vector<8x128xf32>
    %274 = math.tanh %273 : vector<8x128xf32>
    %cst_106 = arith.constant 1.000000e+00 : f32
    %275 = vector.broadcast %cst_106 : f32 to vector<8x128xf32>
    %276 = arith.addf %274, %275 : vector<8x128xf32>
    %cst_107 = arith.constant 5.000000e-01 : f32
    %277 = vector.broadcast %cst_107 : f32 to vector<8x128xf32>
    %278 = arith.mulf %277, %276 : vector<8x128xf32>
    %279 = vector.extract_strided_slice %270 {offsets = [0, 128], sizes = [8, 128], strides = [1, 1]} : vector<8x512xf32> to vector<8x128xf32>
    %cst_108 = arith.constant 5.000000e-01 : f32
    %280 = vector.broadcast %cst_108 : f32 to vector<8x128xf32>
    %281 = arith.mulf %280, %279 : vector<8x128xf32>
    %282 = math.tanh %281 : vector<8x128xf32>
    %cst_109 = arith.constant 1.000000e+00 : f32
    %283 = vector.broadcast %cst_109 : f32 to vector<8x128xf32>
    %284 = arith.addf %282, %283 : vector<8x128xf32>
    %cst_110 = arith.constant 5.000000e-01 : f32
    %285 = vector.broadcast %cst_110 : f32 to vector<8x128xf32>
    %286 = arith.mulf %285, %284 : vector<8x128xf32>
    %287 = vector.extract_strided_slice %270 {offsets = [0, 256], sizes = [8, 128], strides = [1, 1]} : vector<8x512xf32> to vector<8x128xf32>
    %288 = math.tanh %287 : vector<8x128xf32>
    %289 = vector.extract_strided_slice %270 {offsets = [0, 384], sizes = [8, 128], strides = [1, 1]} : vector<8x512xf32> to vector<8x128xf32>
    %cst_111 = arith.constant 5.000000e-01 : f32
    %290 = vector.broadcast %cst_111 : f32 to vector<8x128xf32>
    %291 = arith.mulf %290, %289 : vector<8x128xf32>
    %292 = math.tanh %291 : vector<8x128xf32>
    %cst_112 = arith.constant 1.000000e+00 : f32
    %293 = vector.broadcast %cst_112 : f32 to vector<8x128xf32>
    %294 = arith.addf %292, %293 : vector<8x128xf32>
    %cst_113 = arith.constant 5.000000e-01 : f32
    %295 = vector.broadcast %cst_113 : f32 to vector<8x128xf32>
    %296 = arith.mulf %295, %294 : vector<8x128xf32>
    %297 = arith.mulf %286, %256 : vector<8x128xf32>
    %298 = arith.mulf %278, %288 : vector<8x128xf32>
    %299 = arith.addf %297, %298 : vector<8x128xf32>
    %300 = math.tanh %299 : vector<8x128xf32>
    %301 = arith.mulf %296, %300 : vector<8x128xf32>
    %302 = arith.index_cast %c6_i32 : i32 to index
    %c0_114 = arith.constant 0 : index
    %c0_115 = arith.constant 0 : index
    %303 = vector.load %arg4[%302, %c0_114, %c0_115] : memref<8x8x128xf32, #tpu.memory_space<vmem>>, vector<1x8x128xf32>
    %304 = vector.shape_cast %303 : vector<1x8x128xf32> to vector<8x128xf32>
    %305 = vector.shape_cast %301 : vector<8x128xf32> to vector<1x8x128xf32>
    tpu.vector_store %arg4[%302, %c0_114, %c0_115], %305 {strides = array<i32>} : memref<8x8x128xf32, #tpu.memory_space<vmem>>, vector<1x8x128xf32>,
    %c7_i32 = arith.constant 7 : i32
    %306 = arith.index_cast %c7_i32 : i32 to index
    %c0_116 = arith.constant 0 : index
    %c0_117 = arith.constant 0 : index
    %307 = vector.load %arg2[%306, %c0_116, %c0_117] : memref<8x8x512xbf16, #tpu.memory_space<vmem>>, vector<1x8x512xbf16>
    %308 = vector.shape_cast %307 : vector<1x8x512xbf16> to vector<8x512xbf16>
    %309 = arith.extf %308 : vector<8x512xbf16> to vector<8x512xf32>
    %310 = arith.truncf %301 : vector<8x128xf32> to vector<8x128xbf16>
    %c0_118 = arith.constant 0 : index
    %c0_119 = arith.constant 0 : index
    %311 = vector.load %arg3[%c0_118, %c0_119] : memref<128x512xbf16, #tpu.memory_space<vmem>>, vector<128x512xbf16>
    %cst_120 = arith.constant dense<0.000000e+00> : vector<8x512xf32>
    %312 = tpu.matmul %310, %311, %cst_120 {dimension_numbers = #tpu.dot_dimension_numbers<[1], [0], [0], [1], [0, 0, 1, 1], [], []>} : vector<8x128xbf16>, vector<128x512xbf16>, vector<8x512xf32> -> vector<8x512xf32>
    %313 = arith.addf %309, %312 : vector<8x512xf32>
    %314 = vector.extract_strided_slice %313 {offsets = [0, 0], sizes = [8, 128], strides = [1, 1]} : vector<8x512xf32> to vector<8x128xf32>
    %cst_121 = arith.constant 5.000000e-01 : f32
    %315 = vector.broadcast %cst_121 : f32 to vector<8x128xf32>
    %316 = arith.mulf %315, %314 : vector<8x128xf32>
    %317 = math.tanh %316 : vector<8x128xf32>
    %cst_122 = arith.constant 1.000000e+00 : f32
    %318 = vector.broadcast %cst_122 : f32 to vector<8x128xf32>
    %319 = arith.addf %317, %318 : vector<8x128xf32>
    %cst_123 = arith.constant 5.000000e-01 : f32
    %320 = vector.broadcast %cst_123 : f32 to vector<8x128xf32>
    %321 = arith.mulf %320, %319 : vector<8x128xf32>
    %322 = vector.extract_strided_slice %313 {offsets = [0, 128], sizes = [8, 128], strides = [1, 1]} : vector<8x512xf32> to vector<8x128xf32>
    %cst_124 = arith.constant 5.000000e-01 : f32
    %323 = vector.broadcast %cst_124 : f32 to vector<8x128xf32>
    %324 = arith.mulf %323, %322 : vector<8x128xf32>
    %325 = math.tanh %324 : vector<8x128xf32>
    %cst_125 = arith.constant 1.000000e+00 : f32
    %326 = vector.broadcast %cst_125 : f32 to vector<8x128xf32>
    %327 = arith.addf %325, %326 : vector<8x128xf32>
    %cst_126 = arith.constant 5.000000e-01 : f32
    %328 = vector.broadcast %cst_126 : f32 to vector<8x128xf32>
    %329 = arith.mulf %328, %327 : vector<8x128xf32>
    %330 = vector.extract_strided_slice %313 {offsets = [0, 256], sizes = [8, 128], strides = [1, 1]} : vector<8x512xf32> to vector<8x128xf32>
    %331 = math.tanh %330 : vector<8x128xf32>
    %332 = vector.extract_strided_slice %313 {offsets = [0, 384], sizes = [8, 128], strides = [1, 1]} : vector<8x512xf32> to vector<8x128xf32>
    %cst_127 = arith.constant 5.000000e-01 : f32
    %333 = vector.broadcast %cst_127 : f32 to vector<8x128xf32>
    %334 = arith.mulf %333, %332 : vector<8x128xf32>
    %335 = math.tanh %334 : vector<8x128xf32>
    %cst_128 = arith.constant 1.000000e+00 : f32
    %336 = vector.broadcast %cst_128 : f32 to vector<8x128xf32>
    %337 = arith.addf %335, %336 : vector<8x128xf32>
    %cst_129 = arith.constant 5.000000e-01 : f32
    %338 = vector.broadcast %cst_129 : f32 to vector<8x128xf32>
    %339 = arith.mulf %338, %337 : vector<8x128xf32>
    %340 = arith.mulf %329, %299 : vector<8x128xf32>
    %341 = arith.mulf %321, %331 : vector<8x128xf32>
    %342 = arith.addf %340, %341 : vector<8x128xf32>
    %343 = math.tanh %342 : vector<8x128xf32>
    %344 = arith.mulf %339, %343 : vector<8x128xf32>
    %345 = arith.index_cast %c7_i32 : i32 to index
    %c0_130 = arith.constant 0 : index
    %c0_131 = arith.constant 0 : index
    %346 = vector.load %arg4[%345, %c0_130, %c0_131] : memref<8x8x128xf32, #tpu.memory_space<vmem>>, vector<1x8x128xf32>
    %347 = vector.shape_cast %346 : vector<1x8x128xf32> to vector<8x128xf32>
    %348 = vector.shape_cast %344 : vector<8x128xf32> to vector<1x8x128xf32>
    tpu.vector_store %arg4[%345, %c0_130, %c0_131], %348 {strides = array<i32>} : memref<8x8x128xf32, #tpu.memory_space<vmem>>, vector<1x8x128xf32>,
    %c8_i32 = arith.constant 8 : i32
    %c0_132 = arith.constant 0 : index
    %c0_133 = arith.constant 0 : index
    %349 = vector.load %arg7[%c0_132, %c0_133] : memref<8x128xf32, #tpu.memory_space<vmem>>, vector<8x128xf32>
    tpu.vector_store %arg7[%c0_132, %c0_133], %344 {strides = array<i32>} : memref<8x128xf32, #tpu.memory_space<vmem>>, vector<8x128xf32>,
    %c0_134 = arith.constant 0 : index
    %c0_135 = arith.constant 0 : index
    %350 = vector.load %arg8[%c0_134, %c0_135] : memref<8x128xf32, #tpu.memory_space<vmem>>, vector<8x128xf32>
    tpu.vector_store %arg8[%c0_134, %c0_135], %342 {strides = array<i32>} : memref<8x128xf32, #tpu.memory_space<vmem>>, vector<8x128xf32>,
    %c0_i32_136 = arith.constant 0 : i32
    %351 = arith.cmpi eq, %arg1, %c0_i32_136 : i32
    %352 = arith.extui %351 : i1 to i32
    %c0_i32_137 = arith.constant 0 : i32
    %353 = arith.cmpi ne, %352, %c0_i32_137 : i32
    scf.if %353 {
      %c0_138 = arith.constant 0 : index
      %c0_139 = arith.constant 0 : index
      %354 = vector.load %arg7[%c0_138, %c0_139] : memref<8x128xf32, #tpu.memory_space<vmem>>, vector<8x128xf32>
      %c0_140 = arith.constant 0 : index
      %c0_141 = arith.constant 0 : index
      %c0_142 = arith.constant 0 : index
      %355 = vector.load %arg5[%c0_140, %c0_141, %c0_142] : memref<1x8x128xf32, #tpu.memory_space<vmem>>, vector<1x8x128xf32>
      %356 = vector.shape_cast %355 : vector<1x8x128xf32> to vector<8x128xf32>
      %357 = vector.shape_cast %354 : vector<8x128xf32> to vector<1x8x128xf32>
      tpu.vector_store %arg5[%c0_140, %c0_141, %c0_142], %357 {strides = array<i32>} : memref<1x8x128xf32, #tpu.memory_space<vmem>>, vector<1x8x128xf32>,
      %c0_143 = arith.constant 0 : index
      %c0_144 = arith.constant 0 : index
      %358 = vector.load %arg8[%c0_143, %c0_144] : memref<8x128xf32, #tpu.memory_space<vmem>>, vector<8x128xf32>
      %c0_145 = arith.constant 0 : index
      %c0_146 = arith.constant 0 : index
      %c0_147 = arith.constant 0 : index
      %359 = vector.load %arg6[%c0_145, %c0_146, %c0_147] : memref<1x8x128xf32, #tpu.memory_space<vmem>>, vector<1x8x128xf32>
      %360 = vector.shape_cast %359 : vector<1x8x128xf32> to vector<8x128xf32>
      %361 = vector.shape_cast %358 : vector<8x128xf32> to vector<1x8x128xf32>
      tpu.vector_store %arg6[%c0_145, %c0_146, %c0_147], %361 {strides = array<i32>} : memref<1x8x128xf32, #tpu.memory_space<vmem>>, vector<1x8x128xf32>,
    } else {
    }
    return
  }
  func.func @transform_0(%arg0: i32, %arg1: i32) -> (i32, i32, i32) {
    %c0_i32 = arith.constant 0 : i32
    %c0_i32_0 = arith.constant 0 : i32
    return %arg1, %arg0, %c0_i32 : i32, i32, i32
  }
  func.func @transform_1(%arg0: i32, %arg1: i32) -> (i32, i32) {
    %c0_i32 = arith.constant 0 : i32
    %c0_i32_0 = arith.constant 0 : i32
    %c0_i32_1 = arith.constant 0 : i32
    return %c0_i32, %c0_i32_0 : i32, i32
  }
  func.func @transform_2(%arg0: i32, %arg1: i32) -> (i32, i32, i32) {
    %c0_i32 = arith.constant 0 : i32
    %c0_i32_0 = arith.constant 0 : i32
    return %arg1, %arg0, %c0_i32 : i32, i32, i32
  }
  func.func @transform_3(%arg0: i32, %arg1: i32) -> (i32, i32, i32) {
    %c0_i32 = arith.constant 0 : i32
    %c0_i32_0 = arith.constant 0 : i32
    %c0_i32_1 = arith.constant 0 : i32
    return %c0_i32, %arg0, %c0_i32_0 : i32, i32, i32
  }
  func.func @transform_4(%arg0: i32, %arg1: i32) -> (i32, i32, i32) {
    %c0_i32 = arith.constant 0 : i32
    %c0_i32_0 = arith.constant 0 : i32
    %c0_i32_1 = arith.constant 0 : i32
    return %c0_i32, %arg0, %c0_i32_0 : i32, i32, i32
  }
}

</mosaic_0001>

<llo_original>
// kernel: tpu_custom_call.1
$region0: #{tpu_custom_call.1}
  #allocation0 [shape = 'u32[]', space=smem, size = 0x4, offset = 0x4, fixed_abs, tag = 'smem constant byte address 0x4 - core index']
  #allocation1 [shape = 'u32[144,128]{1,0:T(1,128)}', space=vmem, size = 0x12000, scoped, tag = 'internal scratch']
  #allocation2 [shape = 'f32[8,128]{1,0:T(8,128)}', space=vmem, size = 0x1000, scoped, tag = 'scratch operand']
  #allocation3 [shape = 'f32[8,128]{1,0:T(8,128)}', space=vmem, size = 0x1000, scoped, tag = 'scratch operand']
  %s0 = inlined_call_operand.hbm [shape: bf16[8,8,512], index: 0, kind: input, shape index: {}]
  %s1 = inlined_call_operand.hbm [shape: bf16[128,512], index: 1, kind: input, shape index: {}]
  %s2 = inlined_call_operand.hbm [shape: f32[8,8,128], index: 2, kind: output, shape index: {0}]
  %s3 = inlined_call_operand.hbm [shape: f32[1,8,128], index: 3, kind: output, shape index: {1}]
  %s4 = inlined_call_operand.hbm [shape: f32[1,8,128], index: 4, kind: output, shape index: {2}]
  %5 = xla_tuple %s2, %s3, %s4
  %s6 = sld [smem:[#allocation0]]
  $region50: #{tpu_custom_call.1} parent=0
    _
  %s8 = ssub.s32 1, %s6
  %s9 = scalar_select 0, %s8, %s6
  $region1: #{tpu_custom_call.1} parent=0
    #allocation4 [shape = 'u8[65536]{0}', space=vmem, size = 0x10000, scoped, tag = 'input window, operand 0, single buffered']
    #allocation5 [shape = 's32[1]{0}', space=sflag, size = 0x4, scoped, tag = 'scoped memory for tpu_custom_call.1']
    #allocation6 [shape = 's32[1]{0}', space=sflag, size = 0x4, scoped, tag = 'scoped memory for tpu_custom_call.1']
    #allocation7 [shape = 'u8[131072]{0}', space=vmem, size = 0x20000, scoped, tag = 'input window, operand 1, single buffered']
    #allocation8 [shape = 's32[1]{0}', space=sflag, size = 0x4, scoped, tag = 'scoped memory for tpu_custom_call.1']
    #allocation9 [shape = 'u8[32768]{0}', space=vmem, size = 0x8000, scoped, tag = 'output window, operand 0, single buffered']
    #allocation10 [shape = 'u8[4096]{0}', space=vmem, size = 0x1000, scoped, tag = 'output window, operand 1, single buffered']
    #allocation11 [shape = 's32[1]{0}', space=sflag, size = 0x4, scoped, tag = 'scoped memory for tpu_custom_call.1']
    #allocation12 [shape = 'u8[4096]{0}', space=vmem, size = 0x1000, scoped, tag = 'output window, operand 2, single buffered']
    %10 = vsyncpa [#allocation5], 0
    %11 = vsyncpa [#allocation8], 0
    %12 = vsyncpa [#allocation6], 0
    %13 = vsyncpa [#allocation11], 0
    // Predicated region
    $region2: #{tpu_custom_call.1} parent=1 // pred_check
      _
    $region3: #{tpu_custom_call.1} parent=1 // pred_check_branch
      %15 = sbr.rel (0) target = $region5
    $region4: #{tpu_custom_call.1} parent=1 // pred_region
      %s17 = ssub.s32 2048, 2048
      %18 = vsyncadd [#allocation5], %s17
      %s19 = sshll.u32 [#allocation4], 4
      %s20 = int_to_ptr.vmem [resolvable:$true] %s19
      %25 = dma.hbm_to_vmem [thread:$0]  %s0, 2048, %s20, [#allocation5], 256, 256, 16
    $region5: #{tpu_custom_call.1} parent=1 // pred_fallthru
      _
    // Predicated region
    $region6: #{tpu_custom_call.1} parent=1 // pred_check
      _
    $region7: #{tpu_custom_call.1} parent=1 // pred_check_branch
      %27 = sbr.rel (0) target = $region9
    $region8: #{tpu_custom_call.1} parent=1 // pred_region
      %s29 = ssub.s32 4096, 4096
      %30 = vsyncadd [#allocation8], %s29
      %s31 = sshll.u32 [#allocation7], 4
      %s32 = int_to_ptr.vmem [resolvable:$true] %s31
      %37 = dma.hbm_to_vmem [thread:$0]  %s1, 4096, %s32, [#allocation8], 256, 256, 16
    $region9: #{tpu_custom_call.1} parent=1 // pred_fallthru
      _
    // Predicated region
    $region10: #{tpu_custom_call.1} parent=1 // pred_check
      _
    $region11: #{tpu_custom_call.1} parent=1 // pred_check_branch
      %39 = sbr.rel (0) target = $region13
    $region12: #{tpu_custom_call.1} parent=1 // pred_region
      %40 = dma.done [#allocation5], 2048
    $region13: #{tpu_custom_call.1} parent=1 // pred_fallthru
      _
    // Predicated region
    $region14: #{tpu_custom_call.1} parent=1 // pred_check
      _
    $region15: #{tpu_custom_call.1} parent=1 // pred_check_branch
      %42 = sbr.rel (0) target = $region17
    $region16: #{tpu_custom_call.1} parent=1 // pred_region
      %43 = dma.done [#allocation8], 4096
    $region17: #{tpu_custom_call.1} parent=1 // pred_fallthru
      _
    %p45 = scmp.eq.s32.totalorder 0, 0
    // Predicated region
    $region18: #{tpu_custom_call.1} parent=1 // pred_check
      %p46 = pneg %p45
    $region19: #{tpu_custom_call.1} parent=1 // pred_check_branch
      %48 = sbr.rel (%p46) target = $region21
    $region20: #{tpu_custom_call.1} parent=1 // pred_region
      %49 = vst [vmem:[#allocation2] sm:$0xff] 0.0
      %50 = vst [vmem:[#allocation3] sm:$0xff] 0.0
    $region21: #{tpu_custom_call.1} parent=1 // pred_fallthru
      _
    %v51 = vld [vmem:[#allocation2] sm:$0xff]
    %v52 = vld [vmem:[#allocation3] sm:$0xff]
    %v53 = vld [vmem:[#allocation4] sm:$0xff]
    %v54 = vld [vmem:[#allocation4 + $0x8] sm:$0xff]
    %v55 = vunpack.c.l.bf16 %v53
    %v56 = vunpack.c.h.bf16 %v53
    %v57 = vunpack.c.l.bf16 %v54
    %v58 = vunpack.c.h.bf16 %v54
    %v59 = vpack.c.bf16 %v51, %v51
    %v60 = vld [vmem:[#allocation7] sm:$0xff]
    %v61 = vld [vmem:[#allocation7 + $0x8] sm:$0xff]
    %v62 = vld [vmem:[#allocation7 + $0x10] sm:$0xff]
    %v63 = vld [vmem:[#allocation7 + $0x18] sm:$0xff]
    %v64 = vld [vmem:[#allocation7 + $0x20] sm:$0xff]
    %v65 = vld [vmem:[#allocation7 + $0x28] sm:$0xff]
    %v66 = vld [vmem:[#allocation7 + $0x30] sm:$0xff]
    %v67 = vld [vmem:[#allocation7 + $0x38] sm:$0xff]
    %v68 = vld [vmem:[#allocation7 + $0x40] sm:$0xff]
    %v69 = vld [vmem:[#allocation7 + $0x48] sm:$0xff]
    %v70 = vld [vmem:[#allocation7 + $0x50] sm:$0xff]
    %v71 = vld [vmem:[#allocation7 + $0x58] sm:$0xff]
    %v72 = vld [vmem:[#allocation7 + $0x60] sm:$0xff]
    %v73 = vld [vmem:[#allocation7 + $0x68] sm:$0xff]
    %v74 = vld [vmem:[#allocation7 + $0x70] sm:$0xff]
    %v75 = vld [vmem:[#allocation7 + $0x78] sm:$0xff]
    %v76 = vld [vmem:[#allocation7 + $0x80] sm:$0xff]
    %v77 = vld [vmem:[#allocation7 + $0x88] sm:$0xff]
    %v78 = vld [vmem:[#allocation7 + $0x90] sm:$0xff]
    %v79 = vld [vmem:[#allocation7 + $0x98] sm:$0xff]
    %v80 = vld [vmem:[#allocation7 + $0xa0] sm:$0xff]
    %v81 = vld [vmem:[#allocation7 + $0xa8] sm:$0xff]
    %v82 = vld [vmem:[#allocation7 + $0xb0] sm:$0xff]
    %v83 = vld [vmem:[#allocation7 + $0xb8] sm:$0xff]
    %v84 = vld [vmem:[#allocation7 + $0xc0] sm:$0xff]
    %v85 = vld [vmem:[#allocation7 + $0xc8] sm:$0xff]
    %v86 = vld [vmem:[#allocation7 + $0xd0] sm:$0xff]
    %v87 = vld [vmem:[#allocation7 + $0xd8] sm:$0xff]
    %v88 = vld [vmem:[#allocation7 + $0xe0] sm:$0xff]
    %v89 = vld [vmem:[#allocation7 + $0xe8] sm:$0xff]
    %v90 = vld [vmem:[#allocation7 + $0xf0] sm:$0xff]
    %v91 = vld [vmem:[#allocation7 + $0xf8] sm:$0xff]
    %v124 = vunpack.c.l.b16 %v60
    %v125 = vunpack.c.h.b16 %v60
    %v126 = vunpack.c.l.b16 %v61
    %v127 = vunpack.c.h.b16 %v61
    %v128 = vunpack.c.l.b16 %v62
    %v129 = vunpack.c.h.b16 %v62
    %v130 = vunpack.c.l.b16 %v63
    %v131 = vunpack.c.h.b16 %v63
    %v132 = vunpack.c.l.b16 %v64
    %v133 = vunpack.c.h.b16 %v64
    %v134 = vunpack.c.l.b16 %v65
    %v135 = vunpack.c.h.b16 %v65
    %v136 = vunpack.c.l.b16 %v66
    %v137 = vunpack.c.h.b16 %v66
    %v138 = vunpack.c.l.b16 %v67
    %v139 = vunpack.c.h.b16 %v67
    %v140 = vunpack.c.l.b16 %v68
    %v141 = vunpack.c.h.b16 %v68
    %v142 = vunpack.c.l.b16 %v69
    %v143 = vunpack.c.h.b16 %v69
    %v144 = vunpack.c.l.b16 %v70
    %v145 = vunpack.c.h.b16 %v70
    %v146 = vunpack.c.l.b16 %v71
    %v147 = vunpack.c.h.b16 %v71
    %v148 = vunpack.c.l.b16 %v72
    %v149 = vunpack.c.h.b16 %v72
    %v150 = vunpack.c.l.b16 %v73
    %v151 = vunpack.c.h.b16 %v73
    %v152 = vunpack.c.l.b16 %v74
    %v153 = vunpack.c.h.b16 %v74
    %v154 = vunpack.c.l.b16 %v75
    %v155 = vunpack.c.h.b16 %v75
    %v156 = vunpack.c.l.b16 %v76
    %v157 = vunpack.c.h.b16 %v76
    %v158 = vunpack.c.l.b16 %v77
    %v159 = vunpack.c.h.b16 %v77
    %v160 = vunpack.c.l.b16 %v78
    %v161 = vunpack.c.h.b16 %v78
    %v162 = vunpack.c.l.b16 %v79
    %v163 = vunpack.c.h.b16 %v79
    %v164 = vunpack.c.l.b16 %v80
    %v165 = vunpack.c.h.b16 %v80
    %v166 = vunpack.c.l.b16 %v81
    %v167 = vunpack.c.h.b16 %v81
    %v168 = vunpack.c.l.b16 %v82
    %v169 = vunpack.c.h.b16 %v82
    %v170 = vunpack.c.l.b16 %v83
    %v171 = vunpack.c.h.b16 %v83
    %v172 = vunpack.c.l.b16 %v84
    %v173 = vunpack.c.h.b16 %v84
    %v174 = vunpack.c.l.b16 %v85
    %v175 = vunpack.c.h.b16 %v85
    %v176 = vunpack.c.l.b16 %v86
    %v177 = vunpack.c.h.b16 %v86
    %v178 = vunpack.c.l.b16 %v87
    %v179 = vunpack.c.h.b16 %v87
    %v180 = vunpack.c.l.b16 %v88
    %v181 = vunpack.c.h.b16 %v88
    %v182 = vunpack.c.l.b16 %v89
    %v183 = vunpack.c.h.b16 %v89
    %v184 = vunpack.c.l.b16 %v90
    %v185 = vunpack.c.h.b16 %v90
    %v186 = vunpack.c.l.b16 %v91
    %v187 = vunpack.c.h.b16 %v91
    %v188 = vpack.c.b16 %v128, %v124
    %v189 = vpack.c.b16 %v129, %v125
    %v190 = vpack.c.b16 %v130, %v126
    %v191 = vpack.c.b16 %v131, %v127
    %v192 = vpack.c.b16 %v136, %v132
    %v193 = vpack.c.b16 %v137, %v133
    %v194 = vpack.c.b16 %v138, %v134
    %v195 = vpack.c.b16 %v139, %v135
    %v196 = vpack.c.b16 %v144, %v140
    %v197 = vpack.c.b16 %v145, %v141
    %v198 = vpack.c.b16 %v146, %v142
    %v199 = vpack.c.b16 %v147, %v143
    %v200 = vpack.c.b16 %v152, %v148
    %v201 = vpack.c.b16 %v153, %v149
    %v202 = vpack.c.b16 %v154, %v150
    %v203 = vpack.c.b16 %v155, %v151
    %v204 = vpack.c.b16 %v160, %v156
    %v205 = vpack.c.b16 %v161, %v157
    %v206 = vpack.c.b16 %v162, %v158
    %v207 = vpack.c.b16 %v163, %v159
    %v208 = vpack.c.b16 %v168, %v164
    %v209 = vpack.c.b16 %v169, %v165
    %v210 = vpack.c.b16 %v170, %v166
    %v211 = vpack.c.b16 %v171, %v167
    %v212 = vpack.c.b16 %v176, %v172
    %v213 = vpack.c.b16 %v177, %v173
    %v214 = vpack.c.b16 %v178, %v174
    %v215 = vpack.c.b16 %v179, %v175
    %v216 = vpack.c.b16 %v184, %v180
    %v217 = vpack.c.b16 %v185, %v181
    %v218 = vpack.c.b16 %v186, %v182
    %v219 = vpack.c.b16 %v187, %v183
    %252 = vmatprep.subr.bf16.mxu0 %v189
    %253 = vmatpush1.bf16.msra.mxu0 %v188
    %254 = vmatprep.subr.bf16.mxu0 %v193
    %255 = vmatpush1.bf16.msra.mxu0 %v192
    %256 = vmatprep.subr.bf16.mxu0 %v197
    %257 = vmatpush1.bf16.msra.mxu0 %v196
    %258 = vmatprep.subr.bf16.mxu0 %v201
    %259 = vmatpush1.bf16.msra.mxu0 %v200
    %260 = vmatprep.subr.bf16.mxu0 %v205
    %261 = vmatpush1.bf16.msra.mxu0 %v204
    %262 = vmatprep.subr.bf16.mxu0 %v209
    %263 = vmatpush1.bf16.msra.mxu0 %v208
    %264 = vmatprep.subr.bf16.mxu0 %v213
    %265 = vmatpush1.bf16.msra.mxu0 %v212
    %266 = vmatprep.subr.bf16.mxu0 %v217
    %267 = vmatpush1.bf16.msra.mxu0 %v216
    %268 = vmatprep.subr.bf16.mxu0 0
    %269 = vmatpush1.bf16.msra.mxu0 0
    %270 = vmatprep.subr.bf16.mxu0 0
    %271 = vmatpush1.bf16.msra.mxu0 0
    %272 = vmatprep.subr.bf16.mxu0 0
    %273 = vmatpush1.bf16.msra.mxu0 0
    %274 = vmatprep.subr.bf16.mxu0 0
    %275 = vmatpush1.bf16.msra.mxu0 0
    %276 = vmatprep.subr.bf16.mxu0 0
    %277 = vmatpush1.bf16.msra.mxu0 0
    %278 = vmatprep.subr.bf16.mxu0 0
    %279 = vmatpush1.bf16.msra.mxu0 0
    %280 = vmatprep.subr.bf16.mxu0 0
    %281 = vmatpush1.bf16.msra.mxu0 0
    %282 = vmatprep.subr.bf16.mxu0 0
    %283 = vmatpush1.bf16.msra.mxu0 0
    %284 = vmatprep.mubr.bf16.mxu0 0
    %285 = vmatmul.mubr.bf16.gmra.mrb[0].mxu0 %v59
    %v286 = vpop.f32.mrb[0].mxu0
    %v287 = vadd.f32 0.0, %v286
    %v288 = vpop.f32.mrb[0].mxu0
    %v289 = vadd.f32 0.0, %v288
    %v290 = vpop.f32.mrb[0].mxu0
    %v291 = vpop.f32.mrb[0].mxu0
    %292 = vdwg.mxu0
    %293 = vmatprep.subr.bf16.mxu0 %v191
    %294 = vmatpush1.bf16.msra.mxu0 %v190
    %295 = vmatprep.subr.bf16.mxu0 %v195
    %296 = vmatpush1.bf16.msra.mxu0 %v194
    %297 = vmatprep.subr.bf16.mxu0 %v199
    %298 = vmatpush1.bf16.msra.mxu0 %v198
    %299 = vmatprep.subr.bf16.mxu0 %v203
    %300 = vmatpush1.bf16.msra.mxu0 %v202
    %301 = vmatprep.subr.bf16.mxu0 %v207
    %302 = vmatpush1.bf16.msra.mxu0 %v206
    %303 = vmatprep.subr.bf16.mxu0 %v211
    %304 = vmatpush1.bf16.msra.mxu0 %v210
    %305 = vmatprep.subr.bf16.mxu0 %v215
    %306 = vmatpush1.bf16.msra.mxu0 %v214
    %307 = vmatprep.subr.bf16.mxu0 %v219
    %308 = vmatpush1.bf16.msra.mxu0 %v218
    %309 = vmatprep.subr.bf16.mxu0 0
    %310 = vmatpush1.bf16.msra.mxu0 0
    %311 = vmatprep.subr.bf16.mxu0 0
    %312 = vmatpush1.bf16.msra.mxu0 0
    %313 = vmatprep.subr.bf16.mxu0 0
    %314 = vmatpush1.bf16.msra.mxu0 0
    %315 = vmatprep.subr.bf16.mxu0 0
    %316 = vmatpush1.bf16.msra.mxu0 0
    %317 = vmatprep.subr.bf16.mxu0 0
    %318 = vmatpush1.bf16.msra.mxu0 0
    %319 = vmatprep.subr.bf16.mxu0 0
    %320 = vmatpush1.bf16.msra.mxu0 0
    %321 = vmatprep.subr.bf16.mxu0 0
    %322 = vmatpush1.bf16.msra.mxu0 0
    %323 = vmatprep.subr.bf16.mxu0 0
    %324 = vmatpush1.bf16.msra.mxu0 0
    %325 = vmatprep.mubr.bf16.mxu0 0
    %326 = vmatmul.mubr.bf16.gmra.mrb[0].mxu0 %v59
    %v327 = vpop.f32.mrb[0].mxu0
    %v328 = vadd.f32 0.0, %v327
    %v329 = vpop.f32.mrb[0].mxu0
    %v330 = vadd.f32 0.0, %v329
    %v331 = vpop.f32.mrb[0].mxu0
    %v332 = vpop.f32.mrb[0].mxu0
    %333 = vdwg.mxu0
    %v334 = vadd.f32 %v55, %v287
    %v335 = vadd.f32 %v56, %v289
    %v336 = vadd.f32 %v57, %v328
    %v337 = vadd.f32 %v58, %v330
    %v338 = vmul.f32 %v334, 0.5
    %v339 = vtanh.pop %v338
    %v340 = vadd.f32 %v339, 1.0
    %v341 = vmul.f32 %v340, 0.5
    %v342 = vmul.f32 %v335, 0.5
    %v343 = vtanh.pop %v342
    %v344 = vadd.f32 %v343, 1.0
    %v345 = vmul.f32 %v344, 0.5
    %v346 = vtanh.pop %v336
    %v347 = vmul.f32 %v337, 0.5
    %v348 = vtanh.pop %v347
    %v349 = vadd.f32 %v348, 1.0
    %v350 = vmul.f32 %v349, 0.5
    %v351 = vmul.f32 %v345, %v52
    %v352 = vmul.f32 %v341, %v346
    %v353 = vadd.f32 %v351, %v352
    %v354 = vtanh.pop %v353
    %v355 = vmul.f32 %v350, %v354
    %356 = vst [vmem:[#allocation9] sm:$0xff] %v355
    %s357 = scalar_lea.vmem [#allocation4], 16
    %v358 = vld [vmem:[%s357] sm:$0xff]
    %v359 = vld [vmem:[%s357 + $0x8] sm:$0xff]
    %v360 = vunpack.c.l.bf16 %v358
    %v361 = vunpack.c.h.bf16 %v358
    %v362 = vunpack.c.l.bf16 %v359
    %v363 = vunpack.c.h.bf16 %v359
    %v364 = vpack.c.bf16 %v355, %v355
    %v365 = vld [vmem:[#allocation7] sm:$0xff]
    %v366 = vld [vmem:[#allocation7 + $0x8] sm:$0xff]
    %v367 = vld [vmem:[#allocation7 + $0x10] sm:$0xff]
    %v368 = vld [vmem:[#allocation7 + $0x18] sm:$0xff]
    %v369 = vld [vmem:[#allocation7 + $0x20] sm:$0xff]
    %v370 = vld [vmem:[#allocation7 + $0x28] sm:$0xff]
    %v371 = vld [vmem:[#allocation7 + $0x30] sm:$0xff]
    %v372 = vld [vmem:[#allocation7 + $0x38] sm:$0xff]
    %v373 = vld [vmem:[#allocation7 + $0x40] sm:$0xff]
    %v374 = vld [vmem:[#allocation7 + $0x48] sm:$0xff]
    %v375 = vld [vmem:[#allocation7 + $0x50] sm:$0xff]
    %v376 = vld [vmem:[#allocation7 + $0x58] sm:$0xff]
    %v377 = vld [vmem:[#allocation7 + $0x60] sm:$0xff]
    %v378 = vld [vmem:[#allocation7 + $0x68] sm:$0xff]
    %v379 = vld [vmem:[#allocation7 + $0x70] sm:$0xff]
    %v380 = vld [vmem:[#allocation7 + $0x78] sm:$0xff]
    %v381 = vld [vmem:[#allocation7 + $0x80] sm:$0xff]
    %v382 = vld [vmem:[#allocation7 + $0x88] sm:$0xff]
    %v383 = vld [vmem:[#allocation7 + $0x90] sm:$0xff]
    %v384 = vld [vmem:[#allocation7 + $0x98] sm:$0xff]
    %v385 = vld [vmem:[#allocation7 + $0xa0] sm:$0xff]
    %v386 = vld [vmem:[#allocation7 + $0xa8] sm:$0xff]
    %v387 = vld [vmem:[#allocation7 + $0xb0] sm:$0xff]
    %v388 = vld [vmem:[#allocation7 + $0xb8] sm:$0xff]
    %v389 = vld [vmem:[#allocation7 + $0xc0] sm:$0xff]
    %v390 = vld [vmem:[#allocation7 + $0xc8] sm:$0xff]
    %v391 = vld [vmem:[#allocation7 + $0xd0] sm:$0xff]
    %v392 = vld [vmem:[#allocation7 + $0xd8] sm:$0xff]
    %v393 = vld [vmem:[#allocation7 + $0xe0] sm:$0xff]
    %v394 = vld [vmem:[#allocation7 + $0xe8] sm:$0xff]
    %v395 = vld [vmem:[#allocation7 + $0xf0] sm:$0xff]
    %v396 = vld [vmem:[#allocation7 + $0xf8] sm:$0xff]
    %v429 = vunpack.c.l.b16 %v365
    %v430 = vunpack.c.h.b16 %v365
    %v431 = vunpack.c.l.b16 %v366
    %v432 = vunpack.c.h.b16 %v366
    %v433 = vunpack.c.l.b16 %v367
    %v434 = vunpack.c.h.b16 %v367
    %v435 = vunpack.c.l.b16 %v368
    %v436 = vunpack.c.h.b16 %v368
    %v437 = vunpack.c.l.b16 %v369
    %v438 = vunpack.c.h.b16 %v369
    %v439 = vunpack.c.l.b16 %v370
    %v440 = vunpack.c.h.b16 %v370
    %v441 = vunpack.c.l.b16 %v371
    %v442 = vunpack.c.h.b16 %v371
    %v443 = vunpack.c.l.b16 %v372
    %v444 = vunpack.c.h.b16 %v372
    %v445 = vunpack.c.l.b16 %v373
    %v446 = vunpack.c.h.b16 %v373
    %v447 = vunpack.c.l.b16 %v374
    %v448 = vunpack.c.h.b16 %v374
    %v449 = vunpack.c.l.b16 %v375
    %v450 = vunpack.c.h.b16 %v375
    %v451 = vunpack.c.l.b16 %v376
    %v452 = vunpack.c.h.b16 %v376
    %v453 = vunpack.c.l.b16 %v377
    %v454 = vunpack.c.h.b16 %v377
    %v455 = vunpack.c.l.b16 %v378
    %v456 = vunpack.c.h.b16 %v378
    %v457 = vunpack.c.l.b16 %v379
    %v458 = vunpack.c.h.b16 %v379
    %v459 = vunpack.c.l.b16 %v380
    %v460 = vunpack.c.h.b16 %v380
    %v461 = vunpack.c.l.b16 %v381
    %v462 = vunpack.c.h.b16 %v381
    %v463 = vunpack.c.l.b16 %v382
    %v464 = vunpack.c.h.b16 %v382
    %v465 = vunpack.c.l.b16 %v383
    %v466 = vunpack.c.h.b16 %v383
    %v467 = vunpack.c.l.b16 %v384
    %v468 = vunpack.c.h.b16 %v384
    %v469 = vunpack.c.l.b16 %v385
    %v470 = vunpack.c.h.b16 %v385
    %v471 = vunpack.c.l.b16 %v386
    %v472 = vunpack.c.h.b16 %v386
    %v473 = vunpack.c.l.b16 %v387
    %v474 = vunpack.c.h.b16 %v387
    %v475 = vunpack.c.l.b16 %v388
    %v476 = vunpack.c.h.b16 %v388
    %v477 = vunpack.c.l.b16 %v389
    %v478 = vunpack.c.h.b16 %v389
    %v479 = vunpack.c.l.b16 %v390
    %v480 = vunpack.c.h.b16 %v390
    %v481 = vunpack.c.l.b16 %v391
    %v482 = vunpack.c.h.b16 %v391
    %v483 = vunpack.c.l.b16 %v392
    %v484 = vunpack.c.h.b16 %v392
    %v485 = vunpack.c.l.b16 %v393
    %v486 = vunpack.c.h.b16 %v393
    %v487 = vunpack.c.l.b16 %v394
    %v488 = vunpack.c.h.b16 %v394
    %v489 = vunpack.c.l.b16 %v395
    %v490 = vunpack.c.h.b16 %v395
    %v491 = vunpack.c.l.b16 %v396
    %v492 = vunpack.c.h.b16 %v396
    %v493 = vpack.c.b16 %v433, %v429
    %v494 = vpack.c.b16 %v434, %v430
    %v495 = vpack.c.b16 %v435, %v431
    %v496 = vpack.c.b16 %v436, %v432
    %v497 = vpack.c.b16 %v441, %v437
    %v498 = vpack.c.b16 %v442, %v438
    %v499 = vpack.c.b16 %v443, %v439
    %v500 = vpack.c.b16 %v444, %v440
    %v501 = vpack.c.b16 %v449, %v445
    %v502 = vpack.c.b16 %v450, %v446
    %v503 = vpack.c.b16 %v451, %v447
    %v504 = vpack.c.b16 %v452, %v448
    %v505 = vpack.c.b16 %v457, %v453
    %v506 = vpack.c.b16 %v458, %v454
    %v507 = vpack.c.b16 %v459, %v455
    %v508 = vpack.c.b16 %v460, %v456
    %v509 = vpack.c.b16 %v465, %v461
    %v510 = vpack.c.b16 %v466, %v462
    %v511 = vpack.c.b16 %v467, %v463
    %v512 = vpack.c.b16 %v468, %v464
    %v513 = vpack.c.b16 %v473, %v469
    %v514 = vpack.c.b16 %v474, %v470
    %v515 = vpack.c.b16 %v475, %v471
    %v516 = vpack.c.b16 %v476, %v472
    %v517 = vpack.c.b16 %v481, %v477
    %v518 = vpack.c.b16 %v482, %v478
    %v519 = vpack.c.b16 %v483, %v479
    %v520 = vpack.c.b16 %v484, %v480
    %v521 = vpack.c.b16 %v489, %v485
    %v522 = vpack.c.b16 %v490, %v486
    %v523 = vpack.c.b16 %v491, %v487
    %v524 = vpack.c.b16 %v492, %v488
    %557 = vmatprep.subr.bf16.mxu0 %v494
    %558 = vmatpush1.bf16.msra.mxu0 %v493
    %559 = vmatprep.subr.bf16.mxu0 %v498
    %560 = vmatpush1.bf16.msra.mxu0 %v497
    %561 = vmatprep.subr.bf16.mxu0 %v502
    %562 = vmatpush1.bf16.msra.mxu0 %v501
    %563 = vmatprep.subr.bf16.mxu0 %v506
    %564 = vmatpush1.bf16.msra.mxu0 %v505
    %565 = vmatprep.subr.bf16.mxu0 %v510
    %566 = vmatpush1.bf16.msra.mxu0 %v509
    %567 = vmatprep.subr.bf16.mxu0 %v514
    %568 = vmatpush1.bf16.msra.mxu0 %v513
    %569 = vmatprep.subr.bf16.mxu0 %v518
    %570 = vmatpush1.bf16.msra.mxu0 %v517
    %571 = vmatprep.subr.bf16.mxu0 %v522
    %572 = vmatpush1.bf16.msra.mxu0 %v521
    %573 = vmatprep.subr.bf16.mxu0 0
    %574 = vmatpush1.bf16.msra.mxu0 0
    %575 = vmatprep.subr.bf16.mxu0 0
    %576 = vmatpush1.bf16.msra.mxu0 0
    %577 = vmatprep.subr.bf16.mxu0 0
    %578 = vmatpush1.bf16.msra.mxu0 0
    %579 = vmatprep.subr.bf16.mxu0 0
    %580 = vmatpush1.bf16.msra.mxu0 0
    %581 = vmatprep.subr.bf16.mxu0 0
    %582 = vmatpush1.bf16.msra.mxu0 0
    %583 = vmatprep.subr.bf16.mxu0 0
    %584 = vmatpush1.bf16.msra.mxu0 0
    %585 = vmatprep.subr.bf16.mxu0 0
    %586 = vmatpush1.bf16.msra.mxu0 0
    %587 = vmatprep.subr.bf16.mxu0 0
    %588 = vmatpush1.bf16.msra.mxu0 0
    %589 = vmatprep.mubr.bf16.mxu0 0
    %590 = vmatmul.mubr.bf16.gmra.mrb[0].mxu0 %v364
    %v591 = vpop.f32.mrb[0].mxu0
    %v592 = vadd.f32 0.0, %v591
    %v593 = vpop.f32.mrb[0].mxu0
    %v594 = vadd.f32 0.0, %v593
    %v595 = vpop.f32.mrb[0].mxu0
    %v596 = vpop.f32.mrb[0].mxu0
    %597 = vdwg.mxu0
    %598 = vmatprep.subr.bf16.mxu0 %v496
    %599 = vmatpush1.bf16.msra.mxu0 %v495
    %600 = vmatprep.subr.bf16.mxu0 %v500
    %601 = vmatpush1.bf16.msra.mxu0 %v499
    %602 = vmatprep.subr.bf16.mxu0 %v504
    %603 = vmatpush1.bf16.msra.mxu0 %v503
    %604 = vmatprep.subr.bf16.mxu0 %v508
    %605 = vmatpush1.bf16.msra.mxu0 %v507
    %606 = vmatprep.subr.bf16.mxu0 %v512
    %607 = vmatpush1.bf16.msra.mxu0 %v511
    %608 = vmatprep.subr.bf16.mxu0 %v516
    %609 = vmatpush1.bf16.msra.mxu0 %v515
    %610 = vmatprep.subr.bf16.mxu0 %v520
    %611 = vmatpush1.bf16.msra.mxu0 %v519
    %612 = vmatprep.subr.bf16.mxu0 %v524
    %613 = vmatpush1.bf16.msra.mxu0 %v523
    %614 = vmatprep.subr.bf16.mxu0 0
    %615 = vmatpush1.bf16.msra.mxu0 0
    %616 = vmatprep.subr.bf16.mxu0 0
    %617 = vmatpush1.bf16.msra.mxu0 0
    %618 = vmatprep.subr.bf16.mxu0 0
    %619 = vmatpush1.bf16.msra.mxu0 0
    %620 = vmatprep.subr.bf16.mxu0 0
    %621 = vmatpush1.bf16.msra.mxu0 0
    %622 = vmatprep.subr.bf16.mxu0 0
    %623 = vmatpush1.bf16.msra.mxu0 0
    %624 = vmatprep.subr.bf16.mxu0 0
    %625 = vmatpush1.bf16.msra.mxu0 0
    %626 = vmatprep.subr.bf16.mxu0 0
    %627 = vmatpush1.bf16.msra.mxu0 0
    %628 = vmatprep.subr.bf16.mxu0 0
    %629 = vmatpush1.bf16.msra.mxu0 0
    %630 = vmatprep.mubr.bf16.mxu0 0
    %631 = vmatmul.mubr.bf16.gmra.mrb[0].mxu0 %v364
    %v632 = vpop.f32.mrb[0].mxu0
    %v633 = vadd.f32 0.0, %v632
    %v634 = vpop.f32.mrb[0].mxu0
    %v635 = vadd.f32 0.0, %v634
    %v636 = vpop.f32.mrb[0].mxu0
    %v637 = vpop.f32.mrb[0].mxu0
    %638 = vdwg.mxu0
    %v639 = vadd.f32 %v360, %v592
    %v640 = vadd.f32 %v361, %v594
    %v641 = vadd.f32 %v362, %v633
    %v642 = vadd.f32 %v363, %v635
    %v643 = vmul.f32 %v639, 0.5
    %v644 = vtanh.pop %v643
    %v645 = vadd.f32 %v644, 1.0
    %v646 = vmul.f32 %v645, 0.5
    %v647 = vmul.f32 %v640, 0.5
    %v648 = vtanh.pop %v647
    %v649 = vadd.f32 %v648, 1.0
    %v650 = vmul.f32 %v649, 0.5
    %v651 = vtanh.pop %v641
    %v652 = vmul.f32 %v642, 0.5
    %v653 = vtanh.pop %v652
    %v654 = vadd.f32 %v653, 1.0
    %v655 = vmul.f32 %v654, 0.5
    %v656 = vmul.f32 %v650, %v353
    %v657 = vmul.f32 %v646, %v651
    %v658 = vadd.f32 %v656, %v657
    %v659 = vtanh.pop %v658
    %v660 = vmul.f32 %v655, %v659
    %s661 = scalar_lea.vmem [#allocation9], 8
    %662 = vst [vmem:[%s661] sm:$0xff] %v660
    %s663 = scalar_lea.vmem [#allocation4], 32
    %v664 = vld [vmem:[%s663] sm:$0xff]
    %v665 = vld [vmem:[%s663 + $0x8] sm:$0xff]
    %v666 = vunpack.c.l.bf16 %v664
    %v667 = vunpack.c.h.bf16 %v664
    %v668 = vunpack.c.l.bf16 %v665
    %v669 = vunpack.c.h.bf16 %v665
    %v670 = vpack.c.bf16 %v660, %v660
    %v671 = vld [vmem:[#allocation7] sm:$0xff]
    %v672 = vld [vmem:[#allocation7 + $0x8] sm:$0xff]
    %v673 = vld [vmem:[#allocation7 + $0x10] sm:$0xff]
    %v674 = vld [vmem:[#allocation7 + $0x18] sm:$0xff]
    %v675 = vld [vmem:[#allocation7 + $0x20] sm:$0xff]
    %v676 = vld [vmem:[#allocation7 + $0x28] sm:$0xff]
    %v677 = vld [vmem:[#allocation7 + $0x30] sm:$0xff]
    %v678 = vld [vmem:[#allocation7 + $0x38] sm:$0xff]
    %v679 = vld [vmem:[#allocation7 + $0x40] sm:$0xff]
    %v680 = vld [vmem:[#allocation7 + $0x48] sm:$0xff]
    %v681 = vld [vmem:[#allocation7 + $0x50] sm:$0xff]
    %v682 = vld [vmem:[#allocation7 + $0x58] sm:$0xff]
    %v683 = vld [vmem:[#allocation7 + $0x60] sm:$0xff]
    %v684 = vld [vmem:[#allocation7 + $0x68] sm:$0xff]
    %v685 = vld [vmem:[#allocation7 + $0x70] sm:$0xff]
    %v686 = vld [vmem:[#allocation7 + $0x78] sm:$0xff]
    %v687 = vld [vmem:[#allocation7 + $0x80] sm:$0xff]
    %v688 = vld [vmem:[#allocation7 + $0x88] sm:$0xff]
    %v689 = vld [vmem:[#allocation7 + $0x90] sm:$0xff]
    %v690 = vld [vmem:[#allocation7 + $0x98] sm:$0xff]
    %v691 = vld [vmem:[#allocation7 + $0xa0] sm:$0xff]
    %v692 = vld [vmem:[#allocation7 + $0xa8] sm:$0xff]
    %v693 = vld [vmem:[#allocation7 + $0xb0] sm:$0xff]
    %v694 = vld [vmem:[#allocation7 + $0xb8] sm:$0xff]
    %v695 = vld [vmem:[#allocation7 + $0xc0] sm:$0xff]
    %v696 = vld [vmem:[#allocation7 + $0xc8] sm:$0xff]
    %v697 = vld [vmem:[#allocation7 + $0xd0] sm:$0xff]
    %v698 = vld [vmem:[#allocation7 + $0xd8] sm:$0xff]
    %v699 = vld [vmem:[#allocation7 + $0xe0] sm:$0xff]
    %v700 = vld [vmem:[#allocation7 + $0xe8] sm:$0xff]
    %v701 = vld [vmem:[#allocation7 + $0xf0] sm:$0xff]
    %v702 = vld [vmem:[#allocation7 + $0xf8] sm:$0xff]
    %v735 = vunpack.c.l.b16 %v671
    %v736 = vunpack.c.h.b16 %v671
    %v737 = vunpack.c.l.b16 %v672
    %v738 = vunpack.c.h.b16 %v672
    %v739 = vunpack.c.l.b16 %v673
    %v740 = vunpack.c.h.b16 %v673
    %v741 = vunpack.c.l.b16 %v674
    %v742 = vunpack.c.h.b16 %v674
    %v743 = vunpack.c.l.b16 %v675
    %v744 = vunpack.c.h.b16 %v675
    %v745 = vunpack.c.l.b16 %v676
    %v746 = vunpack.c.h.b16 %v676
    %v747 = vunpack.c.l.b16 %v677
    %v748 = vunpack.c.h.b16 %v677
    %v749 = vunpack.c.l.b16 %v678
    %v750 = vunpack.c.h.b16 %v678
    %v751 = vunpack.c.l.b16 %v679
    %v752 = vunpack.c.h.b16 %v679
    %v753 = vunpack.c.l.b16 %v680
    %v754 = vunpack.c.h.b16 %v680
    %v755 = vunpack.c.l.b16 %v681
    %v756 = vunpack.c.h.b16 %v681
    %v757 = vunpack.c.l.b16 %v682
    %v758 = vunpack.c.h.b16 %v682
    %v759 = vunpack.c.l.b16 %v683
    %v760 = vunpack.c.h.b16 %v683
    %v761 = vunpack.c.l.b16 %v684
    %v762 = vunpack.c.h.b16 %v684
    %v763 = vunpack.c.l.b16 %v685
    %v764 = vunpack.c.h.b16 %v685
    %v765 = vunpack.c.l.b16 %v686
    %v766 = vunpack.c.h.b16 %v686
    %v767 = vunpack.c.l.b16 %v687
    %v768 = vunpack.c.h.b16 %v687
    %v769 = vunpack.c.l.b16 %v688
    %v770 = vunpack.c.h.b16 %v688
    %v771 = vunpack.c.l.b16 %v689
    %v772 = vunpack.c.h.b16 %v689
    %v773 = vunpack.c.l.b16 %v690
    %v774 = vunpack.c.h.b16 %v690
    %v775 = vunpack.c.l.b16 %v691
    %v776 = vunpack.c.h.b16 %v691
    %v777 = vunpack.c.l.b16 %v692
    %v778 = vunpack.c.h.b16 %v692
    %v779 = vunpack.c.l.b16 %v693
    %v780 = vunpack.c.h.b16 %v693
    %v781 = vunpack.c.l.b16 %v694
    %v782 = vunpack.c.h.b16 %v694
    %v783 = vunpack.c.l.b16 %v695
    %v784 = vunpack.c.h.b16 %v695
    %v785 = vunpack.c.l.b16 %v696
    %v786 = vunpack.c.h.b16 %v696
    %v787 = vunpack.c.l.b16 %v697
    %v788 = vunpack.c.h.b16 %v697
    %v789 = vunpack.c.l.b16 %v698
    %v790 = vunpack.c.h.b16 %v698
    %v791 = vunpack.c.l.b16 %v699
    %v792 = vunpack.c.h.b16 %v699
    %v793 = vunpack.c.l.b16 %v700
    %v794 = vunpack.c.h.b16 %v700
    %v795 = vunpack.c.l.b16 %v701
    %v796 = vunpack.c.h.b16 %v701
    %v797 = vunpack.c.l.b16 %v702
    %v798 = vunpack.c.h.b16 %v702
    %v799 = vpack.c.b16 %v739, %v735
    %v800 = vpack.c.b16 %v740, %v736
    %v801 = vpack.c.b16 %v741, %v737
    %v802 = vpack.c.b16 %v742, %v738
    %v803 = vpack.c.b16 %v747, %v743
    %v804 = vpack.c.b16 %v748, %v744
    %v805 = vpack.c.b16 %v749, %v745
    %v806 = vpack.c.b16 %v750, %v746
    %v807 = vpack.c.b16 %v755, %v751
    %v808 = vpack.c.b16 %v756, %v752
    %v809 = vpack.c.b16 %v757, %v753
    %v810 = vpack.c.b16 %v758, %v754
    %v811 = vpack.c.b16 %v763, %v759
    %v812 = vpack.c.b16 %v764, %v760
    %v813 = vpack.c.b16 %v765, %v761
    %v814 = vpack.c.b16 %v766, %v762
    %v815 = vpack.c.b16 %v771, %v767
    %v816 = vpack.c.b16 %v772, %v768
    %v817 = vpack.c.b16 %v773, %v769
    %v818 = vpack.c.b16 %v774, %v770
    %v819 = vpack.c.b16 %v779, %v775
    %v820 = vpack.c.b16 %v780, %v776
    %v821 = vpack.c.b16 %v781, %v777
    %v822 = vpack.c.b16 %v782, %v778
    %v823 = vpack.c.b16 %v787, %v783
    %v824 = vpack.c.b16 %v788, %v784
    %v825 = vpack.c.b16 %v789, %v785
    %v826 = vpack.c.b16 %v790, %v786
    %v827 = vpack.c.b16 %v795, %v791
    %v828 = vpack.c.b16 %v796, %v792
    %v829 = vpack.c.b16 %v797, %v793
    %v830 = vpack.c.b16 %v798, %v794
    %863 = vmatprep.subr.bf16.mxu0 %v800
    %864 = vmatpush1.bf16.msra.mxu0 %v799
    %865 = vmatprep.subr.bf16.mxu0 %v804
    %866 = vmatpush1.bf16.msra.mxu0 %v803
    %867 = vmatprep.subr.bf16.mxu0 %v808
    %868 = vmatpush1.bf16.msra.mxu0 %v807
    %869 = vmatprep.subr.bf16.mxu0 %v812
    %870 = vmatpush1.bf16.msra.mxu0 %v811
    %871 = vmatprep.subr.bf16.mxu0 %v816
    %872 = vmatpush1.bf16.msra.mxu0 %v815
    %873 = vmatprep.subr.bf16.mxu0 %v820
    %874 = vmatpush1.bf16.msra.mxu0 %v819
    %875 = vmatprep.subr.bf16.mxu0 %v824
    %876 = vmatpush1.bf16.msra.mxu0 %v823
    %877 = vmatprep.subr.bf16.mxu0 %v828
    %878 = vmatpush1.bf16.msra.mxu0 %v827
    %879 = vmatprep.subr.bf16.mxu0 0
    %880 = vmatpush1.bf16.msra.mxu0 0
    %881 = vmatprep.subr.bf16.mxu0 0
    %882 = vmatpush1.bf16.msra.mxu0 0
    %883 = vmatprep.subr.bf16.mxu0 0
    %884 = vmatpush1.bf16.msra.mxu0 0
    %885 = vmatprep.subr.bf16.mxu0 0
    %886 = vmatpush1.bf16.msra.mxu0 0
    %887 = vmatprep.subr.bf16.mxu0 0
    %888 = vmatpush1.bf16.msra.mxu0 0
    %889 = vmatprep.subr.bf16.mxu0 0
    %890 = vmatpush1.bf16.msra.mxu0 0
    %891 = vmatprep.subr.bf16.mxu0 0
    %892 = vmatpush1.bf16.msra.mxu0 0
    %893 = vmatprep.subr.bf16.mxu0 0
    %894 = vmatpush1.bf16.msra.mxu0 0
    %895 = vmatprep.mubr.bf16.mxu0 0
    %896 = vmatmul.mubr.bf16.gmra.mrb[0].mxu0 %v670
    %v897 = vpop.f32.mrb[0].mxu0
    %v898 = vadd.f32 0.0, %v897
    %v899 = vpop.f32.mrb[0].mxu0
    %v900 = vadd.f32 0.0, %v899
    %v901 = vpop.f32.mrb[0].mxu0
    %v902 = vpop.f32.mrb[0].mxu0
    %903 = vdwg.mxu0
    %904 = vmatprep.subr.bf16.mxu0 %v802
    %905 = vmatpush1.bf16.msra.mxu0 %v801
    %906 = vmatprep.subr.bf16.mxu0 %v806
    %907 = vmatpush1.bf16.msra.mxu0 %v805
    %908 = vmatprep.subr.bf16.mxu0 %v810
    %909 = vmatpush1.bf16.msra.mxu0 %v809
    %910 = vmatprep.subr.bf16.mxu0 %v814
    %911 = vmatpush1.bf16.msra.mxu0 %v813
    %912 = vmatprep.subr.bf16.mxu0 %v818
    %913 = vmatpush1.bf16.msra.mxu0 %v817
    %914 = vmatprep.subr.bf16.mxu0 %v822
    %915 = vmatpush1.bf16.msra.mxu0 %v821
    %916 = vmatprep.subr.bf16.mxu0 %v826
    %917 = vmatpush1.bf16.msra.mxu0 %v825
    %918 = vmatprep.subr.bf16.mxu0 %v830
    %919 = vmatpush1.bf16.msra.mxu0 %v829
    %920 = vmatprep.subr.bf16.mxu0 0
    %921 = vmatpush1.bf16.msra.mxu0 0
    %922 = vmatprep.subr.bf16.mxu0 0
    %923 = vmatpush1.bf16.msra.mxu0 0
    %924 = vmatprep.subr.bf16.mxu0 0
    %925 = vmatpush1.bf16.msra.mxu0 0
    %926 = vmatprep.subr.bf16.mxu0 0
    %927 = vmatpush1.bf16.msra.mxu0 0
    %928 = vmatprep.subr.bf16.mxu0 0
    %929 = vmatpush1.bf16.msra.mxu0 0
    %930 = vmatprep.subr.bf16.mxu0 0
    %931 = vmatpush1.bf16.msra.mxu0 0
    %932 = vmatprep.subr.bf16.mxu0 0
    %933 = vmatpush1.bf16.msra.mxu0 0
    %934 = vmatprep.subr.bf16.mxu0 0
    %935 = vmatpush1.bf16.msra.mxu0 0
    %936 = vmatprep.mubr.bf16.mxu0 0
    %937 = vmatmul.mubr.bf16.gmra.mrb[0].mxu0 %v670
    %v938 = vpop.f32.mrb[0].mxu0
    %v939 = vadd.f32 0.0, %v938
    %v940 = vpop.f32.mrb[0].mxu0
    %v941 = vadd.f32 0.0, %v940
    %v942 = vpop.f32.mrb[0].mxu0
    %v943 = vpop.f32.mrb[0].mxu0
    %944 = vdwg.mxu0
    %v945 = vadd.f32 %v666, %v898
    %v946 = vadd.f32 %v667, %v900
    %v947 = vadd.f32 %v668, %v939
    %v948 = vadd.f32 %v669, %v941
    %v949 = vmul.f32 %v945, 0.5
    %v950 = vtanh.pop %v949
    %v951 = vadd.f32 %v950, 1.0
    %v952 = vmul.f32 %v951, 0.5
    %v953 = vmul.f32 %v946, 0.5
    %v954 = vtanh.pop %v953
    %v955 = vadd.f32 %v954, 1.0
    %v956 = vmul.f32 %v955, 0.5
    %v957 = vtanh.pop %v947
    %v958 = vmul.f32 %v948, 0.5
    %v959 = vtanh.pop %v958
    %v960 = vadd.f32 %v959, 1.0
    %v961 = vmul.f32 %v960, 0.5
    %v962 = vmul.f32 %v956, %v658
    %v963 = vmul.f32 %v952, %v957
    %v964 = vadd.f32 %v962, %v963
    %v965 = vtanh.pop %v964
    %v966 = vmul.f32 %v961, %v965
    %s967 = scalar_lea.vmem [#allocation9], 16
    %968 = vst [vmem:[%s967] sm:$0xff] %v966
    %s969 = scalar_lea.vmem [#allocation4], 48
    %v970 = vld [vmem:[%s969] sm:$0xff]
    %v971 = vld [vmem:[%s969 + $0x8] sm:$0xff]
    %v972 = vunpack.c.l.bf16 %v970
    %v973 = vunpack.c.h.bf16 %v970
    %v974 = vunpack.c.l.bf16 %v971
    %v975 = vunpack.c.h.bf16 %v971
    %v976 = vpack.c.bf16 %v966, %v966
    %v977 = vld [vmem:[#allocation7] sm:$0xff]
    %v978 = vld [vmem:[#allocation7 + $0x8] sm:$0xff]
    %v979 = vld [vmem:[#allocation7 + $0x10] sm:$0xff]
    %v980 = vld [vmem:[#allocation7 + $0x18] sm:$0xff]
    %v981 = vld [vmem:[#allocation7 + $0x20] sm:$0xff]
    %v982 = vld [vmem:[#allocation7 + $0x28] sm:$0xff]
    %v983 = vld [vmem:[#allocation7 + $0x30] sm:$0xff]
    %v984 = vld [vmem:[#allocation7 + $0x38] sm:$0xff]
    %v985 = vld [vmem:[#allocation7 + $0x40] sm:$0xff]
    %v986 = vld [vmem:[#allocation7 + $0x48] sm:$0xff]
    %v987 = vld [vmem:[#allocation7 + $0x50] sm:$0xff]
    %v988 = vld [vmem:[#allocation7 + $0x58] sm:$0xff]
    %v989 = vld [vmem:[#allocation7 + $0x60] sm:$0xff]
    %v990 = vld [vmem:[#allocation7 + $0x68] sm:$0xff]
    %v991 = vld [vmem:[#allocation7 + $0x70] sm:$0xff]
    %v992 = vld [vmem:[#allocation7 + $0x78] sm:$0xff]
    %v993 = vld [vmem:[#allocation7 + $0x80] sm:$0xff]
    %v994 = vld [vmem:[#allocation7 + $0x88] sm:$0xff]
    %v995 = vld [vmem:[#allocation7 + $0x90] sm:$0xff]
    %v996 = vld [vmem:[#allocation7 + $0x98] sm:$0xff]
    %v997 = vld [vmem:[#allocation7 + $0xa0] sm:$0xff]
    %v998 = vld [vmem:[#allocation7 + $0xa8] sm:$0xff]
    %v999 = vld [vmem:[#allocation7 + $0xb0] sm:$0xff]
    %v1000 = vld [vmem:[#allocation7 + $0xb8] sm:$0xff]
    %v1001 = vld [vmem:[#allocation7 + $0xc0] sm:$0xff]
    %v1002 = vld [vmem:[#allocation7 + $0xc8] sm:$0xff]
    %v1003 = vld [vmem:[#allocation7 + $0xd0] sm:$0xff]
    %v1004 = vld [vmem:[#allocation7 + $0xd8] sm:$0xff]
    %v1005 = vld [vmem:[#allocation7 + $0xe0] sm:$0xff]
    %v1006 = vld [vmem:[#allocation7 + $0xe8] sm:$0xff]
    %v1007 = vld [vmem:[#allocation7 + $0xf0] sm:$0xff]
    %v1008 = vld [vmem:[#allocation7 + $0xf8] sm:$0xff]
    %v1041 = vunpack.c.l.b16 %v977
    %v1042 = vunpack.c.h.b16 %v977
    %v1043 = vunpack.c.l.b16 %v978
    %v1044 = vunpack.c.h.b16 %v978
    %v1045 = vunpack.c.l.b16 %v979
    %v1046 = vunpack.c.h.b16 %v979
    %v1047 = vunpack.c.l.b16 %v980
    %v1048 = vunpack.c.h.b16 %v980
    %v1049 = vunpack.c.l.b16 %v981
    %v1050 = vunpack.c.h.b16 %v981
    %v1051 = vunpack.c.l.b16 %v982
    %v1052 = vunpack.c.h.b16 %v982
    %v1053 = vunpack.c.l.b16 %v983
    %v1054 = vunpack.c.h.b16 %v983
    %v1055 = vunpack.c.l.b16 %v984
    %v1056 = vunpack.c.h.b16 %v984
    %v1057 = vunpack.c.l.b16 %v985
    %v1058 = vunpack.c.h.b16 %v985
    %v1059 = vunpack.c.l.b16 %v986
    %v1060 = vunpack.c.h.b16 %v986
    %v1061 = vunpack.c.l.b16 %v987
    %v1062 = vunpack.c.h.b16 %v987
    %v1063 = vunpack.c.l.b16 %v988
    %v1064 = vunpack.c.h.b16 %v988
    %v1065 = vunpack.c.l.b16 %v989
    %v1066 = vunpack.c.h.b16 %v989
    %v1067 = vunpack.c.l.b16 %v990
    %v1068 = vunpack.c.h.b16 %v990
    %v1069 = vunpack.c.l.b16 %v991
    %v1070 = vunpack.c.h.b16 %v991
    %v1071 = vunpack.c.l.b16 %v992
    %v1072 = vunpack.c.h.b16 %v992
    %v1073 = vunpack.c.l.b16 %v993
    %v1074 = vunpack.c.h.b16 %v993
    %v1075 = vunpack.c.l.b16 %v994
    %v1076 = vunpack.c.h.b16 %v994
    %v1077 = vunpack.c.l.b16 %v995
    %v1078 = vunpack.c.h.b16 %v995
    %v1079 = vunpack.c.l.b16 %v996
    %v1080 = vunpack.c.h.b16 %v996
    %v1081 = vunpack.c.l.b16 %v997
    %v1082 = vunpack.c.h.b16 %v997
    %v1083 = vunpack.c.l.b16 %v998
    %v1084 = vunpack.c.h.b16 %v998
    %v1085 = vunpack.c.l.b16 %v999
    %v1086 = vunpack.c.h.b16 %v999
    %v1087 = vunpack.c.l.b16 %v1000
    %v1088 = vunpack.c.h.b16 %v1000
    %v1089 = vunpack.c.l.b16 %v1001
    %v1090 = vunpack.c.h.b16 %v1001
    %v1091 = vunpack.c.l.b16 %v1002
    %v1092 = vunpack.c.h.b16 %v1002
    %v1093 = vunpack.c.l.b16 %v1003
    %v1094 = vunpack.c.h.b16 %v1003
    %v1095 = vunpack.c.l.b16 %v1004
    %v1096 = vunpack.c.h.b16 %v1004
    %v1097 = vunpack.c.l.b16 %v1005
    %v1098 = vunpack.c.h.b16 %v1005
    %v1099 = vunpack.c.l.b16 %v1006
    %v1100 = vunpack.c.h.b16 %v1006
    %v1101 = vunpack.c.l.b16 %v1007
    %v1102 = vunpack.c.h.b16 %v1007
    %v1103 = vunpack.c.l.b16 %v1008
    %v1104 = vunpack.c.h.b16 %v1008
    %v1105 = vpack.c.b16 %v1045, %v1041
    %v1106 = vpack.c.b16 %v1046, %v1042
    %v1107 = vpack.c.b16 %v1047, %v1043
    %v1108 = vpack.c.b16 %v1048, %v1044
    %v1109 = vpack.c.b16 %v1053, %v1049
    %v1110 = vpack.c.b16 %v1054, %v1050
    %v1111 = vpack.c.b16 %v1055, %v1051
    %v1112 = vpack.c.b16 %v1056, %v1052
    %v1113 = vpack.c.b16 %v1061, %v1057
    %v1114 = vpack.c.b16 %v1062, %v1058
    %v1115 = vpack.c.b16 %v1063, %v1059
    %v1116 = vpack.c.b16 %v1064, %v1060
    %v1117 = vpack.c.b16 %v1069, %v1065
    %v1118 = vpack.c.b16 %v1070, %v1066
    %v1119 = vpack.c.b16 %v1071, %v1067
    %v1120 = vpack.c.b16 %v1072, %v1068
    %v1121 = vpack.c.b16 %v1077, %v1073
    %v1122 = vpack.c.b16 %v1078, %v1074
    %v1123 = vpack.c.b16 %v1079, %v1075
    %v1124 = vpack.c.b16 %v1080, %v1076
    %v1125 = vpack.c.b16 %v1085, %v1081
    %v1126 = vpack.c.b16 %v1086, %v1082
    %v1127 = vpack.c.b16 %v1087, %v1083
    %v1128 = vpack.c.b16 %v1088, %v1084
    %v1129 = vpack.c.b16 %v1093, %v1089
    %v1130 = vpack.c.b16 %v1094, %v1090
    %v1131 = vpack.c.b16 %v1095, %v1091
    %v1132 = vpack.c.b16 %v1096, %v1092
    %v1133 = vpack.c.b16 %v1101, %v1097
    %v1134 = vpack.c.b16 %v1102, %v1098
    %v1135 = vpack.c.b16 %v1103, %v1099
    %v1136 = vpack.c.b16 %v1104, %v1100
    %1169 = vmatprep.subr.bf16.mxu0 %v1106
    %1170 = vmatpush1.bf16.msra.mxu0 %v1105
    %1171 = vmatprep.subr.bf16.mxu0 %v1110
    %1172 = vmatpush1.bf16.msra.mxu0 %v1109
    %1173 = vmatprep.subr.bf16.mxu0 %v1114
    %1174 = vmatpush1.bf16.msra.mxu0 %v1113
    %1175 = vmatprep.subr.bf16.mxu0 %v1118
    %1176 = vmatpush1.bf16.msra.mxu0 %v1117
    %1177 = vmatprep.subr.bf16.mxu0 %v1122
    %1178 = vmatpush1.bf16.msra.mxu0 %v1121
    %1179 = vmatprep.subr.bf16.mxu0 %v1126
    %1180 = vmatpush1.bf16.msra.mxu0 %v1125
    %1181 = vmatprep.subr.bf16.mxu0 %v1130
    %1182 = vmatpush1.bf16.msra.mxu0 %v1129
    %1183 = vmatprep.subr.bf16.mxu0 %v1134
    %1184 = vmatpush1.bf16.msra.mxu0 %v1133
    %1185 = vmatprep.subr.bf16.mxu0 0
    %1186 = vmatpush1.bf16.msra.mxu0 0
    %1187 = vmatprep.subr.bf16.mxu0 0
    %1188 = vmatpush1.bf16.msra.mxu0 0
    %1189 = vmatprep.subr.bf16.mxu0 0
    %1190 = vmatpush1.bf16.msra.mxu0 0
    %1191 = vmatprep.subr.bf16.mxu0 0
    %1192 = vmatpush1.bf16.msra.mxu0 0
    %1193 = vmatprep.subr.bf16.mxu0 0
    %1194 = vmatpush1.bf16.msra.mxu0 0
    %1195 = vmatprep.subr.bf16.mxu0 0
    %1196 = vmatpush1.bf16.msra.mxu0 0
    %1197 = vmatprep.subr.bf16.mxu0 0
    %1198 = vmatpush1.bf16.msra.mxu0 0
    %1199 = vmatprep.subr.bf16.mxu0 0
    %1200 = vmatpush1.bf16.msra.mxu0 0
    %1201 = vmatprep.mubr.bf16.mxu0 0
    %1202 = vmatmul.mubr.bf16.gmra.mrb[0].mxu0 %v976
    %v1203 = vpop.f32.mrb[0].mxu0
    %v1204 = vadd.f32 0.0, %v1203
    %v1205 = vpop.f32.mrb[0].mxu0
    %v1206 = vadd.f32 0.0, %v1205
    %v1207 = vpop.f32.mrb[0].mxu0
    %v1208 = vpop.f32.mrb[0].mxu0
    %1209 = vdwg.mxu0
    %1210 = vmatprep.subr.bf16.mxu0 %v1108
    %1211 = vmatpush1.bf16.msra.mxu0 %v1107
    %1212 = vmatprep.subr.bf16.mxu0 %v1112
    %1213 = vmatpush1.bf16.msra.mxu0 %v1111
    %1214 = vmatprep.subr.bf16.mxu0 %v1116
    %1215 = vmatpush1.bf16.msra.mxu0 %v1115
    %1216 = vmatprep.subr.bf16.mxu0 %v1120
    %1217 = vmatpush1.bf16.msra.mxu0 %v1119
    %1218 = vmatprep.subr.bf16.mxu0 %v1124
    %1219 = vmatpush1.bf16.msra.mxu0 %v1123
    %1220 = vmatprep.subr.bf16.mxu0 %v1128
    %1221 = vmatpush1.bf16.msra.mxu0 %v1127
    %1222 = vmatprep.subr.bf16.mxu0 %v1132
    %1223 = vmatpush1.bf16.msra.mxu0 %v1131
    %1224 = vmatprep.subr.bf16.mxu0 %v1136
    %1225 = vmatpush1.bf16.msra.mxu0 %v1135
    %1226 = vmatprep.subr.bf16.mxu0 0
    %1227 = vmatpush1.bf16.msra.mxu0 0
    %1228 = vmatprep.subr.bf16.mxu0 0
    %1229 = vmatpush1.bf16.msra.mxu0 0
    %1230 = vmatprep.subr.bf16.mxu0 0
    %1231 = vmatpush1.bf16.msra.mxu0 0
    %1232 = vmatprep.subr.bf16.mxu0 0
    %1233 = vmatpush1.bf16.msra.mxu0 0
    %1234 = vmatprep.subr.bf16.mxu0 0
    %1235 = vmatpush1.bf16.msra.mxu0 0
    %1236 = vmatprep.subr.bf16.mxu0 0
    %1237 = vmatpush1.bf16.msra.mxu0 0
    %1238 = vmatprep.subr.bf16.mxu0 0
    %1239 = vmatpush1.bf16.msra.mxu0 0
    %1240 = vmatprep.subr.bf16.mxu0 0
    %1241 = vmatpush1.bf16.msra.mxu0 0
    %1242 = vmatprep.mubr.bf16.mxu0 0
    %1243 = vmatmul.mubr.bf16.gmra.mrb[0].mxu0 %v976
    %v1244 = vpop.f32.mrb[0].mxu0
    %v1245 = vadd.f32 0.0, %v1244
    %v1246 = vpop.f32.mrb[0].mxu0
    %v1247 = vadd.f32 0.0, %v1246
    %v1248 = vpop.f32.mrb[0].mxu0
    %v1249 = vpop.f32.mrb[0].mxu0
    %1250 = vdwg.mxu0
    %v1251 = vadd.f32 %v972, %v1204
    %v1252 = vadd.f32 %v973, %v1206
    %v1253 = vadd.f32 %v974, %v1245
    %v1254 = vadd.f32 %v975, %v1247
    %v1255 = vmul.f32 %v1251, 0.5
    %v1256 = vtanh.pop %v1255
    %v1257 = vadd.f32 %v1256, 1.0
    %v1258 = vmul.f32 %v1257, 0.5
    %v1259 = vmul.f32 %v1252, 0.5
    %v1260 = vtanh.pop %v1259
    %v1261 = vadd.f32 %v1260, 1.0
    %v1262 = vmul.f32 %v1261, 0.5
    %v1263 = vtanh.pop %v1253
    %v1264 = vmul.f32 %v1254, 0.5
    %v1265 = vtanh.pop %v1264
    %v1266 = vadd.f32 %v1265, 1.0
    %v1267 = vmul.f32 %v1266, 0.5
    %v1268 = vmul.f32 %v1262, %v964
    %v1269 = vmul.f32 %v1258, %v1263
    %v1270 = vadd.f32 %v1268, %v1269
    %v1271 = vtanh.pop %v1270
    %v1272 = vmul.f32 %v1267, %v1271
    %s1273 = scalar_lea.vmem [#allocation9], 24
    %1274 = vst [vmem:[%s1273] sm:$0xff] %v1272
    %s1275 = scalar_lea.vmem [#allocation4], 64
    %v1276 = vld [vmem:[%s1275] sm:$0xff]
    %v1277 = vld [vmem:[%s1275 + $0x8] sm:$0xff]
    %v1278 = vunpack.c.l.bf16 %v1276
    %v1279 = vunpack.c.h.bf16 %v1276
    %v1280 = vunpack.c.l.bf16 %v1277
    %v1281 = vunpack.c.h.bf16 %v1277
    %v1282 = vpack.c.bf16 %v1272, %v1272
    %v1283 = vld [vmem:[#allocation7] sm:$0xff]
    %v1284 = vld [vmem:[#allocation7 + $0x8] sm:$0xff]
    %v1285 = vld [vmem:[#allocation7 + $0x10] sm:$0xff]
    %v1286 = vld [vmem:[#allocation7 + $0x18] sm:$0xff]
    %v1287 = vld [vmem:[#allocation7 + $0x20] sm:$0xff]
    %v1288 = vld [vmem:[#allocation7 + $0x28] sm:$0xff]
    %v1289 = vld [vmem:[#allocation7 + $0x30] sm:$0xff]
    %v1290 = vld [vmem:[#allocation7 + $0x38] sm:$0xff]
    %v1291 = vld [vmem:[#allocation7 + $0x40] sm:$0xff]
    %v1292 = vld [vmem:[#allocation7 + $0x48] sm:$0xff]
    %v1293 = vld [vmem:[#allocation7 + $0x50] sm:$0xff]
    %v1294 = vld [vmem:[#allocation7 + $0x58] sm:$0xff]
    %v1295 = vld [vmem:[#allocation7 + $0x60] sm:$0xff]
    %v1296 = vld [vmem:[#allocation7 + $0x68] sm:$0xff]
    %v1297 = vld [vmem:[#allocation7 + $0x70] sm:$0xff]
    %v1298 = vld [vmem:[#allocation7 + $0x78] sm:$0xff]
    %v1299 = vld [vmem:[#allocation7 + $0x80] sm:$0xff]
    %v1300 = vld [vmem:[#allocation7 + $0x88] sm:$0xff]
    %v1301 = vld [vmem:[#allocation7 + $0x90] sm:$0xff]
    %v1302 = vld [vmem:[#allocation7 + $0x98] sm:$0xff]
    %v1303 = vld [vmem:[#allocation7 + $0xa0] sm:$0xff]
    %v1304 = vld [vmem:[#allocation7 + $0xa8] sm:$0xff]
    %v1305 = vld [vmem:[#allocation7 + $0xb0] sm:$0xff]
    %v1306 = vld [vmem:[#allocation7 + $0xb8] sm:$0xff]
    %v1307 = vld [vmem:[#allocation7 + $0xc0] sm:$0xff]
    %v1308 = vld [vmem:[#allocation7 + $0xc8] sm:$0xff]
    %v1309 = vld [vmem:[#allocation7 + $0xd0] sm:$0xff]
    %v1310 = vld [vmem:[#allocation7 + $0xd8] sm:$0xff]
    %v1311 = vld [vmem:[#allocation7 + $0xe0] sm:$0xff]
    %v1312 = vld [vmem:[#allocation7 + $0xe8] sm:$0xff]
    %v1313 = vld [vmem:[#allocation7 + $0xf0] sm:$0xff]
    %v1314 = vld [vmem:[#allocation7 + $0xf8] sm:$0xff]
    %v1347 = vunpack.c.l.b16 %v1283
    %v1348 = vunpack.c.h.b16 %v1283
    %v1349 = vunpack.c.l.b16 %v1284
    %v1350 = vunpack.c.h.b16 %v1284
    %v1351 = vunpack.c.l.b16 %v1285
    %v1352 = vunpack.c.h.b16 %v1285
    %v1353 = vunpack.c.l.b16 %v1286
    %v1354 = vunpack.c.h.b16 %v1286
    %v1355 = vunpack.c.l.b16 %v1287
    %v1356 = vunpack.c.h.b16 %v1287
    %v1357 = vunpack.c.l.b16 %v1288
    %v1358 = vunpack.c.h.b16 %v1288
    %v1359 = vunpack.c.l.b16 %v1289
    %v1360 = vunpack.c.h.b16 %v1289
    %v1361 = vunpack.c.l.b16 %v1290
    %v1362 = vunpack.c.h.b16 %v1290
    %v1363 = vunpack.c.l.b16 %v1291
    %v1364 = vunpack.c.h.b16 %v1291
    %v1365 = vunpack.c.l.b16 %v1292
    %v1366 = vunpack.c.h.b16 %v1292
    %v1367 = vunpack.c.l.b16 %v1293
    %v1368 = vunpack.c.h.b16 %v1293
    %v1369 = vunpack.c.l.b16 %v1294
    %v1370 = vunpack.c.h.b16 %v1294
    %v1371 = vunpack.c.l.b16 %v1295
    %v1372 = vunpack.c.h.b16 %v1295
    %v1373 = vunpack.c.l.b16 %v1296
    %v1374 = vunpack.c.h.b16 %v1296
    %v1375 = vunpack.c.l.b16 %v1297
    %v1376 = vunpack.c.h.b16 %v1297
    %v1377 = vunpack.c.l.b16 %v1298
    %v1378 = vunpack.c.h.b16 %v1298
    %v1379 = vunpack.c.l.b16 %v1299
    %v1380 = vunpack.c.h.b16 %v1299
    %v1381 = vunpack.c.l.b16 %v1300
    %v1382 = vunpack.c.h.b16 %v1300
    %v1383 = vunpack.c.l.b16 %v1301
    %v1384 = vunpack.c.h.b16 %v1301
    %v1385 = vunpack.c.l.b16 %v1302
    %v1386 = vunpack.c.h.b16 %v1302
    %v1387 = vunpack.c.l.b16 %v1303
    %v1388 = vunpack.c.h.b16 %v1303
    %v1389 = vunpack.c.l.b16 %v1304
    %v1390 = vunpack.c.h.b16 %v1304
    %v1391 = vunpack.c.l.b16 %v1305
    %v1392 = vunpack.c.h.b16 %v1305
    %v1393 = vunpack.c.l.b16 %v1306
    %v1394 = vunpack.c.h.b16 %v1306
    %v1395 = vunpack.c.l.b16 %v1307
    %v1396 = vunpack.c.h.b16 %v1307
    %v1397 = vunpack.c.l.b16 %v1308
    %v1398 = vunpack.c.h.b16 %v1308
    %v1399 = vunpack.c.l.b16 %v1309
    %v1400 = vunpack.c.h.b16 %v1309
    %v1401 = vunpack.c.l.b16 %v1310
    %v1402 = vunpack.c.h.b16 %v1310
    %v1403 = vunpack.c.l.b16 %v1311
    %v1404 = vunpack.c.h.b16 %v1311
    %v1405 = vunpack.c.l.b16 %v1312
    %v1406 = vunpack.c.h.b16 %v1312
    %v1407 = vunpack.c.l.b16 %v1313
    %v1408 = vunpack.c.h.b16 %v1313
    %v1409 = vunpack.c.l.b16 %v1314
    %v1410 = vunpack.c.h.b16 %v1314
    %v1411 = vpack.c.b16 %v1351, %v1347
    %v1412 = vpack.c.b16 %v1352, %v1348
    %v1413 = vpack.c.b16 %v1353, %v1349
    %v1414 = vpack.c.b16 %v1354, %v1350
    %v1415 = vpack.c.b16 %v1359, %v1355
    %v1416 = vpack.c.b16 %v1360, %v1356
    %v1417 = vpack.c.b16 %v1361, %v1357
    %v1418 = vpack.c.b16 %v1362, %v1358
    %v1419 = vpack.c.b16 %v1367, %v1363
    %v1420 = vpack.c.b16 %v1368, %v1364
    %v1421 = vpack.c.b16 %v1369, %v1365
    %v1422 = vpack.c.b16 %v1370, %v1366
    %v1423 = vpack.c.b16 %v1375, %v1371
    %v1424 = vpack.c.b16 %v1376, %v1372
    %v1425 = vpack.c.b16 %v1377, %v1373
    %v1426 = vpack.c.b16 %v1378, %v1374
    %v1427 = vpack.c.b16 %v1383, %v1379
    %v1428 = vpack.c.b16 %v1384, %v1380
    %v1429 = vpack.c.b16 %v1385, %v1381
    %v1430 = vpack.c.b16 %v1386, %v1382
    %v1431 = vpack.c.b16 %v1391, %v1387
    %v1432 = vpack.c.b16 %v1392, %v1388
    %v1433 = vpack.c.b16 %v1393, %v1389
    %v1434 = vpack.c.b16 %v1394, %v1390
    %v1435 = vpack.c.b16 %v1399, %v1395
    %v1436 = vpack.c.b16 %v1400, %v1396
    %v1437 = vpack.c.b16 %v1401, %v1397
    %v1438 = vpack.c.b16 %v1402, %v1398
    %v1439 = vpack.c.b16 %v1407, %v1403
    %v1440 = vpack.c.b16 %v1408, %v1404
    %v1441 = vpack.c.b16 %v1409, %v1405
    %v1442 = vpack.c.b16 %v1410, %v1406
    %1475 = vmatprep.subr.bf16.mxu0 %v1412
    %1476 = vmatpush1.bf16.msra.mxu0 %v1411
    %1477 = vmatprep.subr.bf16.mxu0 %v1416
    %1478 = vmatpush1.bf16.msra.mxu0 %v1415
    %1479 = vmatprep.subr.bf16.mxu0 %v1420
    %1480 = vmatpush1.bf16.msra.mxu0 %v1419
    %1481 = vmatprep.subr.bf16.mxu0 %v1424
    %1482 = vmatpush1.bf16.msra.mxu0 %v1423
    %1483 = vmatprep.subr.bf16.mxu0 %v1428
    %1484 = vmatpush1.bf16.msra.mxu0 %v1427
    %1485 = vmatprep.subr.bf16.mxu0 %v1432
    %1486 = vmatpush1.bf16.msra.mxu0 %v1431
    %1487 = vmatprep.subr.bf16.mxu0 %v1436
    %1488 = vmatpush1.bf16.msra.mxu0 %v1435
    %1489 = vmatprep.subr.bf16.mxu0 %v1440
    %1490 = vmatpush1.bf16.msra.mxu0 %v1439
    %1491 = vmatprep.subr.bf16.mxu0 0
    %1492 = vmatpush1.bf16.msra.mxu0 0
    %1493 = vmatprep.subr.bf16.mxu0 0
    %1494 = vmatpush1.bf16.msra.mxu0 0
    %1495 = vmatprep.subr.bf16.mxu0 0
    %1496 = vmatpush1.bf16.msra.mxu0 0
    %1497 = vmatprep.subr.bf16.mxu0 0
    %1498 = vmatpush1.bf16.msra.mxu0 0
    %1499 = vmatprep.subr.bf16.mxu0 0
    %1500 = vmatpush1.bf16.msra.mxu0 0
    %1501 = vmatprep.subr.bf16.mxu0 0
    %1502 = vmatpush1.bf16.msra.mxu0 0
    %1503 = vmatprep.subr.bf16.mxu0 0
    %1504 = vmatpush1.bf16.msra.mxu0 0
    %1505 = vmatprep.subr.bf16.mxu0 0
    %1506 = vmatpush1.bf16.msra.mxu0 0
    %1507 = vmatprep.mubr.bf16.mxu0 0
    %1508 = vmatmul.mubr.bf16.gmra.mrb[0].mxu0 %v1282
    %v1509 = vpop.f32.mrb[0].mxu0
    %v1510 = vadd.f32 0.0, %v1509
    %v1511 = vpop.f32.mrb[0].mxu0
    %v1512 = vadd.f32 0.0, %v1511
    %v1513 = vpop.f32.mrb[0].mxu0
    %v1514 = vpop.f32.mrb[0].mxu0
    %1515 = vdwg.mxu0
    %1516 = vmatprep.subr.bf16.mxu0 %v1414
    %1517 = vmatpush1.bf16.msra.mxu0 %v1413
    %1518 = vmatprep.subr.bf16.mxu0 %v1418
    %1519 = vmatpush1.bf16.msra.mxu0 %v1417
    %1520 = vmatprep.subr.bf16.mxu0 %v1422
    %1521 = vmatpush1.bf16.msra.mxu0 %v1421
    %1522 = vmatprep.subr.bf16.mxu0 %v1426
    %1523 = vmatpush1.bf16.msra.mxu0 %v1425
    %1524 = vmatprep.subr.bf16.mxu0 %v1430
    %1525 = vmatpush1.bf16.msra.mxu0 %v1429
    %1526 = vmatprep.subr.bf16.mxu0 %v1434
    %1527 = vmatpush1.bf16.msra.mxu0 %v1433
    %1528 = vmatprep.subr.bf16.mxu0 %v1438
    %1529 = vmatpush1.bf16.msra.mxu0 %v1437
    %1530 = vmatprep.subr.bf16.mxu0 %v1442
    %1531 = vmatpush1.bf16.msra.mxu0 %v1441
    %1532 = vmatprep.subr.bf16.mxu0 0
    %1533 = vmatpush1.bf16.msra.mxu0 0
    %1534 = vmatprep.subr.bf16.mxu0 0
    %1535 = vmatpush1.bf16.msra.mxu0 0
    %1536 = vmatprep.subr.bf16.mxu0 0
    %1537 = vmatpush1.bf16.msra.mxu0 0
    %1538 = vmatprep.subr.bf16.mxu0 0
    %1539 = vmatpush1.bf16.msra.mxu0 0
    %1540 = vmatprep.subr.bf16.mxu0 0
    %1541 = vmatpush1.bf16.msra.mxu0 0
    %1542 = vmatprep.subr.bf16.mxu0 0
    %1543 = vmatpush1.bf16.msra.mxu0 0
    %1544 = vmatprep.subr.bf16.mxu0 0
    %1545 = vmatpush1.bf16.msra.mxu0 0
    %1546 = vmatprep.subr.bf16.mxu0 0
    %1547 = vmatpush1.bf16.msra.mxu0 0
    %1548 = vmatprep.mubr.bf16.mxu0 0
    %1549 = vmatmul.mubr.bf16.gmra.mrb[0].mxu0 %v1282
    %v1550 = vpop.f32.mrb[0].mxu0
    %v1551 = vadd.f32 0.0, %v1550
    %v1552 = vpop.f32.mrb[0].mxu0
    %v1553 = vadd.f32 0.0, %v1552
    %v1554 = vpop.f32.mrb[0].mxu0
    %v1555 = vpop.f32.mrb[0].mxu0
    %1556 = vdwg.mxu0
    %v1557 = vadd.f32 %v1278, %v1510
    %v1558 = vadd.f32 %v1279, %v1512
    %v1559 = vadd.f32 %v1280, %v1551
    %v1560 = vadd.f32 %v1281, %v1553
    %v1561 = vmul.f32 %v1557, 0.5
    %v1562 = vtanh.pop %v1561
    %v1563 = vadd.f32 %v1562, 1.0
    %v1564 = vmul.f32 %v1563, 0.5
    %v1565 = vmul.f32 %v1558, 0.5
    %v1566 = vtanh.pop %v1565
    %v1567 = vadd.f32 %v1566, 1.0
    %v1568 = vmul.f32 %v1567, 0.5
    %v1569 = vtanh.pop %v1559
    %v1570 = vmul.f32 %v1560, 0.5
    %v1571 = vtanh.pop %v1570
    %v1572 = vadd.f32 %v1571, 1.0
    %v1573 = vmul.f32 %v1572, 0.5
    %v1574 = vmul.f32 %v1568, %v1270
    %v1575 = vmul.f32 %v1564, %v1569
    %v1576 = vadd.f32 %v1574, %v1575
    %v1577 = vtanh.pop %v1576
    %v1578 = vmul.f32 %v1573, %v1577
    %s1579 = scalar_lea.vmem [#allocation9], 32
    %1580 = vst [vmem:[%s1579] sm:$0xff] %v1578
    %s1581 = scalar_lea.vmem [#allocation4], 80
    %v1582 = vld [vmem:[%s1581] sm:$0xff]
    %v1583 = vld [vmem:[%s1581 + $0x8] sm:$0xff]
    %v1584 = vunpack.c.l.bf16 %v1582
    %v1585 = vunpack.c.h.bf16 %v1582
    %v1586 = vunpack.c.l.bf16 %v1583
    %v1587 = vunpack.c.h.bf16 %v1583
    %v1588 = vpack.c.bf16 %v1578, %v1578
    %v1589 = vld [vmem:[#allocation7] sm:$0xff]
    %v1590 = vld [vmem:[#allocation7 + $0x8] sm:$0xff]
    %v1591 = vld [vmem:[#allocation7 + $0x10] sm:$0xff]
    %v1592 = vld [vmem:[#allocation7 + $0x18] sm:$0xff]
    %v1593 = vld [vmem:[#allocation7 + $0x20] sm:$0xff]
    %v1594 = vld [vmem:[#allocation7 + $0x28] sm:$0xff]
    %v1595 = vld [vmem:[#allocation7 + $0x30] sm:$0xff]
    %v1596 = vld [vmem:[#allocation7 + $0x38] sm:$0xff]
    %v1597 = vld [vmem:[#allocation7 + $0x40] sm:$0xff]
    %v1598 = vld [vmem:[#allocation7 + $0x48] sm:$0xff]
    %v1599 = vld [vmem:[#allocation7 + $0x50] sm:$0xff]
    %v1600 = vld [vmem:[#allocation7 + $0x58] sm:$0xff]
    %v1601 = vld [vmem:[#allocation7 + $0x60] sm:$0xff]
    %v1602 = vld [vmem:[#allocation7 + $0x68] sm:$0xff]
    %v1603 = vld [vmem:[#allocation7 + $0x70] sm:$0xff]
    %v1604 = vld [vmem:[#allocation7 + $0x78] sm:$0xff]
    %v1605 = vld [vmem:[#allocation7 + $0x80] sm:$0xff]
    %v1606 = vld [vmem:[#allocation7 + $0x88] sm:$0xff]
    %v1607 = vld [vmem:[#allocation7 + $0x90] sm:$0xff]
    %v1608 = vld [vmem:[#allocation7 + $0x98] sm:$0xff]
    %v1609 = vld [vmem:[#allocation7 + $0xa0] sm:$0xff]
    %v1610 = vld [vmem:[#allocation7 + $0xa8] sm:$0xff]
    %v1611 = vld [vmem:[#allocation7 + $0xb0] sm:$0xff]
    %v1612 = vld [vmem:[#allocation7 + $0xb8] sm:$0xff]
    %v1613 = vld [vmem:[#allocation7 + $0xc0] sm:$0xff]
    %v1614 = vld [vmem:[#allocation7 + $0xc8] sm:$0xff]
    %v1615 = vld [vmem:[#allocation7 + $0xd0] sm:$0xff]
    %v1616 = vld [vmem:[#allocation7 + $0xd8] sm:$0xff]
    %v1617 = vld [vmem:[#allocation7 + $0xe0] sm:$0xff]
    %v1618 = vld [vmem:[#allocation7 + $0xe8] sm:$0xff]
    %v1619 = vld [vmem:[#allocation7 + $0xf0] sm:$0xff]
    %v1620 = vld [vmem:[#allocation7 + $0xf8] sm:$0xff]
    %v1653 = vunpack.c.l.b16 %v1589
    %v1654 = vunpack.c.h.b16 %v1589
    %v1655 = vunpack.c.l.b16 %v1590
    %v1656 = vunpack.c.h.b16 %v1590
    %v1657 = vunpack.c.l.b16 %v1591
    %v1658 = vunpack.c.h.b16 %v1591
    %v1659 = vunpack.c.l.b16 %v1592
    %v1660 = vunpack.c.h.b16 %v1592
    %v1661 = vunpack.c.l.b16 %v1593
    %v1662 = vunpack.c.h.b16 %v1593
    %v1663 = vunpack.c.l.b16 %v1594
    %v1664 = vunpack.c.h.b16 %v1594
    %v1665 = vunpack.c.l.b16 %v1595
    %v1666 = vunpack.c.h.b16 %v1595
    %v1667 = vunpack.c.l.b16 %v1596
    %v1668 = vunpack.c.h.b16 %v1596
    %v1669 = vunpack.c.l.b16 %v1597
    %v1670 = vunpack.c.h.b16 %v1597
    %v1671 = vunpack.c.l.b16 %v1598
    %v1672 = vunpack.c.h.b16 %v1598
    %v1673 = vunpack.c.l.b16 %v1599
    %v1674 = vunpack.c.h.b16 %v1599
    %v1675 = vunpack.c.l.b16 %v1600
    %v1676 = vunpack.c.h.b16 %v1600
    %v1677 = vunpack.c.l.b16 %v1601
    %v1678 = vunpack.c.h.b16 %v1601
    %v1679 = vunpack.c.l.b16 %v1602
    %v1680 = vunpack.c.h.b16 %v1602
    %v1681 = vunpack.c.l.b16 %v1603
    %v1682 = vunpack.c.h.b16 %v1603
    %v1683 = vunpack.c.l.b16 %v1604
    %v1684 = vunpack.c.h.b16 %v1604
    %v1685 = vunpack.c.l.b16 %v1605
    %v1686 = vunpack.c.h.b16 %v1605
    %v1687 = vunpack.c.l.b16 %v1606
    %v1688 = vunpack.c.h.b16 %v1606
    %v1689 = vunpack.c.l.b16 %v1607
    %v1690 = vunpack.c.h.b16 %v1607
    %v1691 = vunpack.c.l.b16 %v1608
    %v1692 = vunpack.c.h.b16 %v1608
    %v1693 = vunpack.c.l.b16 %v1609
    %v1694 = vunpack.c.h.b16 %v1609
    %v1695 = vunpack.c.l.b16 %v1610
    %v1696 = vunpack.c.h.b16 %v1610
    %v1697 = vunpack.c.l.b16 %v1611
    %v1698 = vunpack.c.h.b16 %v1611
    %v1699 = vunpack.c.l.b16 %v1612
    %v1700 = vunpack.c.h.b16 %v1612
    %v1701 = vunpack.c.l.b16 %v1613
    %v1702 = vunpack.c.h.b16 %v1613
    %v1703 = vunpack.c.l.b16 %v1614
    %v1704 = vunpack.c.h.b16 %v1614
    %v1705 = vunpack.c.l.b16 %v1615
    %v1706 = vunpack.c.h.b16 %v1615
    %v1707 = vunpack.c.l.b16 %v1616
    %v1708 = vunpack.c.h.b16 %v1616
    %v1709 = vunpack.c.l.b16 %v1617
    %v1710 = vunpack.c.h.b16 %v1617
    %v1711 = vunpack.c.l.b16 %v1618
    %v1712 = vunpack.c.h.b16 %v1618
    %v1713 = vunpack.c.l.b16 %v1619
    %v1714 = vunpack.c.h.b16 %v1619
    %v1715 = vunpack.c.l.b16 %v1620
    %v1716 = vunpack.c.h.b16 %v1620
    %v1717 = vpack.c.b16 %v1657, %v1653
    %v1718 = vpack.c.b16 %v1658, %v1654
    %v1719 = vpack.c.b16 %v1659, %v1655
    %v1720 = vpack.c.b16 %v1660, %v1656
    %v1721 = vpack.c.b16 %v1665, %v1661
    %v1722 = vpack.c.b16 %v1666, %v1662
    %v1723 = vpack.c.b16 %v1667, %v1663
    %v1724 = vpack.c.b16 %v1668, %v1664
    %v1725 = vpack.c.b16 %v1673, %v1669
    %v1726 = vpack.c.b16 %v1674, %v1670
    %v1727 = vpack.c.b16 %v1675, %v1671
    %v1728 = vpack.c.b16 %v1676, %v1672
    %v1729 = vpack.c.b16 %v1681, %v1677
    %v1730 = vpack.c.b16 %v1682, %v1678
    %v1731 = vpack.c.b16 %v1683, %v1679
    %v1732 = vpack.c.b16 %v1684, %v1680
    %v1733 = vpack.c.b16 %v1689, %v1685
    %v1734 = vpack.c.b16 %v1690, %v1686
    %v1735 = vpack.c.b16 %v1691, %v1687
    %v1736 = vpack.c.b16 %v1692, %v1688
    %v1737 = vpack.c.b16 %v1697, %v1693
    %v1738 = vpack.c.b16 %v1698, %v1694
    %v1739 = vpack.c.b16 %v1699, %v1695
    %v1740 = vpack.c.b16 %v1700, %v1696
    %v1741 = vpack.c.b16 %v1705, %v1701
    %v1742 = vpack.c.b16 %v1706, %v1702
    %v1743 = vpack.c.b16 %v1707, %v1703
    %v1744 = vpack.c.b16 %v1708, %v1704
    %v1745 = vpack.c.b16 %v1713, %v1709
    %v1746 = vpack.c.b16 %v1714, %v1710
    %v1747 = vpack.c.b16 %v1715, %v1711
    %v1748 = vpack.c.b16 %v1716, %v1712
    %1781 = vmatprep.subr.bf16.mxu0 %v1718
    %1782 = vmatpush1.bf16.msra.mxu0 %v1717
    %1783 = vmatprep.subr.bf16.mxu0 %v1722
    %1784 = vmatpush1.bf16.msra.mxu0 %v1721
    %1785 = vmatprep.subr.bf16.mxu0 %v1726
    %1786 = vmatpush1.bf16.msra.mxu0 %v1725
    %1787 = vmatprep.subr.bf16.mxu0 %v1730
    %1788 = vmatpush1.bf16.msra.mxu0 %v1729
    %1789 = vmatprep.subr.bf16.mxu0 %v1734
    %1790 = vmatpush1.bf16.msra.mxu0 %v1733
    %1791 = vmatprep.subr.bf16.mxu0 %v1738
    %1792 = vmatpush1.bf16.msra.mxu0 %v1737
    %1793 = vmatprep.subr.bf16.mxu0 %v1742
    %1794 = vmatpush1.bf16.msra.mxu0 %v1741
    %1795 = vmatprep.subr.bf16.mxu0 %v1746
    %1796 = vmatpush1.bf16.msra.mxu0 %v1745
    %1797 = vmatprep.subr.bf16.mxu0 0
    %1798 = vmatpush1.bf16.msra.mxu0 0
    %1799 = vmatprep.subr.bf16.mxu0 0
    %1800 = vmatpush1.bf16.msra.mxu0 0
    %1801 = vmatprep.subr.bf16.mxu0 0
    %1802 = vmatpush1.bf16.msra.mxu0 0
    %1803 = vmatprep.subr.bf16.mxu0 0
    %1804 = vmatpush1.bf16.msra.mxu0 0
    %1805 = vmatprep.subr.bf16.mxu0 0
    %1806 = vmatpush1.bf16.msra.mxu0 0
    %1807 = vmatprep.subr.bf16.mxu0 0
    %1808 = vmatpush1.bf16.msra.mxu0 0
    %1809 = vmatprep.subr.bf16.mxu0 0
    %1810 = vmatpush1.bf16.msra.mxu0 0
    %1811 = vmatprep.subr.bf16.mxu0 0
    %1812 = vmatpush1.bf16.msra.mxu0 0
    %1813 = vmatprep.mubr.bf16.mxu0 0
    %1814 = vmatmul.mubr.bf16.gmra.mrb[0].mxu0 %v1588
    %v1815 = vpop.f32.mrb[0].mxu0
    %v1816 = vadd.f32 0.0, %v1815
    %v1817 = vpop.f32.mrb[0].mxu0
    %v1818 = vadd.f32 0.0, %v1817
    %v1819 = vpop.f32.mrb[0].mxu0
    %v1820 = vpop.f32.mrb[0].mxu0
    %1821 = vdwg.mxu0
    %1822 = vmatprep.subr.bf16.mxu0 %v1720
    %1823 = vmatpush1.bf16.msra.mxu0 %v1719
    %1824 = vmatprep.subr.bf16.mxu0 %v1724
    %1825 = vmatpush1.bf16.msra.mxu0 %v1723
    %1826 = vmatprep.subr.bf16.mxu0 %v1728
    %1827 = vmatpush1.bf16.msra.mxu0 %v1727
    %1828 = vmatprep.subr.bf16.mxu0 %v1732
    %1829 = vmatpush1.bf16.msra.mxu0 %v1731
    %1830 = vmatprep.subr.bf16.mxu0 %v1736
    %1831 = vmatpush1.bf16.msra.mxu0 %v1735
    %1832 = vmatprep.subr.bf16.mxu0 %v1740
    %1833 = vmatpush1.bf16.msra.mxu0 %v1739
    %1834 = vmatprep.subr.bf16.mxu0 %v1744
    %1835 = vmatpush1.bf16.msra.mxu0 %v1743
    %1836 = vmatprep.subr.bf16.mxu0 %v1748
    %1837 = vmatpush1.bf16.msra.mxu0 %v1747
    %1838 = vmatprep.subr.bf16.mxu0 0
    %1839 = vmatpush1.bf16.msra.mxu0 0
    %1840 = vmatprep.subr.bf16.mxu0 0
    %1841 = vmatpush1.bf16.msra.mxu0 0
    %1842 = vmatprep.subr.bf16.mxu0 0
    %1843 = vmatpush1.bf16.msra.mxu0 0
    %1844 = vmatprep.subr.bf16.mxu0 0
    %1845 = vmatpush1.bf16.msra.mxu0 0
    %1846 = vmatprep.subr.bf16.mxu0 0
    %1847 = vmatpush1.bf16.msra.mxu0 0
    %1848 = vmatprep.subr.bf16.mxu0 0
    %1849 = vmatpush1.bf16.msra.mxu0 0
    %1850 = vmatprep.subr.bf16.mxu0 0
    %1851 = vmatpush1.bf16.msra.mxu0 0
    %1852 = vmatprep.subr.bf16.mxu0 0
    %1853 = vmatpush1.bf16.msra.mxu0 0
    %1854 = vmatprep.mubr.bf16.mxu0 0
    %1855 = vmatmul.mubr.bf16.gmra.mrb[0].mxu0 %v1588
    %v1856 = vpop.f32.mrb[0].mxu0
    %v1857 = vadd.f32 0.0, %v1856
    %v1858 = vpop.f32.mrb[0].mxu0
    %v1859 = vadd.f32 0.0, %v1858
    %v1860 = vpop.f32.mrb[0].mxu0
    %v1861 = vpop.f32.mrb[0].mxu0
    %1862 = vdwg.mxu0
    %v1863 = vadd.f32 %v1584, %v1816
    %v1864 = vadd.f32 %v1585, %v1818
    %v1865 = vadd.f32 %v1586, %v1857
    %v1866 = vadd.f32 %v1587, %v1859
    %v1867 = vmul.f32 %v1863, 0.5
    %v1868 = vtanh.pop %v1867
    %v1869 = vadd.f32 %v1868, 1.0
    %v1870 = vmul.f32 %v1869, 0.5
    %v1871 = vmul.f32 %v1864, 0.5
    %v1872 = vtanh.pop %v1871
    %v1873 = vadd.f32 %v1872, 1.0
    %v1874 = vmul.f32 %v1873, 0.5
    %v1875 = vtanh.pop %v1865
    %v1876 = vmul.f32 %v1866, 0.5
    %v1877 = vtanh.pop %v1876
    %v1878 = vadd.f32 %v1877, 1.0
    %v1879 = vmul.f32 %v1878, 0.5
    %v1880 = vmul.f32 %v1874, %v1576
    %v1881 = vmul.f32 %v1870, %v1875
    %v1882 = vadd.f32 %v1880, %v1881
    %v1883 = vtanh.pop %v1882
    %v1884 = vmul.f32 %v1879, %v1883
    %s1885 = scalar_lea.vmem [#allocation9], 40
    %1886 = vst [vmem:[%s1885] sm:$0xff] %v1884
    %s1887 = scalar_lea.vmem [#allocation4], 96
    %v1888 = vld [vmem:[%s1887] sm:$0xff]
    %v1889 = vld [vmem:[%s1887 + $0x8] sm:$0xff]
    %v1890 = vunpack.c.l.bf16 %v1888
    %v1891 = vunpack.c.h.bf16 %v1888
    %v1892 = vunpack.c.l.bf16 %v1889
    %v1893 = vunpack.c.h.bf16 %v1889
    %v1894 = vpack.c.bf16 %v1884, %v1884
    %v1895 = vld [vmem:[#allocation7] sm:$0xff]
    %v1896 = vld [vmem:[#allocation7 + $0x8] sm:$0xff]
    %v1897 = vld [vmem:[#allocation7 + $0x10] sm:$0xff]
    %v1898 = vld [vmem:[#allocation7 + $0x18] sm:$0xff]
    %v1899 = vld [vmem:[#allocation7 + $0x20] sm:$0xff]
    %v1900 = vld [vmem:[#allocation7 + $0x28] sm:$0xff]
    %v1901 = vld [vmem:[#allocation7 + $0x30] sm:$0xff]
    %v1902 = vld [vmem:[#allocation7 + $0x38] sm:$0xff]
    %v1903 = vld [vmem:[#allocation7 + $0x40] sm:$0xff]
    %v1904 = vld [vmem:[#allocation7 + $0x48] sm:$0xff]
    %v1905 = vld [vmem:[#allocation7 + $0x50] sm:$0xff]
    %v1906 = vld [vmem:[#allocation7 + $0x58] sm:$0xff]
    %v1907 = vld [vmem:[#allocation7 + $0x60] sm:$0xff]
    %v1908 = vld [vmem:[#allocation7 + $0x68] sm:$0xff]
    %v1909 = vld [vmem:[#allocation7 + $0x70] sm:$0xff]
    %v1910 = vld [vmem:[#allocation7 + $0x78] sm:$0xff]
    %v1911 = vld [vmem:[#allocation7 + $0x80] sm:$0xff]
    %v1912 = vld [vmem:[#allocation7 + $0x88] sm:$0xff]
    %v1913 = vld [vmem:[#allocation7 + $0x90] sm:$0xff]
    %v1914 = vld [vmem:[#allocation7 + $0x98] sm:$0xff]
    %v1915 = vld [vmem:[#allocation7 + $0xa0] sm:$0xff]
    %v1916 = vld [vmem:[#allocation7 + $0xa8] sm:$0xff]
    %v1917 = vld [vmem:[#allocation7 + $0xb0] sm:$0xff]
    %v1918 = vld [vmem:[#allocation7 + $0xb8] sm:$0xff]
    %v1919 = vld [vmem:[#allocation7 + $0xc0] sm:$0xff]
    %v1920 = vld [vmem:[#allocation7 + $0xc8] sm:$0xff]
    %v1921 = vld [vmem:[#allocation7 + $0xd0] sm:$0xff]
    %v1922 = vld [vmem:[#allocation7 + $0xd8] sm:$0xff]
    %v1923 = vld [vmem:[#allocation7 + $0xe0] sm:$0xff]
    %v1924 = vld [vmem:[#allocation7 + $0xe8] sm:$0xff]
    %v1925 = vld [vmem:[#allocation7 + $0xf0] sm:$0xff]
    %v1926 = vld [vmem:[#allocation7 + $0xf8] sm:$0xff]
    %v1959 = vunpack.c.l.b16 %v1895
    %v1960 = vunpack.c.h.b16 %v1895
    %v1961 = vunpack.c.l.b16 %v1896
    %v1962 = vunpack.c.h.b16 %v1896
    %v1963 = vunpack.c.l.b16 %v1897
    %v1964 = vunpack.c.h.b16 %v1897
    %v1965 = vunpack.c.l.b16 %v1898
    %v1966 = vunpack.c.h.b16 %v1898
    %v1967 = vunpack.c.l.b16 %v1899
    %v1968 = vunpack.c.h.b16 %v1899
    %v1969 = vunpack.c.l.b16 %v1900
    %v1970 = vunpack.c.h.b16 %v1900
    %v1971 = vunpack.c.l.b16 %v1901
    %v1972 = vunpack.c.h.b16 %v1901
    %v1973 = vunpack.c.l.b16 %v1902
    %v1974 = vunpack.c.h.b16 %v1902
    %v1975 = vunpack.c.l.b16 %v1903
    %v1976 = vunpack.c.h.b16 %v1903
    %v1977 = vunpack.c.l.b16 %v1904
    %v1978 = vunpack.c.h.b16 %v1904
    %v1979 = vunpack.c.l.b16 %v1905
    %v1980 = vunpack.c.h.b16 %v1905
    %v1981 = vunpack.c.l.b16 %v1906
    %v1982 = vunpack.c.h.b16 %v1906
    %v1983 = vunpack.c.l.b16 %v1907
    %v1984 = vunpack.c.h.b16 %v1907
    %v1985 = vunpack.c.l.b16 %v1908
    %v1986 = vunpack.c.h.b16 %v1908
    %v1987 = vunpack.c.l.b16 %v1909
    %v1988 = vunpack.c.h.b16 %v1909
    %v1989 = vunpack.c.l.b16 %v1910
    %v1990 = vunpack.c.h.b16 %v1910
    %v1991 = vunpack.c.l.b16 %v1911
    %v1992 = vunpack.c.h.b16 %v1911
    %v1993 = vunpack.c.l.b16 %v1912
    %v1994 = vunpack.c.h.b16 %v1912
    %v1995 = vunpack.c.l.b16 %v1913
    %v1996 = vunpack.c.h.b16 %v1913
    %v1997 = vunpack.c.l.b16 %v1914
    %v1998 = vunpack.c.h.b16 %v1914
    %v1999 = vunpack.c.l.b16 %v1915
    %v2000 = vunpack.c.h.b16 %v1915
    %v2001 = vunpack.c.l.b16 %v1916
    %v2002 = vunpack.c.h.b16 %v1916
    %v2003 = vunpack.c.l.b16 %v1917
    %v2004 = vunpack.c.h.b16 %v1917
    %v2005 = vunpack.c.l.b16 %v1918
    %v2006 = vunpack.c.h.b16 %v1918
    %v2007 = vunpack.c.l.b16 %v1919
    %v2008 = vunpack.c.h.b16 %v1919
    %v2009 = vunpack.c.l.b16 %v1920
    %v2010 = vunpack.c.h.b16 %v1920
    %v2011 = vunpack.c.l.b16 %v1921
    %v2012 = vunpack.c.h.b16 %v1921
    %v2013 = vunpack.c.l.b16 %v1922
    %v2014 = vunpack.c.h.b16 %v1922
    %v2015 = vunpack.c.l.b16 %v1923
    %v2016 = vunpack.c.h.b16 %v1923
    %v2017 = vunpack.c.l.b16 %v1924
    %v2018 = vunpack.c.h.b16 %v1924
    %v2019 = vunpack.c.l.b16 %v1925
    %v2020 = vunpack.c.h.b16 %v1925
    %v2021 = vunpack.c.l.b16 %v1926
    %v2022 = vunpack.c.h.b16 %v1926
    %v2023 = vpack.c.b16 %v1963, %v1959
    %v2024 = vpack.c.b16 %v1964, %v1960
    %v2025 = vpack.c.b16 %v1965, %v1961
    %v2026 = vpack.c.b16 %v1966, %v1962
    %v2027 = vpack.c.b16 %v1971, %v1967
    %v2028 = vpack.c.b16 %v1972, %v1968
    %v2029 = vpack.c.b16 %v1973, %v1969
    %v2030 = vpack.c.b16 %v1974, %v1970
    %v2031 = vpack.c.b16 %v1979, %v1975
    %v2032 = vpack.c.b16 %v1980, %v1976
    %v2033 = vpack.c.b16 %v1981, %v1977
    %v2034 = vpack.c.b16 %v1982, %v1978
    %v2035 = vpack.c.b16 %v1987, %v1983
    %v2036 = vpack.c.b16 %v1988, %v1984
    %v2037 = vpack.c.b16 %v1989, %v1985
    %v2038 = vpack.c.b16 %v1990, %v1986
    %v2039 = vpack.c.b16 %v1995, %v1991
    %v2040 = vpack.c.b16 %v1996, %v1992
    %v2041 = vpack.c.b16 %v1997, %v1993
    %v2042 = vpack.c.b16 %v1998, %v1994
    %v2043 = vpack.c.b16 %v2003, %v1999
    %v2044 = vpack.c.b16 %v2004, %v2000
    %v2045 = vpack.c.b16 %v2005, %v2001
    %v2046 = vpack.c.b16 %v2006, %v2002
    %v2047 = vpack.c.b16 %v2011, %v2007
    %v2048 = vpack.c.b16 %v2012, %v2008
    %v2049 = vpack.c.b16 %v2013, %v2009
    %v2050 = vpack.c.b16 %v2014, %v2010
    %v2051 = vpack.c.b16 %v2019, %v2015
    %v2052 = vpack.c.b16 %v2020, %v2016
    %v2053 = vpack.c.b16 %v2021, %v2017
    %v2054 = vpack.c.b16 %v2022, %v2018
    %2087 = vmatprep.subr.bf16.mxu0 %v2024
    %2088 = vmatpush1.bf16.msra.mxu0 %v2023
    %2089 = vmatprep.subr.bf16.mxu0 %v2028
    %2090 = vmatpush1.bf16.msra.mxu0 %v2027
    %2091 = vmatprep.subr.bf16.mxu0 %v2032
    %2092 = vmatpush1.bf16.msra.mxu0 %v2031
    %2093 = vmatprep.subr.bf16.mxu0 %v2036
    %2094 = vmatpush1.bf16.msra.mxu0 %v2035
    %2095 = vmatprep.subr.bf16.mxu0 %v2040
    %2096 = vmatpush1.bf16.msra.mxu0 %v2039
    %2097 = vmatprep.subr.bf16.mxu0 %v2044
    %2098 = vmatpush1.bf16.msra.mxu0 %v2043
    %2099 = vmatprep.subr.bf16.mxu0 %v2048
    %2100 = vmatpush1.bf16.msra.mxu0 %v2047
    %2101 = vmatprep.subr.bf16.mxu0 %v2052
    %2102 = vmatpush1.bf16.msra.mxu0 %v2051
    %2103 = vmatprep.subr.bf16.mxu0 0
    %2104 = vmatpush1.bf16.msra.mxu0 0
    %2105 = vmatprep.subr.bf16.mxu0 0
    %2106 = vmatpush1.bf16.msra.mxu0 0
    %2107 = vmatprep.subr.bf16.mxu0 0
    %2108 = vmatpush1.bf16.msra.mxu0 0
    %2109 = vmatprep.subr.bf16.mxu0 0
    %2110 = vmatpush1.bf16.msra.mxu0 0
    %2111 = vmatprep.subr.bf16.mxu0 0
    %2112 = vmatpush1.bf16.msra.mxu0 0
    %2113 = vmatprep.subr.bf16.mxu0 0
    %2114 = vmatpush1.bf16.msra.mxu0 0
    %2115 = vmatprep.subr.bf16.mxu0 0
    %2116 = vmatpush1.bf16.msra.mxu0 0
    %2117 = vmatprep.subr.bf16.mxu0 0
    %2118 = vmatpush1.bf16.msra.mxu0 0
    %2119 = vmatprep.mubr.bf16.mxu0 0
    %2120 = vmatmul.mubr.bf16.gmra.mrb[0].mxu0 %v1894
    %v2121 = vpop.f32.mrb[0].mxu0
    %v2122 = vadd.f32 0.0, %v2121
    %v2123 = vpop.f32.mrb[0].mxu0
    %v2124 = vadd.f32 0.0, %v2123
    %v2125 = vpop.f32.mrb[0].mxu0
    %v2126 = vpop.f32.mrb[0].mxu0
    %2127 = vdwg.mxu0
    %2128 = vmatprep.subr.bf16.mxu0 %v2026
    %2129 = vmatpush1.bf16.msra.mxu0 %v2025
    %2130 = vmatprep.subr.bf16.mxu0 %v2030
    %2131 = vmatpush1.bf16.msra.mxu0 %v2029
    %2132 = vmatprep.subr.bf16.mxu0 %v2034
    %2133 = vmatpush1.bf16.msra.mxu0 %v2033
    %2134 = vmatprep.subr.bf16.mxu0 %v2038
    %2135 = vmatpush1.bf16.msra.mxu0 %v2037
    %2136 = vmatprep.subr.bf16.mxu0 %v2042
    %2137 = vmatpush1.bf16.msra.mxu0 %v2041
    %2138 = vmatprep.subr.bf16.mxu0 %v2046
    %2139 = vmatpush1.bf16.msra.mxu0 %v2045
    %2140 = vmatprep.subr.bf16.mxu0 %v2050
    %2141 = vmatpush1.bf16.msra.mxu0 %v2049
    %2142 = vmatprep.subr.bf16.mxu0 %v2054
    %2143 = vmatpush1.bf16.msra.mxu0 %v2053
    %2144 = vmatprep.subr.bf16.mxu0 0
    %2145 = vmatpush1.bf16.msra.mxu0 0
    %2146 = vmatprep.subr.bf16.mxu0 0
    %2147 = vmatpush1.bf16.msra.mxu0 0
    %2148 = vmatprep.subr.bf16.mxu0 0
    %2149 = vmatpush1.bf16.msra.mxu0 0
    %2150 = vmatprep.subr.bf16.mxu0 0
    %2151 = vmatpush1.bf16.msra.mxu0 0
    %2152 = vmatprep.subr.bf16.mxu0 0
    %2153 = vmatpush1.bf16.msra.mxu0 0
    %2154 = vmatprep.subr.bf16.mxu0 0
    %2155 = vmatpush1.bf16.msra.mxu0 0
    %2156 = vmatprep.subr.bf16.mxu0 0
    %2157 = vmatpush1.bf16.msra.mxu0 0
    %2158 = vmatprep.subr.bf16.mxu0 0
    %2159 = vmatpush1.bf16.msra.mxu0 0
    %2160 = vmatprep.mubr.bf16.mxu0 0
    %2161 = vmatmul.mubr.bf16.gmra.mrb[0].mxu0 %v1894
    %v2162 = vpop.f32.mrb[0].mxu0
    %v2163 = vadd.f32 0.0, %v2162
    %v2164 = vpop.f32.mrb[0].mxu0
    %v2165 = vadd.f32 0.0, %v2164
    %v2166 = vpop.f32.mrb[0].mxu0
    %v2167 = vpop.f32.mrb[0].mxu0
    %2168 = vdwg.mxu0
    %v2169 = vadd.f32 %v1890, %v2122
    %v2170 = vadd.f32 %v1891, %v2124
    %v2171 = vadd.f32 %v1892, %v2163
    %v2172 = vadd.f32 %v1893, %v2165
    %v2173 = vmul.f32 %v2169, 0.5
    %v2174 = vtanh.pop %v2173
    %v2175 = vadd.f32 %v2174, 1.0
    %v2176 = vmul.f32 %v2175, 0.5
    %v2177 = vmul.f32 %v2170, 0.5
    %v2178 = vtanh.pop %v2177
    %v2179 = vadd.f32 %v2178, 1.0
    %v2180 = vmul.f32 %v2179, 0.5
    %v2181 = vtanh.pop %v2171
    %v2182 = vmul.f32 %v2172, 0.5
    %v2183 = vtanh.pop %v2182
    %v2184 = vadd.f32 %v2183, 1.0
    %v2185 = vmul.f32 %v2184, 0.5
    %v2186 = vmul.f32 %v2180, %v1882
    %v2187 = vmul.f32 %v2176, %v2181
    %v2188 = vadd.f32 %v2186, %v2187
    %v2189 = vtanh.pop %v2188
    %v2190 = vmul.f32 %v2185, %v2189
    %s2191 = scalar_lea.vmem [#allocation9], 48
    %2192 = vst [vmem:[%s2191] sm:$0xff] %v2190
    %s2193 = scalar_lea.vmem [#allocation4], 112
    %v2194 = vld [vmem:[%s2193] sm:$0xff]
    %v2195 = vld [vmem:[%s2193 + $0x8] sm:$0xff]
    %v2196 = vunpack.c.l.bf16 %v2194
    %v2197 = vunpack.c.h.bf16 %v2194
    %v2198 = vunpack.c.l.bf16 %v2195
    %v2199 = vunpack.c.h.bf16 %v2195
    %v2200 = vpack.c.bf16 %v2190, %v2190
    %v2201 = vld [vmem:[#allocation7] sm:$0xff]
    %v2202 = vld [vmem:[#allocation7 + $0x8] sm:$0xff]
    %v2203 = vld [vmem:[#allocation7 + $0x10] sm:$0xff]
    %v2204 = vld [vmem:[#allocation7 + $0x18] sm:$0xff]
    %v2205 = vld [vmem:[#allocation7 + $0x20] sm:$0xff]
    %v2206 = vld [vmem:[#allocation7 + $0x28] sm:$0xff]
    %v2207 = vld [vmem:[#allocation7 + $0x30] sm:$0xff]
    %v2208 = vld [vmem:[#allocation7 + $0x38] sm:$0xff]
    %v2209 = vld [vmem:[#allocation7 + $0x40] sm:$0xff]
    %v2210 = vld [vmem:[#allocation7 + $0x48] sm:$0xff]
    %v2211 = vld [vmem:[#allocation7 + $0x50] sm:$0xff]
    %v2212 = vld [vmem:[#allocation7 + $0x58] sm:$0xff]
    %v2213 = vld [vmem:[#allocation7 + $0x60] sm:$0xff]
    %v2214 = vld [vmem:[#allocation7 + $0x68] sm:$0xff]
    %v2215 = vld [vmem:[#allocation7 + $0x70] sm:$0xff]
    %v2216 = vld [vmem:[#allocation7 + $0x78] sm:$0xff]
    %v2217 = vld [vmem:[#allocation7 + $0x80] sm:$0xff]
    %v2218 = vld [vmem:[#allocation7 + $0x88] sm:$0xff]
    %v2219 = vld [vmem:[#allocation7 + $0x90] sm:$0xff]
    %v2220 = vld [vmem:[#allocation7 + $0x98] sm:$0xff]
    %v2221 = vld [vmem:[#allocation7 + $0xa0] sm:$0xff]
    %v2222 = vld [vmem:[#allocation7 + $0xa8] sm:$0xff]
    %v2223 = vld [vmem:[#allocation7 + $0xb0] sm:$0xff]
    %v2224 = vld [vmem:[#allocation7 + $0xb8] sm:$0xff]
    %v2225 = vld [vmem:[#allocation7 + $0xc0] sm:$0xff]
    %v2226 = vld [vmem:[#allocation7 + $0xc8] sm:$0xff]
    %v2227 = vld [vmem:[#allocation7 + $0xd0] sm:$0xff]
    %v2228 = vld [vmem:[#allocation7 + $0xd8] sm:$0xff]
    %v2229 = vld [vmem:[#allocation7 + $0xe0] sm:$0xff]
    %v2230 = vld [vmem:[#allocation7 + $0xe8] sm:$0xff]
    %v2231 = vld [vmem:[#allocation7 + $0xf0] sm:$0xff]
    %v2232 = vld [vmem:[#allocation7 + $0xf8] sm:$0xff]
    %v2265 = vunpack.c.l.b16 %v2201
    %v2266 = vunpack.c.h.b16 %v2201
    %v2267 = vunpack.c.l.b16 %v2202
    %v2268 = vunpack.c.h.b16 %v2202
    %v2269 = vunpack.c.l.b16 %v2203
    %v2270 = vunpack.c.h.b16 %v2203
    %v2271 = vunpack.c.l.b16 %v2204
    %v2272 = vunpack.c.h.b16 %v2204
    %v2273 = vunpack.c.l.b16 %v2205
    %v2274 = vunpack.c.h.b16 %v2205
    %v2275 = vunpack.c.l.b16 %v2206
    %v2276 = vunpack.c.h.b16 %v2206
    %v2277 = vunpack.c.l.b16 %v2207
    %v2278 = vunpack.c.h.b16 %v2207
    %v2279 = vunpack.c.l.b16 %v2208
    %v2280 = vunpack.c.h.b16 %v2208
    %v2281 = vunpack.c.l.b16 %v2209
    %v2282 = vunpack.c.h.b16 %v2209
    %v2283 = vunpack.c.l.b16 %v2210
    %v2284 = vunpack.c.h.b16 %v2210
    %v2285 = vunpack.c.l.b16 %v2211
    %v2286 = vunpack.c.h.b16 %v2211
    %v2287 = vunpack.c.l.b16 %v2212
    %v2288 = vunpack.c.h.b16 %v2212
    %v2289 = vunpack.c.l.b16 %v2213
    %v2290 = vunpack.c.h.b16 %v2213
    %v2291 = vunpack.c.l.b16 %v2214
    %v2292 = vunpack.c.h.b16 %v2214
    %v2293 = vunpack.c.l.b16 %v2215
    %v2294 = vunpack.c.h.b16 %v2215
    %v2295 = vunpack.c.l.b16 %v2216
    %v2296 = vunpack.c.h.b16 %v2216
    %v2297 = vunpack.c.l.b16 %v2217
    %v2298 = vunpack.c.h.b16 %v2217
    %v2299 = vunpack.c.l.b16 %v2218
    %v2300 = vunpack.c.h.b16 %v2218
    %v2301 = vunpack.c.l.b16 %v2219
    %v2302 = vunpack.c.h.b16 %v2219
    %v2303 = vunpack.c.l.b16 %v2220
    %v2304 = vunpack.c.h.b16 %v2220
    %v2305 = vunpack.c.l.b16 %v2221
    %v2306 = vunpack.c.h.b16 %v2221
    %v2307 = vunpack.c.l.b16 %v2222
    %v2308 = vunpack.c.h.b16 %v2222
    %v2309 = vunpack.c.l.b16 %v2223
    %v2310 = vunpack.c.h.b16 %v2223
    %v2311 = vunpack.c.l.b16 %v2224
    %v2312 = vunpack.c.h.b16 %v2224
    %v2313 = vunpack.c.l.b16 %v2225
    %v2314 = vunpack.c.h.b16 %v2225
    %v2315 = vunpack.c.l.b16 %v2226
    %v2316 = vunpack.c.h.b16 %v2226
    %v2317 = vunpack.c.l.b16 %v2227
    %v2318 = vunpack.c.h.b16 %v2227
    %v2319 = vunpack.c.l.b16 %v2228
    %v2320 = vunpack.c.h.b16 %v2228
    %v2321 = vunpack.c.l.b16 %v2229
    %v2322 = vunpack.c.h.b16 %v2229
    %v2323 = vunpack.c.l.b16 %v2230
    %v2324 = vunpack.c.h.b16 %v2230
    %v2325 = vunpack.c.l.b16 %v2231
    %v2326 = vunpack.c.h.b16 %v2231
    %v2327 = vunpack.c.l.b16 %v2232
    %v2328 = vunpack.c.h.b16 %v2232
    %v2329 = vpack.c.b16 %v2269, %v2265
    %v2330 = vpack.c.b16 %v2270, %v2266
    %v2331 = vpack.c.b16 %v2271, %v2267
    %v2332 = vpack.c.b16 %v2272, %v2268
    %v2333 = vpack.c.b16 %v2277, %v2273
    %v2334 = vpack.c.b16 %v2278, %v2274
    %v2335 = vpack.c.b16 %v2279, %v2275
    %v2336 = vpack.c.b16 %v2280, %v2276
    %v2337 = vpack.c.b16 %v2285, %v2281
    %v2338 = vpack.c.b16 %v2286, %v2282
    %v2339 = vpack.c.b16 %v2287, %v2283
    %v2340 = vpack.c.b16 %v2288, %v2284
    %v2341 = vpack.c.b16 %v2293, %v2289
    %v2342 = vpack.c.b16 %v2294, %v2290
    %v2343 = vpack.c.b16 %v2295, %v2291
    %v2344 = vpack.c.b16 %v2296, %v2292
    %v2345 = vpack.c.b16 %v2301, %v2297
    %v2346 = vpack.c.b16 %v2302, %v2298
    %v2347 = vpack.c.b16 %v2303, %v2299
    %v2348 = vpack.c.b16 %v2304, %v2300
    %v2349 = vpack.c.b16 %v2309, %v2305
    %v2350 = vpack.c.b16 %v2310, %v2306
    %v2351 = vpack.c.b16 %v2311, %v2307
    %v2352 = vpack.c.b16 %v2312, %v2308
    %v2353 = vpack.c.b16 %v2317, %v2313
    %v2354 = vpack.c.b16 %v2318, %v2314
    %v2355 = vpack.c.b16 %v2319, %v2315
    %v2356 = vpack.c.b16 %v2320, %v2316
    %v2357 = vpack.c.b16 %v2325, %v2321
    %v2358 = vpack.c.b16 %v2326, %v2322
    %v2359 = vpack.c.b16 %v2327, %v2323
    %v2360 = vpack.c.b16 %v2328, %v2324
    %2393 = vmatprep.subr.bf16.mxu0 %v2330
    %2394 = vmatpush1.bf16.msra.mxu0 %v2329
    %2395 = vmatprep.subr.bf16.mxu0 %v2334
    %2396 = vmatpush1.bf16.msra.mxu0 %v2333
    %2397 = vmatprep.subr.bf16.mxu0 %v2338
    %2398 = vmatpush1.bf16.msra.mxu0 %v2337
    %2399 = vmatprep.subr.bf16.mxu0 %v2342
    %2400 = vmatpush1.bf16.msra.mxu0 %v2341
    %2401 = vmatprep.subr.bf16.mxu0 %v2346
    %2402 = vmatpush1.bf16.msra.mxu0 %v2345
    %2403 = vmatprep.subr.bf16.mxu0 %v2350
    %2404 = vmatpush1.bf16.msra.mxu0 %v2349
    %2405 = vmatprep.subr.bf16.mxu0 %v2354
    %2406 = vmatpush1.bf16.msra.mxu0 %v2353
    %2407 = vmatprep.subr.bf16.mxu0 %v2358
    %2408 = vmatpush1.bf16.msra.mxu0 %v2357
    %2409 = vmatprep.subr.bf16.mxu0 0
    %2410 = vmatpush1.bf16.msra.mxu0 0
    %2411 = vmatprep.subr.bf16.mxu0 0
    %2412 = vmatpush1.bf16.msra.mxu0 0
    %2413 = vmatprep.subr.bf16.mxu0 0
    %2414 = vmatpush1.bf16.msra.mxu0 0
    %2415 = vmatprep.subr.bf16.mxu0 0
    %2416 = vmatpush1.bf16.msra.mxu0 0
    %2417 = vmatprep.subr.bf16.mxu0 0
    %2418 = vmatpush1.bf16.msra.mxu0 0
    %2419 = vmatprep.subr.bf16.mxu0 0
    %2420 = vmatpush1.bf16.msra.mxu0 0
    %2421 = vmatprep.subr.bf16.mxu0 0
    %2422 = vmatpush1.bf16.msra.mxu0 0
    %2423 = vmatprep.subr.bf16.mxu0 0
    %2424 = vmatpush1.bf16.msra.mxu0 0
    %2425 = vmatprep.mubr.bf16.mxu0 0
    %2426 = vmatmul.mubr.bf16.gmra.mrb[0].mxu0 %v2200
    %v2427 = vpop.f32.mrb[0].mxu0
    %v2428 = vadd.f32 0.0, %v2427
    %v2429 = vpop.f32.mrb[0].mxu0
    %v2430 = vadd.f32 0.0, %v2429
    %v2431 = vpop.f32.mrb[0].mxu0
    %v2432 = vpop.f32.mrb[0].mxu0
    %2433 = vdwg.mxu0
    %2434 = vmatprep.subr.bf16.mxu0 %v2332
    %2435 = vmatpush1.bf16.msra.mxu0 %v2331
    %2436 = vmatprep.subr.bf16.mxu0 %v2336
    %2437 = vmatpush1.bf16.msra.mxu0 %v2335
    %2438 = vmatprep.subr.bf16.mxu0 %v2340
    %2439 = vmatpush1.bf16.msra.mxu0 %v2339
    %2440 = vmatprep.subr.bf16.mxu0 %v2344
    %2441 = vmatpush1.bf16.msra.mxu0 %v2343
    %2442 = vmatprep.subr.bf16.mxu0 %v2348
    %2443 = vmatpush1.bf16.msra.mxu0 %v2347
    %2444 = vmatprep.subr.bf16.mxu0 %v2352
    %2445 = vmatpush1.bf16.msra.mxu0 %v2351
    %2446 = vmatprep.subr.bf16.mxu0 %v2356
    %2447 = vmatpush1.bf16.msra.mxu0 %v2355
    %2448 = vmatprep.subr.bf16.mxu0 %v2360
    %2449 = vmatpush1.bf16.msra.mxu0 %v2359
    %2450 = vmatprep.subr.bf16.mxu0 0
    %2451 = vmatpush1.bf16.msra.mxu0 0
    %2452 = vmatprep.subr.bf16.mxu0 0
    %2453 = vmatpush1.bf16.msra.mxu0 0
    %2454 = vmatprep.subr.bf16.mxu0 0
    %2455 = vmatpush1.bf16.msra.mxu0 0
    %2456 = vmatprep.subr.bf16.mxu0 0
    %2457 = vmatpush1.bf16.msra.mxu0 0
    %2458 = vmatprep.subr.bf16.mxu0 0
    %2459 = vmatpush1.bf16.msra.mxu0 0
    %2460 = vmatprep.subr.bf16.mxu0 0
    %2461 = vmatpush1.bf16.msra.mxu0 0
    %2462 = vmatprep.subr.bf16.mxu0 0
    %2463 = vmatpush1.bf16.msra.mxu0 0
    %2464 = vmatprep.subr.bf16.mxu0 0
    %2465 = vmatpush1.bf16.msra.mxu0 0
    %2466 = vmatprep.mubr.bf16.mxu0 0
    %2467 = vmatmul.mubr.bf16.gmra.mrb[0].mxu0 %v2200
    %v2468 = vpop.f32.mrb[0].mxu0
    %v2469 = vadd.f32 0.0, %v2468
    %v2470 = vpop.f32.mrb[0].mxu0
    %v2471 = vadd.f32 0.0, %v2470
    %v2472 = vpop.f32.mrb[0].mxu0
    %v2473 = vpop.f32.mrb[0].mxu0
    %2474 = vdwg.mxu0
    %v2475 = vadd.f32 %v2196, %v2428
    %v2476 = vadd.f32 %v2197, %v2430
    %v2477 = vadd.f32 %v2198, %v2469
    %v2478 = vadd.f32 %v2199, %v2471
    %v2479 = vmul.f32 %v2475, 0.5
    %v2480 = vtanh.pop %v2479
    %v2481 = vadd.f32 %v2480, 1.0
    %v2482 = vmul.f32 %v2481, 0.5
    %v2483 = vmul.f32 %v2476, 0.5
    %v2484 = vtanh.pop %v2483
    %v2485 = vadd.f32 %v2484, 1.0
    %v2486 = vmul.f32 %v2485, 0.5
    %v2487 = vtanh.pop %v2477
    %v2488 = vmul.f32 %v2478, 0.5
    %v2489 = vtanh.pop %v2488
    %v2490 = vadd.f32 %v2489, 1.0
    %v2491 = vmul.f32 %v2490, 0.5
    %v2492 = vmul.f32 %v2486, %v2188
    %v2493 = vmul.f32 %v2482, %v2487
    %v2494 = vadd.f32 %v2492, %v2493
    %v2495 = vtanh.pop %v2494
    %v2496 = vmul.f32 %v2491, %v2495
    %s2497 = scalar_lea.vmem [#allocation9], 56
    %2498 = vst [vmem:[%s2497] sm:$0xff] %v2496
    %2499 = vst [vmem:[#allocation2] sm:$0xff] %v2496
    %2500 = vst [vmem:[#allocation3] sm:$0xff] %v2494
    // Predicated region
    $region22: #{tpu_custom_call.1} parent=1 // pred_check
      %p2501 = pneg %p45
    $region23: #{tpu_custom_call.1} parent=1 // pred_check_branch
      %2503 = sbr.rel (%p2501) target = $region25
    $region24: #{tpu_custom_call.1} parent=1 // pred_region
      %v2504 = vld [vmem:[#allocation2] sm:$0xff]
      %2505 = vst [vmem:[#allocation10] sm:$0xff] %v2504
      %v2506 = vld [vmem:[#allocation3] sm:$0xff]
      %2507 = vst [vmem:[#allocation12] sm:$0xff] %v2506
    $region25: #{tpu_custom_call.1} parent=1 // pred_fallthru
      _
    // Predicated region
    $region26: #{tpu_custom_call.1} parent=1 // pred_check
      _
    $region27: #{tpu_custom_call.1} parent=1 // pred_check_branch
      %2509 = sbr.rel (0) target = $region29
    $region28: #{tpu_custom_call.1} parent=1 // pred_region
      %s2511 = ssub.s32 1024, 1024
      %2512 = vsyncadd [#allocation6], %s2511
      %s2513 = sshll.u32 [#allocation9], 4
      %s2514 = int_to_ptr.vmem [resolvable:$true] %s2513
      %2519 = dma.vmem_to_hbm [thread:$0]  %s2514, 1024, %s2, [#allocation6], 128, 128, 8
    $region29: #{tpu_custom_call.1} parent=1 // pred_fallthru
      _
    // Predicated region
    $region30: #{tpu_custom_call.1} parent=1 // pred_check
      _
    $region31: #{tpu_custom_call.1} parent=1 // pred_check_branch
      %2521 = sbr.rel (0) target = $region33
    $region32: #{tpu_custom_call.1} parent=1 // pred_region
      %s2523 = ssub.s32 128, 128
      %2524 = vsyncadd [#allocation11], %s2523
      %s2526 = sshll.u32 [#allocation10], 4
      %s2527 = int_to_ptr.vmem [resolvable:$true] %s2526
      %2529 = dma.vmem_to_hbm [thread:$0]  %s2527, 128, %s3, [#allocation11]
    $region33: #{tpu_custom_call.1} parent=1 // pred_fallthru
      _
    // Predicated region
    $region34: #{tpu_custom_call.1} parent=1 // pred_check
      _
    $region35: #{tpu_custom_call.1} parent=1 // pred_check_branch
      %2531 = sbr.rel (0) target = $region37
    $region36: #{tpu_custom_call.1} parent=1 // pred_region
      %s2533 = ssub.s32 128, 128
      %2534 = vsyncadd [#allocation11], %s2533
      %s2536 = sshll.u32 [#allocation12], 4
      %s2537 = int_to_ptr.vmem [resolvable:$true] %s2536
      %2539 = dma.vmem_to_hbm [thread:$0]  %s2537, 128, %s4, [#allocation11]
    $region37: #{tpu_custom_call.1} parent=1 // pred_fallthru
      _
    // Predicated region
    $region38: #{tpu_custom_call.1} parent=1 // pred_check
      _
    $region39: #{tpu_custom_call.1} parent=1 // pred_check_branch
      %2541 = sbr.rel (0) target = $region41
    $region40: #{tpu_custom_call.1} parent=1 // pred_region
      %2542 = dma.done [#allocation6], 1024
    $region41: #{tpu_custom_call.1} parent=1 // pred_fallthru
      _
    // Predicated region
    $region42: #{tpu_custom_call.1} parent=1 // pred_check
      _
    $region43: #{tpu_custom_call.1} parent=1 // pred_check_branch
      %2544 = sbr.rel (0) target = $region45
    $region44: #{tpu_custom_call.1} parent=1 // pred_region
      %2545 = dma.done [#allocation11], 128
    $region45: #{tpu_custom_call.1} parent=1 // pred_fallthru
      _
    // Predicated region
    $region46: #{tpu_custom_call.1} parent=1 // pred_check
      _
    $region47: #{tpu_custom_call.1} parent=1 // pred_check_branch
      %2547 = sbr.rel (0) target = $region49
    $region48: #{tpu_custom_call.1} parent=1 // pred_region
      %2548 = dma.done [#allocation11], 128
    $region49: #{tpu_custom_call.1} parent=1 // pred_fallthru
      _
    %2549 = vsyncpa [#allocation5], 1
    %2550 = vsyncpa [#allocation8], 1
    %2551 = vsyncpa [#allocation6], 1
    %2552 = vsyncpa [#allocation11], 1

</llo_original>
